<compile_context>
chip_gen: v6e
topology: v6e:2x2x1
jax: 0.10.0
libtpu: 0.0.40
codegen_flags: <defaults>
</compile_context>

<pallas_src>
import functools

import jax
import jax.numpy as jnp
from jax import lax
from jax.experimental import pallas as pl
from jax.experimental.pallas import tpu as pltpu


def _birnn_kernel(*refs, num_layers, hidden, seq_len, batch):
    """Fused BiLSTM stack + decoder for one batch tile.

    refs layout:
      in : emb (seq*batch, E) bf16,
           [wih_cat (in,8H) bf16, whh_f (H,4H) bf16, whh_b (H,4H) bf16, b_cat (1,8H) f32] * L,
           dec_w (4H,2) bf16, dec_b (1,2) f32
      out: logits (batch, 2) f32
      scr: xw (seq*batch, 8H) f32, act_f (seq*batch, H) bf16, act_b (seq*batch, H) bf16
    """
    H = hidden
    G = 4 * H
    n_in = 1 + 4 * num_layers + 2
    emb_ref = refs[0]
    layer_refs = refs[1:1 + 4 * num_layers]
    dec_w_ref = refs[1 + 4 * num_layers]
    dec_b_ref = refs[2 + 4 * num_layers]
    out_ref = refs[n_in]
    xw, act_f, act_b = refs[n_in + 1:]

    def lstm_cell(gates, c_prev):
        if H >= 128:
            # Slice-then-activate: 5H of EUP work instead of 8H (EUP is on the critical path).
            i_f = jax.nn.sigmoid(gates[:, 0:2 * H])
            g = jnp.tanh(gates[:, 2 * H:3 * H])
            o = jax.nn.sigmoid(gates[:, 3 * H:4 * H])
            i, f = i_f[:, :H], i_f[:, H:]
        else:
            # H < 128: slices are sub-vreg, full-width activations avoid relayouts.
            sg = jax.nn.sigmoid(gates)
            tg = jnp.tanh(gates)
            i = sg[:, 0 * H:1 * H]
            f = sg[:, 1 * H:2 * H]
            g = tg[:, 2 * H:3 * H]
            o = sg[:, 3 * H:4 * H]
        c = f * c_prev + i * g
        h = o * jnp.tanh(c)
        return h, c

    for layer in range(num_layers):
        wih_ref, whh_f_ref, whh_b_ref, b_ref = layer_refs[4 * layer:4 * layer + 4]

        # Hoisted input projection: fwd|bwd fused into one (in_dim, 8H) matmul for the
        # whole sequence; combined bias folded in here (broadcast once per layer).
        if layer == 0:
            xw[...] = (jnp.dot(emb_ref[...], wih_ref[...],
                               preferred_element_type=jnp.float32) + b_ref[...])
        else:
            # Layer input is [act_f | act_b]; split W_ih along K instead of concatenating.
            xw[...] = (jnp.dot(act_f[...], wih_ref[:H, :],
                               preferred_element_type=jnp.float32)
                       + jnp.dot(act_b[...], wih_ref[H:, :],
                                 preferred_element_type=jnp.float32)
                       + b_ref[...])

        # Hoist recurrent weight loads out of the time loop.
        whh_f_v = whh_f_ref[...]
        whh_b_v = whh_b_ref[...]

        def step(t, carry):
            h_f, c_f, h_b, c_b = carry            # h_* bf16, c_* f32 (kept in vregs)
            row_f = pl.multiple_of(t * batch, 8)
            row_b = pl.multiple_of((seq_len - 1 - t) * batch, 8)
            # Two independent recurrences interleaved: their MXU/EUP chains overlap.
            gates_f = xw[pl.ds(row_f, batch), 0:G] + jnp.dot(
                h_f, whh_f_v, preferred_element_type=jnp.float32)
            gates_b = xw[pl.ds(row_b, batch), G:2 * G] + jnp.dot(
                h_b, whh_b_v, preferred_element_type=jnp.float32)
            hf_new, cf_new = lstm_cell(gates_f, c_f)
            hb_new, cb_new = lstm_cell(gates_b, c_b)
            hf_bf = hf_new.astype(jnp.bfloat16)
            hb_bf = hb_new.astype(jnp.bfloat16)
            # Direction-major full-row stores (no lane-offset masked stores).
            act_f[pl.ds(row_f, batch), :] = hf_bf
            act_b[pl.ds(row_b, batch), :] = hb_bf
            return (hf_bf, cf_new, hb_bf, cb_new)

        carry0 = (jnp.zeros((batch, H), jnp.bfloat16),
                  jnp.zeros((batch, H), jnp.float32),
                  jnp.zeros((batch, H), jnp.bfloat16),
                  jnp.zeros((batch, H), jnp.float32))
        unroll = seq_len if seq_len <= 32 else 4
        lax.fori_loop(0, seq_len, step, carry0, unroll=unroll)

    # Decoder epilogue: encoding = cat(outputs[0], outputs[-1]) = [f0, b0, f_last, b_last].
    last_row = pl.multiple_of((seq_len - 1) * batch, 8)
    enc = jnp.concatenate(
        [act_f[pl.ds(0, batch), :], act_b[pl.ds(0, batch), :],
         act_f[pl.ds(last_row, batch), :], act_b[pl.ds(last_row, batch), :]],
        axis=-1)                                   # (batch, 4H) bf16
    out_ref[...] = (jnp.dot(enc, dec_w_ref[...], preferred_element_type=jnp.float32)
                    + dec_b_ref[...])


def birnn_pallas(emb_tiles, layer_args, dec_w, dec_b, *, seq_len, batch_tile, num_tiles,
                 hidden, num_layers):
    # The pl.multiple_of hints in the kernel require sublane-aligned batch tiles.
    assert batch_tile % 8 == 0, "batch tile must be a multiple of 8 (sublane alignment)"
    G = 4 * hidden
    rows = seq_len * batch_tile
    embed_in = emb_tiles.shape[-1]

    args = [emb_tiles]
    for la in layer_args:
        args += list(la)
    args += [dec_w, dec_b]

    kernel = functools.partial(_birnn_kernel, num_layers=num_layers, hidden=hidden,
                               seq_len=seq_len, batch=batch_tile)

    vmem_full = pl.BlockSpec(memory_space=pltpu.MemorySpace.VMEM)
    in_specs = ([pl.BlockSpec((None, rows, embed_in), lambda i: (i, 0, 0))]
                + [vmem_full] * (len(args) - 1))

    # Explicit VMEM budget: emb block (x2 double buffer) + all weights + scratch + output.
    weight_bytes = sum(int(a.size) * a.dtype.itemsize for a in args[1:])
    scratch_bytes = rows * 2 * G * 4 + 2 * rows * hidden * 2
    est = 2 * rows * embed_in * 2 + weight_bytes + scratch_bytes + 2 * batch_tile * 2 * 4
    vmem_limit = int(min(128 << 20, max(32 << 20, 2 * est + (4 << 20))))

    return pl.pallas_call(
        kernel,
        grid=(num_tiles,),
        out_shape=jax.ShapeDtypeStruct((num_tiles * batch_tile, 2), jnp.float32),
        in_specs=in_specs,
        out_specs=pl.BlockSpec((batch_tile, 2), lambda i: (i, 0)),
        scratch_shapes=[
            pltpu.VMEM((rows, 2 * G), jnp.float32),    # xw: fused fwd|bwd pre-activations
            pltpu.VMEM((rows, hidden), jnp.bfloat16),  # act_f (fwd layer outputs)
            pltpu.VMEM((rows, hidden), jnp.bfloat16),  # act_b (bwd layer outputs)
        ],
        compiler_params=pltpu.CompilerParams(
            dimension_semantics=("parallel",),
            vmem_limit_bytes=vmem_limit),
    )(*args)


def init_params(key, vocab_size, embed_size, num_hiddens, num_layers):
    """Deterministic synthetic parameters matching nn.Embedding / nn.LSTM(bi) / nn.Linear."""
    params = {}
    key, k_embed = jax.random.split(key)
    params["embedding"] = jax.random.normal(k_embed, (vocab_size, embed_size), jnp.float32)

    lstm = []
    scale = 1.0 / jnp.sqrt(jnp.float32(num_hiddens))
    for layer in range(num_layers):
        in_dim = embed_size if layer == 0 else 2 * num_hiddens
        per_dir = []
        for _ in range(2):  # forward, backward directions
            key, k1, k2, k3, k4 = jax.random.split(key, 5)
            w_ih = jax.random.uniform(k1, (4 * num_hiddens, in_dim), jnp.float32, -scale, scale)
            w_hh = jax.random.uniform(k2, (4 * num_hiddens, num_hiddens), jnp.float32, -scale, scale)
            b_ih = jax.random.uniform(k3, (4 * num_hiddens,), jnp.float32, -scale, scale)
            b_hh = jax.random.uniform(k4, (4 * num_hiddens,), jnp.float32, -scale, scale)
            per_dir.append({
                "w_ih_t": w_ih.T,                   # (in_dim, 4H)
                "w_hh_t": w_hh.T,                   # (H, 4H)
                "b": (b_ih + b_hh).reshape(1, -1),  # (1, 4H)
            })
        lstm.append(per_dir)
    params["lstm"] = lstm

    key, k_w, k_b = jax.random.split(key, 3)
    dscale = 1.0 / jnp.sqrt(jnp.float32(4 * num_hiddens))
    params["dec_w_t"] = jax.random.uniform(k_w, (4 * num_hiddens, 2), jnp.float32, -dscale, dscale)
    params["dec_b"] = jax.random.uniform(k_b, (1, 2), jnp.float32, -dscale, dscale)
    return params


def birnn_forward(params, inputs, num_hiddens, num_layers):
    """inputs: (batch, seq_len) int32 token ids -> (batch, 2) f32 logits."""
    batch, seq_len = inputs.shape
    # Embedding lookup is data-dependent gather glue; everything else runs in the kernel.
    emb = jnp.take(params["embedding"], inputs.T, axis=0)        # (seq, batch, E)
    embed_size = emb.shape[-1]

    # Pad batch to a multiple of 8 so activations / per-step slices are sublane-dense.
    batch_p = max(8, ((batch + 7) // 8) * 8)
    if batch_p != batch:
        emb = jnp.pad(emb, ((0, 0), (0, batch_p - batch), (0, 0)))

    # Batch-tile "parallel" grid axis: 2 tiles (one per v7x TensorCore) when batch allows.
    num_tiles = 2 if (batch_p >= 16 and batch_p % 16 == 0) else 1
    batch_tile = batch_p // num_tiles
    emb_tiles = (emb.reshape(seq_len, num_tiles, batch_tile, embed_size)
                    .transpose(1, 0, 2, 3)
                    .reshape(num_tiles, seq_len * batch_tile, embed_size)
                    .astype(jnp.bfloat16))

    layer_args = []
    for layer in range(num_layers):
        p_f, p_b = params["lstm"][layer]
        wih_cat = jnp.concatenate([p_f["w_ih_t"], p_b["w_ih_t"]], axis=1).astype(jnp.bfloat16)
        b_cat = jnp.concatenate([p_f["b"], p_b["b"]], axis=1)     # f32 (1, 8H)
        layer_args.append((wih_cat,
                           p_f["w_hh_t"].astype(jnp.bfloat16),
                           p_b["w_hh_t"].astype(jnp.bfloat16),
                           b_cat))

    out = birnn_pallas(emb_tiles, layer_args,
                       params["dec_w_t"].astype(jnp.bfloat16), params["dec_b"],
                       seq_len=seq_len, batch_tile=batch_tile, num_tiles=num_tiles,
                       hidden=num_hiddens, num_layers=num_layers)
    return out[:batch]


if __name__ == "__main__":
    vocab_size, embed_size, num_hiddens, num_layers = 50, 32, 32, 2
    batch, seq_len = 2, 8

    key = jax.random.PRNGKey(0)
    k_params, k_inp = jax.random.split(key)
    params = init_params(k_params, vocab_size, embed_size, num_hiddens, num_layers)
    inputs = jax.random.randint(k_inp, (batch, seq_len), 0, vocab_size, dtype=jnp.int32)

    out = birnn_forward(params, inputs, num_hiddens, num_layers)
    jax.block_until_ready(out)
    assert out.shape == (batch, 2) and out.dtype == jnp.float32
    assert bool(jnp.all(jnp.isfinite(out)))
    print("KERNEL_OK")
</pallas_src>

<mosaic_0001>
module attributes {stable_mosaic.version = 11 : i64} {
  func.func @_birnn_kernel(%arg0: i32, %arg1: memref<1x64x32xbf16, #tpu.memory_space<vmem>>, %arg2: memref<32x256xbf16, #tpu.memory_space<vmem>>, %arg3: memref<32x128xbf16, #tpu.memory_space<vmem>>, %arg4: memref<32x128xbf16, #tpu.memory_space<vmem>>, %arg5: memref<1x256xf32, #tpu.memory_space<vmem>>, %arg6: memref<64x256xbf16, #tpu.memory_space<vmem>>, %arg7: memref<32x128xbf16, #tpu.memory_space<vmem>>, %arg8: memref<32x128xbf16, #tpu.memory_space<vmem>>, %arg9: memref<1x256xf32, #tpu.memory_space<vmem>>, %arg10: memref<128x2xbf16, #tpu.memory_space<vmem>>, %arg11: memref<1x2xf32, #tpu.memory_space<vmem>>, %arg12: memref<8x2xf32, #tpu.memory_space<vmem>>, %arg13: memref<64x256xf32, #tpu.memory_space<vmem>>, %arg14: memref<64x32xbf16, #tpu.memory_space<vmem>>, %arg15: memref<64x32xbf16, #tpu.memory_space<vmem>>) attributes {dimension_semantics = [#tpu.dimension_semantics<parallel>], iteration_bounds = array<i64: 1>, scalar_prefetch = 0 : i64, scratch_operands = 3 : i64, tpu.core_type = #tpu.core_type<tc>, window_params = [{transform_indices = @transform_0, window_bounds = array<i64: 1, 64, 32>}, {pipeline_mode = #tpu.pipeline_mode<synchronous>, transform_indices = @transform_1, window_bounds = array<i64: 32, 256>}, {pipeline_mode = #tpu.pipeline_mode<synchronous>, transform_indices = @transform_2, window_bounds = array<i64: 32, 128>}, {pipeline_mode = #tpu.pipeline_mode<synchronous>, transform_indices = @transform_3, window_bounds = array<i64: 32, 128>}, {pipeline_mode = #tpu.pipeline_mode<synchronous>, transform_indices = @transform_4, window_bounds = array<i64: 1, 256>}, {pipeline_mode = #tpu.pipeline_mode<synchronous>, transform_indices = @transform_5, window_bounds = array<i64: 64, 256>}, {pipeline_mode = #tpu.pipeline_mode<synchronous>, transform_indices = @transform_6, window_bounds = array<i64: 32, 128>}, {pipeline_mode = #tpu.pipeline_mode<synchronous>, transform_indices = @transform_7, window_bounds = array<i64: 32, 128>}, {pipeline_mode = #tpu.pipeline_mode<synchronous>, transform_indices = @transform_8, window_bounds = array<i64: 1, 256>}, {pipeline_mode = #tpu.pipeline_mode<synchronous>, transform_indices = @transform_9, window_bounds = array<i64: 128, 2>}, {pipeline_mode = #tpu.pipeline_mode<synchronous>, transform_indices = @transform_10, window_bounds = array<i64: 1, 2>}, {transform_indices = @transform_11, window_bounds = array<i64: 8, 2>}]} {
    %c0 = arith.constant 0 : index
    %c0_0 = arith.constant 0 : index
    %c0_1 = arith.constant 0 : index
    %0 = vector.load %arg1[%c0, %c0_0, %c0_1] : memref<1x64x32xbf16, #tpu.memory_space<vmem>>, vector<1x64x32xbf16>
    %1 = vector.shape_cast %0 : vector<1x64x32xbf16> to vector<64x32xbf16>
    %c0_2 = arith.constant 0 : index
    %c0_3 = arith.constant 0 : index
    %2 = vector.load %arg2[%c0_2, %c0_3] : memref<32x256xbf16, #tpu.memory_space<vmem>>, vector<32x256xbf16>
    %cst = arith.constant dense<0.000000e+00> : vector<64x256xf32>
    %3 = tpu.matmul %1, %2, %cst {dimension_numbers = #tpu.dot_dimension_numbers<[1], [0], [0], [1], [0, 0, 1, 1], [], []>} : vector<64x32xbf16>, vector<32x256xbf16>, vector<64x256xf32> -> vector<64x256xf32>
    %c0_4 = arith.constant 0 : index
    %c0_5 = arith.constant 0 : index
    %4 = vector.load %arg5[%c0_4, %c0_5] : memref<1x256xf32, #tpu.memory_space<vmem>>, vector<1x256xf32>
    %5 = vector.broadcast %4 : vector<1x256xf32> to vector<64x256xf32>
    %6 = arith.addf %3, %5 : vector<64x256xf32>
    %c0_6 = arith.constant 0 : index
    %c0_7 = arith.constant 0 : index
    %7 = vector.load %arg13[%c0_6, %c0_7] : memref<64x256xf32, #tpu.memory_space<vmem>>, vector<64x256xf32>
    tpu.vector_store %arg13[%c0_6, %c0_7], %6 {strides = array<i32>} : memref<64x256xf32, #tpu.memory_space<vmem>>, vector<64x256xf32>,
    %c0_8 = arith.constant 0 : index
    %c0_9 = arith.constant 0 : index
    %8 = vector.load %arg3[%c0_8, %c0_9] : memref<32x128xbf16, #tpu.memory_space<vmem>>, vector<32x128xbf16>
    %c0_10 = arith.constant 0 : index
    %c0_11 = arith.constant 0 : index
    %9 = vector.load %arg4[%c0_10, %c0_11] : memref<32x128xbf16, #tpu.memory_space<vmem>>, vector<32x128xbf16>
    %cst_12 = arith.constant 0.000000e+00 : bf16
    %10 = vector.broadcast %cst_12 : bf16 to vector<8x32xbf16>
    %cst_13 = arith.constant 0.000000e+00 : f32
    %11 = vector.broadcast %cst_13 : f32 to vector<8x32xf32>
    %cst_14 = arith.constant 0.000000e+00 : bf16
    %12 = vector.broadcast %cst_14 : bf16 to vector<8x32xbf16>
    %cst_15 = arith.constant 0.000000e+00 : f32
    %13 = vector.broadcast %cst_15 : f32 to vector<8x32xf32>
    %c0_i32 = arith.constant 0 : i32
    %c8_i32 = arith.constant 8 : i32
    %14 = arith.muli %c0_i32, %c8_i32 : i32
    %15 = tpu.assume_multiple %14, 8 : i32
    %c7_i32 = arith.constant 7 : i32
    %16 = arith.subi %c7_i32, %c0_i32 : i32
    %c8_i32_16 = arith.constant 8 : i32
    %17 = arith.muli %16, %c8_i32_16 : i32
    %18 = tpu.assume_multiple %17, 8 : i32
    %19 = arith.index_cast %15 : i32 to index
    %c0_17 = arith.constant 0 : index
    %20 = vector.load %arg13[%19, %c0_17] : memref<64x256xf32, #tpu.memory_space<vmem>>, vector<8x128xf32>
    %cst_18 = arith.constant dense<0.000000e+00> : vector<8x128xf32>
    %21 = tpu.matmul %10, %8, %cst_18 {dimension_numbers = #tpu.dot_dimension_numbers<[1], [0], [0], [1], [0, 0, 1, 1], [], []>} : vector<8x32xbf16>, vector<32x128xbf16>, vector<8x128xf32> -> vector<8x128xf32>
    %22 = arith.addf %20, %21 : vector<8x128xf32>
    %23 = arith.index_cast %18 : i32 to index
    %c128 = arith.constant 128 : index
    %24 = vector.load %arg13[%23, %c128] : memref<64x256xf32, #tpu.memory_space<vmem>>, vector<8x128xf32>
    %cst_19 = arith.constant dense<0.000000e+00> : vector<8x128xf32>
    %25 = tpu.matmul %12, %9, %cst_19 {dimension_numbers = #tpu.dot_dimension_numbers<[1], [0], [0], [1], [0, 0, 1, 1], [], []>} : vector<8x32xbf16>, vector<32x128xbf16>, vector<8x128xf32> -> vector<8x128xf32>
    %26 = arith.addf %24, %25 : vector<8x128xf32>
    %27 = arith.negf %22 : vector<8x128xf32>
    %28 = math.exp %27 : vector<8x128xf32>
    %cst_20 = arith.constant 1.000000e+00 : f32
    %29 = vector.broadcast %cst_20 : f32 to vector<8x128xf32>
    %30 = arith.addf %29, %28 : vector<8x128xf32>
    %31 = arith.divf %29, %30 : vector<8x128xf32>
    %32 = math.tanh %22 : vector<8x128xf32>
    %33 = vector.extract_strided_slice %31 {offsets = [0, 0], sizes = [8, 32], strides = [1, 1]} : vector<8x128xf32> to vector<8x32xf32>
    %34 = vector.extract_strided_slice %31 {offsets = [0, 32], sizes = [8, 32], strides = [1, 1]} : vector<8x128xf32> to vector<8x32xf32>
    %35 = vector.extract_strided_slice %32 {offsets = [0, 64], sizes = [8, 32], strides = [1, 1]} : vector<8x128xf32> to vector<8x32xf32>
    %36 = vector.extract_strided_slice %31 {offsets = [0, 96], sizes = [8, 32], strides = [1, 1]} : vector<8x128xf32> to vector<8x32xf32>
    %37 = arith.mulf %34, %11 : vector<8x32xf32>
    %38 = arith.mulf %33, %35 : vector<8x32xf32>
    %39 = arith.addf %37, %38 : vector<8x32xf32>
    %40 = math.tanh %39 : vector<8x32xf32>
    %41 = arith.mulf %36, %40 : vector<8x32xf32>
    %42 = arith.negf %26 : vector<8x128xf32>
    %43 = math.exp %42 : vector<8x128xf32>
    %cst_21 = arith.constant 1.000000e+00 : f32
    %44 = vector.broadcast %cst_21 : f32 to vector<8x128xf32>
    %45 = arith.addf %44, %43 : vector<8x128xf32>
    %46 = arith.divf %44, %45 : vector<8x128xf32>
    %47 = math.tanh %26 : vector<8x128xf32>
    %48 = vector.extract_strided_slice %46 {offsets = [0, 0], sizes = [8, 32], strides = [1, 1]} : vector<8x128xf32> to vector<8x32xf32>
    %49 = vector.extract_strided_slice %46 {offsets = [0, 32], sizes = [8, 32], strides = [1, 1]} : vector<8x128xf32> to vector<8x32xf32>
    %50 = vector.extract_strided_slice %47 {offsets = [0, 64], sizes = [8, 32], strides = [1, 1]} : vector<8x128xf32> to vector<8x32xf32>
    %51 = vector.extract_strided_slice %46 {offsets = [0, 96], sizes = [8, 32], strides = [1, 1]} : vector<8x128xf32> to vector<8x32xf32>
    %52 = arith.mulf %49, %13 : vector<8x32xf32>
    %53 = arith.mulf %48, %50 : vector<8x32xf32>
    %54 = arith.addf %52, %53 : vector<8x32xf32>
    %55 = math.tanh %54 : vector<8x32xf32>
    %56 = arith.mulf %51, %55 : vector<8x32xf32>
    %57 = arith.truncf %41 : vector<8x32xf32> to vector<8x32xbf16>
    %58 = arith.truncf %56 : vector<8x32xf32> to vector<8x32xbf16>
    %59 = arith.index_cast %15 : i32 to index
    %c0_22 = arith.constant 0 : index
    %60 = vector.load %arg14[%59, %c0_22] : memref<64x32xbf16, #tpu.memory_space<vmem>>, vector<8x32xbf16>
    tpu.vector_store %arg14[%59, %c0_22], %57 {strides = array<i32>} : memref<64x32xbf16, #tpu.memory_space<vmem>>, vector<8x32xbf16>,
    %61 = arith.index_cast %18 : i32 to index
    %c0_23 = arith.constant 0 : index
    %62 = vector.load %arg15[%61, %c0_23] : memref<64x32xbf16, #tpu.memory_space<vmem>>, vector<8x32xbf16>
    tpu.vector_store %arg15[%61, %c0_23], %58 {strides = array<i32>} : memref<64x32xbf16, #tpu.memory_space<vmem>>, vector<8x32xbf16>,
    %c1_i32 = arith.constant 1 : i32
    %c8_i32_24 = arith.constant 8 : i32
    %63 = arith.muli %c1_i32, %c8_i32_24 : i32
    %64 = tpu.assume_multiple %63, 8 : i32
    %c7_i32_25 = arith.constant 7 : i32
    %65 = arith.subi %c7_i32_25, %c1_i32 : i32
    %c8_i32_26 = arith.constant 8 : i32
    %66 = arith.muli %65, %c8_i32_26 : i32
    %67 = tpu.assume_multiple %66, 8 : i32
    %68 = arith.index_cast %64 : i32 to index
    %c0_27 = arith.constant 0 : index
    %69 = vector.load %arg13[%68, %c0_27] : memref<64x256xf32, #tpu.memory_space<vmem>>, vector<8x128xf32>
    %cst_28 = arith.constant dense<0.000000e+00> : vector<8x128xf32>
    %70 = tpu.matmul %57, %8, %cst_28 {dimension_numbers = #tpu.dot_dimension_numbers<[1], [0], [0], [1], [0, 0, 1, 1], [], []>} : vector<8x32xbf16>, vector<32x128xbf16>, vector<8x128xf32> -> vector<8x128xf32>
    %71 = arith.addf %69, %70 : vector<8x128xf32>
    %72 = arith.index_cast %67 : i32 to index
    %c128_29 = arith.constant 128 : index
    %73 = vector.load %arg13[%72, %c128_29] : memref<64x256xf32, #tpu.memory_space<vmem>>, vector<8x128xf32>
    %cst_30 = arith.constant dense<0.000000e+00> : vector<8x128xf32>
    %74 = tpu.matmul %58, %9, %cst_30 {dimension_numbers = #tpu.dot_dimension_numbers<[1], [0], [0], [1], [0, 0, 1, 1], [], []>} : vector<8x32xbf16>, vector<32x128xbf16>, vector<8x128xf32> -> vector<8x128xf32>
    %75 = arith.addf %73, %74 : vector<8x128xf32>
    %76 = arith.negf %71 : vector<8x128xf32>
    %77 = math.exp %76 : vector<8x128xf32>
    %cst_31 = arith.constant 1.000000e+00 : f32
    %78 = vector.broadcast %cst_31 : f32 to vector<8x128xf32>
    %79 = arith.addf %78, %77 : vector<8x128xf32>
    %80 = arith.divf %78, %79 : vector<8x128xf32>
    %81 = math.tanh %71 : vector<8x128xf32>
    %82 = vector.extract_strided_slice %80 {offsets = [0, 0], sizes = [8, 32], strides = [1, 1]} : vector<8x128xf32> to vector<8x32xf32>
    %83 = vector.extract_strided_slice %80 {offsets = [0, 32], sizes = [8, 32], strides = [1, 1]} : vector<8x128xf32> to vector<8x32xf32>
    %84 = vector.extract_strided_slice %81 {offsets = [0, 64], sizes = [8, 32], strides = [1, 1]} : vector<8x128xf32> to vector<8x32xf32>
    %85 = vector.extract_strided_slice %80 {offsets = [0, 96], sizes = [8, 32], strides = [1, 1]} : vector<8x128xf32> to vector<8x32xf32>
    %86 = arith.mulf %83, %39 : vector<8x32xf32>
    %87 = arith.mulf %82, %84 : vector<8x32xf32>
    %88 = arith.addf %86, %87 : vector<8x32xf32>
    %89 = math.tanh %88 : vector<8x32xf32>
    %90 = arith.mulf %85, %89 : vector<8x32xf32>
    %91 = arith.negf %75 : vector<8x128xf32>
    %92 = math.exp %91 : vector<8x128xf32>
    %cst_32 = arith.constant 1.000000e+00 : f32
    %93 = vector.broadcast %cst_32 : f32 to vector<8x128xf32>
    %94 = arith.addf %93, %92 : vector<8x128xf32>
    %95 = arith.divf %93, %94 : vector<8x128xf32>
    %96 = math.tanh %75 : vector<8x128xf32>
    %97 = vector.extract_strided_slice %95 {offsets = [0, 0], sizes = [8, 32], strides = [1, 1]} : vector<8x128xf32> to vector<8x32xf32>
    %98 = vector.extract_strided_slice %95 {offsets = [0, 32], sizes = [8, 32], strides = [1, 1]} : vector<8x128xf32> to vector<8x32xf32>
    %99 = vector.extract_strided_slice %96 {offsets = [0, 64], sizes = [8, 32], strides = [1, 1]} : vector<8x128xf32> to vector<8x32xf32>
    %100 = vector.extract_strided_slice %95 {offsets = [0, 96], sizes = [8, 32], strides = [1, 1]} : vector<8x128xf32> to vector<8x32xf32>
    %101 = arith.mulf %98, %54 : vector<8x32xf32>
    %102 = arith.mulf %97, %99 : vector<8x32xf32>
    %103 = arith.addf %101, %102 : vector<8x32xf32>
    %104 = math.tanh %103 : vector<8x32xf32>
    %105 = arith.mulf %100, %104 : vector<8x32xf32>
    %106 = arith.truncf %90 : vector<8x32xf32> to vector<8x32xbf16>
    %107 = arith.truncf %105 : vector<8x32xf32> to vector<8x32xbf16>
    %108 = arith.index_cast %64 : i32 to index
    %c0_33 = arith.constant 0 : index
    %109 = vector.load %arg14[%108, %c0_33] : memref<64x32xbf16, #tpu.memory_space<vmem>>, vector<8x32xbf16>
    tpu.vector_store %arg14[%108, %c0_33], %106 {strides = array<i32>} : memref<64x32xbf16, #tpu.memory_space<vmem>>, vector<8x32xbf16>,
    %110 = arith.index_cast %67 : i32 to index
    %c0_34 = arith.constant 0 : index
    %111 = vector.load %arg15[%110, %c0_34] : memref<64x32xbf16, #tpu.memory_space<vmem>>, vector<8x32xbf16>
    tpu.vector_store %arg15[%110, %c0_34], %107 {strides = array<i32>} : memref<64x32xbf16, #tpu.memory_space<vmem>>, vector<8x32xbf16>,
    %c2_i32 = arith.constant 2 : i32
    %c8_i32_35 = arith.constant 8 : i32
    %112 = arith.muli %c2_i32, %c8_i32_35 : i32
    %113 = tpu.assume_multiple %112, 8 : i32
    %c7_i32_36 = arith.constant 7 : i32
    %114 = arith.subi %c7_i32_36, %c2_i32 : i32
    %c8_i32_37 = arith.constant 8 : i32
    %115 = arith.muli %114, %c8_i32_37 : i32
    %116 = tpu.assume_multiple %115, 8 : i32
    %117 = arith.index_cast %113 : i32 to index
    %c0_38 = arith.constant 0 : index
    %118 = vector.load %arg13[%117, %c0_38] : memref<64x256xf32, #tpu.memory_space<vmem>>, vector<8x128xf32>
    %cst_39 = arith.constant dense<0.000000e+00> : vector<8x128xf32>
    %119 = tpu.matmul %106, %8, %cst_39 {dimension_numbers = #tpu.dot_dimension_numbers<[1], [0], [0], [1], [0, 0, 1, 1], [], []>} : vector<8x32xbf16>, vector<32x128xbf16>, vector<8x128xf32> -> vector<8x128xf32>
    %120 = arith.addf %118, %119 : vector<8x128xf32>
    %121 = arith.index_cast %116 : i32 to index
    %c128_40 = arith.constant 128 : index
    %122 = vector.load %arg13[%121, %c128_40] : memref<64x256xf32, #tpu.memory_space<vmem>>, vector<8x128xf32>
    %cst_41 = arith.constant dense<0.000000e+00> : vector<8x128xf32>
    %123 = tpu.matmul %107, %9, %cst_41 {dimension_numbers = #tpu.dot_dimension_numbers<[1], [0], [0], [1], [0, 0, 1, 1], [], []>} : vector<8x32xbf16>, vector<32x128xbf16>, vector<8x128xf32> -> vector<8x128xf32>
    %124 = arith.addf %122, %123 : vector<8x128xf32>
    %125 = arith.negf %120 : vector<8x128xf32>
    %126 = math.exp %125 : vector<8x128xf32>
    %cst_42 = arith.constant 1.000000e+00 : f32
    %127 = vector.broadcast %cst_42 : f32 to vector<8x128xf32>
    %128 = arith.addf %127, %126 : vector<8x128xf32>
    %129 = arith.divf %127, %128 : vector<8x128xf32>
    %130 = math.tanh %120 : vector<8x128xf32>
    %131 = vector.extract_strided_slice %129 {offsets = [0, 0], sizes = [8, 32], strides = [1, 1]} : vector<8x128xf32> to vector<8x32xf32>
    %132 = vector.extract_strided_slice %129 {offsets = [0, 32], sizes = [8, 32], strides = [1, 1]} : vector<8x128xf32> to vector<8x32xf32>
    %133 = vector.extract_strided_slice %130 {offsets = [0, 64], sizes = [8, 32], strides = [1, 1]} : vector<8x128xf32> to vector<8x32xf32>
    %134 = vector.extract_strided_slice %129 {offsets = [0, 96], sizes = [8, 32], strides = [1, 1]} : vector<8x128xf32> to vector<8x32xf32>
    %135 = arith.mulf %132, %88 : vector<8x32xf32>
    %136 = arith.mulf %131, %133 : vector<8x32xf32>
    %137 = arith.addf %135, %136 : vector<8x32xf32>
    %138 = math.tanh %137 : vector<8x32xf32>
    %139 = arith.mulf %134, %138 : vector<8x32xf32>
    %140 = arith.negf %124 : vector<8x128xf32>
    %141 = math.exp %140 : vector<8x128xf32>
    %cst_43 = arith.constant 1.000000e+00 : f32
    %142 = vector.broadcast %cst_43 : f32 to vector<8x128xf32>
    %143 = arith.addf %142, %141 : vector<8x128xf32>
    %144 = arith.divf %142, %143 : vector<8x128xf32>
    %145 = math.tanh %124 : vector<8x128xf32>
    %146 = vector.extract_strided_slice %144 {offsets = [0, 0], sizes = [8, 32], strides = [1, 1]} : vector<8x128xf32> to vector<8x32xf32>
    %147 = vector.extract_strided_slice %144 {offsets = [0, 32], sizes = [8, 32], strides = [1, 1]} : vector<8x128xf32> to vector<8x32xf32>
    %148 = vector.extract_strided_slice %145 {offsets = [0, 64], sizes = [8, 32], strides = [1, 1]} : vector<8x128xf32> to vector<8x32xf32>
    %149 = vector.extract_strided_slice %144 {offsets = [0, 96], sizes = [8, 32], strides = [1, 1]} : vector<8x128xf32> to vector<8x32xf32>
    %150 = arith.mulf %147, %103 : vector<8x32xf32>
    %151 = arith.mulf %146, %148 : vector<8x32xf32>
    %152 = arith.addf %150, %151 : vector<8x32xf32>
    %153 = math.tanh %152 : vector<8x32xf32>
    %154 = arith.mulf %149, %153 : vector<8x32xf32>
    %155 = arith.truncf %139 : vector<8x32xf32> to vector<8x32xbf16>
    %156 = arith.truncf %154 : vector<8x32xf32> to vector<8x32xbf16>
    %157 = arith.index_cast %113 : i32 to index
    %c0_44 = arith.constant 0 : index
    %158 = vector.load %arg14[%157, %c0_44] : memref<64x32xbf16, #tpu.memory_space<vmem>>, vector<8x32xbf16>
    tpu.vector_store %arg14[%157, %c0_44], %155 {strides = array<i32>} : memref<64x32xbf16, #tpu.memory_space<vmem>>, vector<8x32xbf16>,
    %159 = arith.index_cast %116 : i32 to index
    %c0_45 = arith.constant 0 : index
    %160 = vector.load %arg15[%159, %c0_45] : memref<64x32xbf16, #tpu.memory_space<vmem>>, vector<8x32xbf16>
    tpu.vector_store %arg15[%159, %c0_45], %156 {strides = array<i32>} : memref<64x32xbf16, #tpu.memory_space<vmem>>, vector<8x32xbf16>,
    %c3_i32 = arith.constant 3 : i32
    %c8_i32_46 = arith.constant 8 : i32
    %161 = arith.muli %c3_i32, %c8_i32_46 : i32
    %162 = tpu.assume_multiple %161, 8 : i32
    %c7_i32_47 = arith.constant 7 : i32
    %163 = arith.subi %c7_i32_47, %c3_i32 : i32
    %c8_i32_48 = arith.constant 8 : i32
    %164 = arith.muli %163, %c8_i32_48 : i32
    %165 = tpu.assume_multiple %164, 8 : i32
    %166 = arith.index_cast %162 : i32 to index
    %c0_49 = arith.constant 0 : index
    %167 = vector.load %arg13[%166, %c0_49] : memref<64x256xf32, #tpu.memory_space<vmem>>, vector<8x128xf32>
    %cst_50 = arith.constant dense<0.000000e+00> : vector<8x128xf32>
    %168 = tpu.matmul %155, %8, %cst_50 {dimension_numbers = #tpu.dot_dimension_numbers<[1], [0], [0], [1], [0, 0, 1, 1], [], []>} : vector<8x32xbf16>, vector<32x128xbf16>, vector<8x128xf32> -> vector<8x128xf32>
    %169 = arith.addf %167, %168 : vector<8x128xf32>
    %170 = arith.index_cast %165 : i32 to index
    %c128_51 = arith.constant 128 : index
    %171 = vector.load %arg13[%170, %c128_51] : memref<64x256xf32, #tpu.memory_space<vmem>>, vector<8x128xf32>
    %cst_52 = arith.constant dense<0.000000e+00> : vector<8x128xf32>
    %172 = tpu.matmul %156, %9, %cst_52 {dimension_numbers = #tpu.dot_dimension_numbers<[1], [0], [0], [1], [0, 0, 1, 1], [], []>} : vector<8x32xbf16>, vector<32x128xbf16>, vector<8x128xf32> -> vector<8x128xf32>
    %173 = arith.addf %171, %172 : vector<8x128xf32>
    %174 = arith.negf %169 : vector<8x128xf32>
    %175 = math.exp %174 : vector<8x128xf32>
    %cst_53 = arith.constant 1.000000e+00 : f32
    %176 = vector.broadcast %cst_53 : f32 to vector<8x128xf32>
    %177 = arith.addf %176, %175 : vector<8x128xf32>
    %178 = arith.divf %176, %177 : vector<8x128xf32>
    %179 = math.tanh %169 : vector<8x128xf32>
    %180 = vector.extract_strided_slice %178 {offsets = [0, 0], sizes = [8, 32], strides = [1, 1]} : vector<8x128xf32> to vector<8x32xf32>
    %181 = vector.extract_strided_slice %178 {offsets = [0, 32], sizes = [8, 32], strides = [1, 1]} : vector<8x128xf32> to vector<8x32xf32>
    %182 = vector.extract_strided_slice %179 {offsets = [0, 64], sizes = [8, 32], strides = [1, 1]} : vector<8x128xf32> to vector<8x32xf32>
    %183 = vector.extract_strided_slice %178 {offsets = [0, 96], sizes = [8, 32], strides = [1, 1]} : vector<8x128xf32> to vector<8x32xf32>
    %184 = arith.mulf %181, %137 : vector<8x32xf32>
    %185 = arith.mulf %180, %182 : vector<8x32xf32>
    %186 = arith.addf %184, %185 : vector<8x32xf32>
    %187 = math.tanh %186 : vector<8x32xf32>
    %188 = arith.mulf %183, %187 : vector<8x32xf32>
    %189 = arith.negf %173 : vector<8x128xf32>
    %190 = math.exp %189 : vector<8x128xf32>
    %cst_54 = arith.constant 1.000000e+00 : f32
    %191 = vector.broadcast %cst_54 : f32 to vector<8x128xf32>
    %192 = arith.addf %191, %190 : vector<8x128xf32>
    %193 = arith.divf %191, %192 : vector<8x128xf32>
    %194 = math.tanh %173 : vector<8x128xf32>
    %195 = vector.extract_strided_slice %193 {offsets = [0, 0], sizes = [8, 32], strides = [1, 1]} : vector<8x128xf32> to vector<8x32xf32>
    %196 = vector.extract_strided_slice %193 {offsets = [0, 32], sizes = [8, 32], strides = [1, 1]} : vector<8x128xf32> to vector<8x32xf32>
    %197 = vector.extract_strided_slice %194 {offsets = [0, 64], sizes = [8, 32], strides = [1, 1]} : vector<8x128xf32> to vector<8x32xf32>
    %198 = vector.extract_strided_slice %193 {offsets = [0, 96], sizes = [8, 32], strides = [1, 1]} : vector<8x128xf32> to vector<8x32xf32>
    %199 = arith.mulf %196, %152 : vector<8x32xf32>
    %200 = arith.mulf %195, %197 : vector<8x32xf32>
    %201 = arith.addf %199, %200 : vector<8x32xf32>
    %202 = math.tanh %201 : vector<8x32xf32>
    %203 = arith.mulf %198, %202 : vector<8x32xf32>
    %204 = arith.truncf %188 : vector<8x32xf32> to vector<8x32xbf16>
    %205 = arith.truncf %203 : vector<8x32xf32> to vector<8x32xbf16>
    %206 = arith.index_cast %162 : i32 to index
    %c0_55 = arith.constant 0 : index
    %207 = vector.load %arg14[%206, %c0_55] : memref<64x32xbf16, #tpu.memory_space<vmem>>, vector<8x32xbf16>
    tpu.vector_store %arg14[%206, %c0_55], %204 {strides = array<i32>} : memref<64x32xbf16, #tpu.memory_space<vmem>>, vector<8x32xbf16>,
    %208 = arith.index_cast %165 : i32 to index
    %c0_56 = arith.constant 0 : index
    %209 = vector.load %arg15[%208, %c0_56] : memref<64x32xbf16, #tpu.memory_space<vmem>>, vector<8x32xbf16>
    tpu.vector_store %arg15[%208, %c0_56], %205 {strides = array<i32>} : memref<64x32xbf16, #tpu.memory_space<vmem>>, vector<8x32xbf16>,
    %c4_i32 = arith.constant 4 : i32
    %c8_i32_57 = arith.constant 8 : i32
    %210 = arith.muli %c4_i32, %c8_i32_57 : i32
    %211 = tpu.assume_multiple %210, 8 : i32
    %c7_i32_58 = arith.constant 7 : i32
    %212 = arith.subi %c7_i32_58, %c4_i32 : i32
    %c8_i32_59 = arith.constant 8 : i32
    %213 = arith.muli %212, %c8_i32_59 : i32
    %214 = tpu.assume_multiple %213, 8 : i32
    %215 = arith.index_cast %211 : i32 to index
    %c0_60 = arith.constant 0 : index
    %216 = vector.load %arg13[%215, %c0_60] : memref<64x256xf32, #tpu.memory_space<vmem>>, vector<8x128xf32>
    %cst_61 = arith.constant dense<0.000000e+00> : vector<8x128xf32>
    %217 = tpu.matmul %204, %8, %cst_61 {dimension_numbers = #tpu.dot_dimension_numbers<[1], [0], [0], [1], [0, 0, 1, 1], [], []>} : vector<8x32xbf16>, vector<32x128xbf16>, vector<8x128xf32> -> vector<8x128xf32>
    %218 = arith.addf %216, %217 : vector<8x128xf32>
    %219 = arith.index_cast %214 : i32 to index
    %c128_62 = arith.constant 128 : index
    %220 = vector.load %arg13[%219, %c128_62] : memref<64x256xf32, #tpu.memory_space<vmem>>, vector<8x128xf32>
    %cst_63 = arith.constant dense<0.000000e+00> : vector<8x128xf32>
    %221 = tpu.matmul %205, %9, %cst_63 {dimension_numbers = #tpu.dot_dimension_numbers<[1], [0], [0], [1], [0, 0, 1, 1], [], []>} : vector<8x32xbf16>, vector<32x128xbf16>, vector<8x128xf32> -> vector<8x128xf32>
    %222 = arith.addf %220, %221 : vector<8x128xf32>
    %223 = arith.negf %218 : vector<8x128xf32>
    %224 = math.exp %223 : vector<8x128xf32>
    %cst_64 = arith.constant 1.000000e+00 : f32
    %225 = vector.broadcast %cst_64 : f32 to vector<8x128xf32>
    %226 = arith.addf %225, %224 : vector<8x128xf32>
    %227 = arith.divf %225, %226 : vector<8x128xf32>
    %228 = math.tanh %218 : vector<8x128xf32>
    %229 = vector.extract_strided_slice %227 {offsets = [0, 0], sizes = [8, 32], strides = [1, 1]} : vector<8x128xf32> to vector<8x32xf32>
    %230 = vector.extract_strided_slice %227 {offsets = [0, 32], sizes = [8, 32], strides = [1, 1]} : vector<8x128xf32> to vector<8x32xf32>
    %231 = vector.extract_strided_slice %228 {offsets = [0, 64], sizes = [8, 32], strides = [1, 1]} : vector<8x128xf32> to vector<8x32xf32>
    %232 = vector.extract_strided_slice %227 {offsets = [0, 96], sizes = [8, 32], strides = [1, 1]} : vector<8x128xf32> to vector<8x32xf32>
    %233 = arith.mulf %230, %186 : vector<8x32xf32>
    %234 = arith.mulf %229, %231 : vector<8x32xf32>
    %235 = arith.addf %233, %234 : vector<8x32xf32>
    %236 = math.tanh %235 : vector<8x32xf32>
    %237 = arith.mulf %232, %236 : vector<8x32xf32>
    %238 = arith.negf %222 : vector<8x128xf32>
    %239 = math.exp %238 : vector<8x128xf32>
    %cst_65 = arith.constant 1.000000e+00 : f32
    %240 = vector.broadcast %cst_65 : f32 to vector<8x128xf32>
    %241 = arith.addf %240, %239 : vector<8x128xf32>
    %242 = arith.divf %240, %241 : vector<8x128xf32>
    %243 = math.tanh %222 : vector<8x128xf32>
    %244 = vector.extract_strided_slice %242 {offsets = [0, 0], sizes = [8, 32], strides = [1, 1]} : vector<8x128xf32> to vector<8x32xf32>
    %245 = vector.extract_strided_slice %242 {offsets = [0, 32], sizes = [8, 32], strides = [1, 1]} : vector<8x128xf32> to vector<8x32xf32>
    %246 = vector.extract_strided_slice %243 {offsets = [0, 64], sizes = [8, 32], strides = [1, 1]} : vector<8x128xf32> to vector<8x32xf32>
    %247 = vector.extract_strided_slice %242 {offsets = [0, 96], sizes = [8, 32], strides = [1, 1]} : vector<8x128xf32> to vector<8x32xf32>
    %248 = arith.mulf %245, %201 : vector<8x32xf32>
    %249 = arith.mulf %244, %246 : vector<8x32xf32>
    %250 = arith.addf %248, %249 : vector<8x32xf32>
    %251 = math.tanh %250 : vector<8x32xf32>
    %252 = arith.mulf %247, %251 : vector<8x32xf32>
    %253 = arith.truncf %237 : vector<8x32xf32> to vector<8x32xbf16>
    %254 = arith.truncf %252 : vector<8x32xf32> to vector<8x32xbf16>
    %255 = arith.index_cast %211 : i32 to index
    %c0_66 = arith.constant 0 : index
    %256 = vector.load %arg14[%255, %c0_66] : memref<64x32xbf16, #tpu.memory_space<vmem>>, vector<8x32xbf16>
    tpu.vector_store %arg14[%255, %c0_66], %253 {strides = array<i32>} : memref<64x32xbf16, #tpu.memory_space<vmem>>, vector<8x32xbf16>,
    %257 = arith.index_cast %214 : i32 to index
    %c0_67 = arith.constant 0 : index
    %258 = vector.load %arg15[%257, %c0_67] : memref<64x32xbf16, #tpu.memory_space<vmem>>, vector<8x32xbf16>
    tpu.vector_store %arg15[%257, %c0_67], %254 {strides = array<i32>} : memref<64x32xbf16, #tpu.memory_space<vmem>>, vector<8x32xbf16>,
    %c5_i32 = arith.constant 5 : i32
    %c8_i32_68 = arith.constant 8 : i32
    %259 = arith.muli %c5_i32, %c8_i32_68 : i32
    %260 = tpu.assume_multiple %259, 8 : i32
    %c7_i32_69 = arith.constant 7 : i32
    %261 = arith.subi %c7_i32_69, %c5_i32 : i32
    %c8_i32_70 = arith.constant 8 : i32
    %262 = arith.muli %261, %c8_i32_70 : i32
    %263 = tpu.assume_multiple %262, 8 : i32
    %264 = arith.index_cast %260 : i32 to index
    %c0_71 = arith.constant 0 : index
    %265 = vector.load %arg13[%264, %c0_71] : memref<64x256xf32, #tpu.memory_space<vmem>>, vector<8x128xf32>
    %cst_72 = arith.constant dense<0.000000e+00> : vector<8x128xf32>
    %266 = tpu.matmul %253, %8, %cst_72 {dimension_numbers = #tpu.dot_dimension_numbers<[1], [0], [0], [1], [0, 0, 1, 1], [], []>} : vector<8x32xbf16>, vector<32x128xbf16>, vector<8x128xf32> -> vector<8x128xf32>
    %267 = arith.addf %265, %266 : vector<8x128xf32>
    %268 = arith.index_cast %263 : i32 to index
    %c128_73 = arith.constant 128 : index
    %269 = vector.load %arg13[%268, %c128_73] : memref<64x256xf32, #tpu.memory_space<vmem>>, vector<8x128xf32>
    %cst_74 = arith.constant dense<0.000000e+00> : vector<8x128xf32>
    %270 = tpu.matmul %254, %9, %cst_74 {dimension_numbers = #tpu.dot_dimension_numbers<[1], [0], [0], [1], [0, 0, 1, 1], [], []>} : vector<8x32xbf16>, vector<32x128xbf16>, vector<8x128xf32> -> vector<8x128xf32>
    %271 = arith.addf %269, %270 : vector<8x128xf32>
    %272 = arith.negf %267 : vector<8x128xf32>
    %273 = math.exp %272 : vector<8x128xf32>
    %cst_75 = arith.constant 1.000000e+00 : f32
    %274 = vector.broadcast %cst_75 : f32 to vector<8x128xf32>
    %275 = arith.addf %274, %273 : vector<8x128xf32>
    %276 = arith.divf %274, %275 : vector<8x128xf32>
    %277 = math.tanh %267 : vector<8x128xf32>
    %278 = vector.extract_strided_slice %276 {offsets = [0, 0], sizes = [8, 32], strides = [1, 1]} : vector<8x128xf32> to vector<8x32xf32>
    %279 = vector.extract_strided_slice %276 {offsets = [0, 32], sizes = [8, 32], strides = [1, 1]} : vector<8x128xf32> to vector<8x32xf32>
    %280 = vector.extract_strided_slice %277 {offsets = [0, 64], sizes = [8, 32], strides = [1, 1]} : vector<8x128xf32> to vector<8x32xf32>
    %281 = vector.extract_strided_slice %276 {offsets = [0, 96], sizes = [8, 32], strides = [1, 1]} : vector<8x128xf32> to vector<8x32xf32>
    %282 = arith.mulf %279, %235 : vector<8x32xf32>
    %283 = arith.mulf %278, %280 : vector<8x32xf32>
    %284 = arith.addf %282, %283 : vector<8x32xf32>
    %285 = math.tanh %284 : vector<8x32xf32>
    %286 = arith.mulf %281, %285 : vector<8x32xf32>
    %287 = arith.negf %271 : vector<8x128xf32>
    %288 = math.exp %287 : vector<8x128xf32>
    %cst_76 = arith.constant 1.000000e+00 : f32
    %289 = vector.broadcast %cst_76 : f32 to vector<8x128xf32>
    %290 = arith.addf %289, %288 : vector<8x128xf32>
    %291 = arith.divf %289, %290 : vector<8x128xf32>
    %292 = math.tanh %271 : vector<8x128xf32>
    %293 = vector.extract_strided_slice %291 {offsets = [0, 0], sizes = [8, 32], strides = [1, 1]} : vector<8x128xf32> to vector<8x32xf32>
    %294 = vector.extract_strided_slice %291 {offsets = [0, 32], sizes = [8, 32], strides = [1, 1]} : vector<8x128xf32> to vector<8x32xf32>
    %295 = vector.extract_strided_slice %292 {offsets = [0, 64], sizes = [8, 32], strides = [1, 1]} : vector<8x128xf32> to vector<8x32xf32>
    %296 = vector.extract_strided_slice %291 {offsets = [0, 96], sizes = [8, 32], strides = [1, 1]} : vector<8x128xf32> to vector<8x32xf32>
    %297 = arith.mulf %294, %250 : vector<8x32xf32>
    %298 = arith.mulf %293, %295 : vector<8x32xf32>
    %299 = arith.addf %297, %298 : vector<8x32xf32>
    %300 = math.tanh %299 : vector<8x32xf32>
    %301 = arith.mulf %296, %300 : vector<8x32xf32>
    %302 = arith.truncf %286 : vector<8x32xf32> to vector<8x32xbf16>
    %303 = arith.truncf %301 : vector<8x32xf32> to vector<8x32xbf16>
    %304 = arith.index_cast %260 : i32 to index
    %c0_77 = arith.constant 0 : index
    %305 = vector.load %arg14[%304, %c0_77] : memref<64x32xbf16, #tpu.memory_space<vmem>>, vector<8x32xbf16>
    tpu.vector_store %arg14[%304, %c0_77], %302 {strides = array<i32>} : memref<64x32xbf16, #tpu.memory_space<vmem>>, vector<8x32xbf16>,
    %306 = arith.index_cast %263 : i32 to index
    %c0_78 = arith.constant 0 : index
    %307 = vector.load %arg15[%306, %c0_78] : memref<64x32xbf16, #tpu.memory_space<vmem>>, vector<8x32xbf16>
    tpu.vector_store %arg15[%306, %c0_78], %303 {strides = array<i32>} : memref<64x32xbf16, #tpu.memory_space<vmem>>, vector<8x32xbf16>,
    %c6_i32 = arith.constant 6 : i32
    %c8_i32_79 = arith.constant 8 : i32
    %308 = arith.muli %c6_i32, %c8_i32_79 : i32
    %309 = tpu.assume_multiple %308, 8 : i32
    %c7_i32_80 = arith.constant 7 : i32
    %310 = arith.subi %c7_i32_80, %c6_i32 : i32
    %c8_i32_81 = arith.constant 8 : i32
    %311 = arith.muli %310, %c8_i32_81 : i32
    %312 = tpu.assume_multiple %311, 8 : i32
    %313 = arith.index_cast %309 : i32 to index
    %c0_82 = arith.constant 0 : index
    %314 = vector.load %arg13[%313, %c0_82] : memref<64x256xf32, #tpu.memory_space<vmem>>, vector<8x128xf32>
    %cst_83 = arith.constant dense<0.000000e+00> : vector<8x128xf32>
    %315 = tpu.matmul %302, %8, %cst_83 {dimension_numbers = #tpu.dot_dimension_numbers<[1], [0], [0], [1], [0, 0, 1, 1], [], []>} : vector<8x32xbf16>, vector<32x128xbf16>, vector<8x128xf32> -> vector<8x128xf32>
    %316 = arith.addf %314, %315 : vector<8x128xf32>
    %317 = arith.index_cast %312 : i32 to index
    %c128_84 = arith.constant 128 : index
    %318 = vector.load %arg13[%317, %c128_84] : memref<64x256xf32, #tpu.memory_space<vmem>>, vector<8x128xf32>
    %cst_85 = arith.constant dense<0.000000e+00> : vector<8x128xf32>
    %319 = tpu.matmul %303, %9, %cst_85 {dimension_numbers = #tpu.dot_dimension_numbers<[1], [0], [0], [1], [0, 0, 1, 1], [], []>} : vector<8x32xbf16>, vector<32x128xbf16>, vector<8x128xf32> -> vector<8x128xf32>
    %320 = arith.addf %318, %319 : vector<8x128xf32>
    %321 = arith.negf %316 : vector<8x128xf32>
    %322 = math.exp %321 : vector<8x128xf32>
    %cst_86 = arith.constant 1.000000e+00 : f32
    %323 = vector.broadcast %cst_86 : f32 to vector<8x128xf32>
    %324 = arith.addf %323, %322 : vector<8x128xf32>
    %325 = arith.divf %323, %324 : vector<8x128xf32>
    %326 = math.tanh %316 : vector<8x128xf32>
    %327 = vector.extract_strided_slice %325 {offsets = [0, 0], sizes = [8, 32], strides = [1, 1]} : vector<8x128xf32> to vector<8x32xf32>
    %328 = vector.extract_strided_slice %325 {offsets = [0, 32], sizes = [8, 32], strides = [1, 1]} : vector<8x128xf32> to vector<8x32xf32>
    %329 = vector.extract_strided_slice %326 {offsets = [0, 64], sizes = [8, 32], strides = [1, 1]} : vector<8x128xf32> to vector<8x32xf32>
    %330 = vector.extract_strided_slice %325 {offsets = [0, 96], sizes = [8, 32], strides = [1, 1]} : vector<8x128xf32> to vector<8x32xf32>
    %331 = arith.mulf %328, %284 : vector<8x32xf32>
    %332 = arith.mulf %327, %329 : vector<8x32xf32>
    %333 = arith.addf %331, %332 : vector<8x32xf32>
    %334 = math.tanh %333 : vector<8x32xf32>
    %335 = arith.mulf %330, %334 : vector<8x32xf32>
    %336 = arith.negf %320 : vector<8x128xf32>
    %337 = math.exp %336 : vector<8x128xf32>
    %cst_87 = arith.constant 1.000000e+00 : f32
    %338 = vector.broadcast %cst_87 : f32 to vector<8x128xf32>
    %339 = arith.addf %338, %337 : vector<8x128xf32>
    %340 = arith.divf %338, %339 : vector<8x128xf32>
    %341 = math.tanh %320 : vector<8x128xf32>
    %342 = vector.extract_strided_slice %340 {offsets = [0, 0], sizes = [8, 32], strides = [1, 1]} : vector<8x128xf32> to vector<8x32xf32>
    %343 = vector.extract_strided_slice %340 {offsets = [0, 32], sizes = [8, 32], strides = [1, 1]} : vector<8x128xf32> to vector<8x32xf32>
    %344 = vector.extract_strided_slice %341 {offsets = [0, 64], sizes = [8, 32], strides = [1, 1]} : vector<8x128xf32> to vector<8x32xf32>
    %345 = vector.extract_strided_slice %340 {offsets = [0, 96], sizes = [8, 32], strides = [1, 1]} : vector<8x128xf32> to vector<8x32xf32>
    %346 = arith.mulf %343, %299 : vector<8x32xf32>
    %347 = arith.mulf %342, %344 : vector<8x32xf32>
    %348 = arith.addf %346, %347 : vector<8x32xf32>
    %349 = math.tanh %348 : vector<8x32xf32>
    %350 = arith.mulf %345, %349 : vector<8x32xf32>
    %351 = arith.truncf %335 : vector<8x32xf32> to vector<8x32xbf16>
    %352 = arith.truncf %350 : vector<8x32xf32> to vector<8x32xbf16>
    %353 = arith.index_cast %309 : i32 to index
    %c0_88 = arith.constant 0 : index
    %354 = vector.load %arg14[%353, %c0_88] : memref<64x32xbf16, #tpu.memory_space<vmem>>, vector<8x32xbf16>
    tpu.vector_store %arg14[%353, %c0_88], %351 {strides = array<i32>} : memref<64x32xbf16, #tpu.memory_space<vmem>>, vector<8x32xbf16>,
    %355 = arith.index_cast %312 : i32 to index
    %c0_89 = arith.constant 0 : index
    %356 = vector.load %arg15[%355, %c0_89] : memref<64x32xbf16, #tpu.memory_space<vmem>>, vector<8x32xbf16>
    tpu.vector_store %arg15[%355, %c0_89], %352 {strides = array<i32>} : memref<64x32xbf16, #tpu.memory_space<vmem>>, vector<8x32xbf16>,
    %c7_i32_90 = arith.constant 7 : i32
    %c8_i32_91 = arith.constant 8 : i32
    %357 = arith.muli %c7_i32_90, %c8_i32_91 : i32
    %358 = tpu.assume_multiple %357, 8 : i32
    %c7_i32_92 = arith.constant 7 : i32
    %359 = arith.subi %c7_i32_92, %c7_i32_90 : i32
    %c8_i32_93 = arith.constant 8 : i32
    %360 = arith.muli %359, %c8_i32_93 : i32
    %361 = tpu.assume_multiple %360, 8 : i32
    %362 = arith.index_cast %358 : i32 to index
    %c0_94 = arith.constant 0 : index
    %363 = vector.load %arg13[%362, %c0_94] : memref<64x256xf32, #tpu.memory_space<vmem>>, vector<8x128xf32>
    %cst_95 = arith.constant dense<0.000000e+00> : vector<8x128xf32>
    %364 = tpu.matmul %351, %8, %cst_95 {dimension_numbers = #tpu.dot_dimension_numbers<[1], [0], [0], [1], [0, 0, 1, 1], [], []>} : vector<8x32xbf16>, vector<32x128xbf16>, vector<8x128xf32> -> vector<8x128xf32>
    %365 = arith.addf %363, %364 : vector<8x128xf32>
    %366 = arith.index_cast %361 : i32 to index
    %c128_96 = arith.constant 128 : index
    %367 = vector.load %arg13[%366, %c128_96] : memref<64x256xf32, #tpu.memory_space<vmem>>, vector<8x128xf32>
    %cst_97 = arith.constant dense<0.000000e+00> : vector<8x128xf32>
    %368 = tpu.matmul %352, %9, %cst_97 {dimension_numbers = #tpu.dot_dimension_numbers<[1], [0], [0], [1], [0, 0, 1, 1], [], []>} : vector<8x32xbf16>, vector<32x128xbf16>, vector<8x128xf32> -> vector<8x128xf32>
    %369 = arith.addf %367, %368 : vector<8x128xf32>
    %370 = arith.negf %365 : vector<8x128xf32>
    %371 = math.exp %370 : vector<8x128xf32>
    %cst_98 = arith.constant 1.000000e+00 : f32
    %372 = vector.broadcast %cst_98 : f32 to vector<8x128xf32>
    %373 = arith.addf %372, %371 : vector<8x128xf32>
    %374 = arith.divf %372, %373 : vector<8x128xf32>
    %375 = math.tanh %365 : vector<8x128xf32>
    %376 = vector.extract_strided_slice %374 {offsets = [0, 0], sizes = [8, 32], strides = [1, 1]} : vector<8x128xf32> to vector<8x32xf32>
    %377 = vector.extract_strided_slice %374 {offsets = [0, 32], sizes = [8, 32], strides = [1, 1]} : vector<8x128xf32> to vector<8x32xf32>
    %378 = vector.extract_strided_slice %375 {offsets = [0, 64], sizes = [8, 32], strides = [1, 1]} : vector<8x128xf32> to vector<8x32xf32>
    %379 = vector.extract_strided_slice %374 {offsets = [0, 96], sizes = [8, 32], strides = [1, 1]} : vector<8x128xf32> to vector<8x32xf32>
    %380 = arith.mulf %377, %333 : vector<8x32xf32>
    %381 = arith.mulf %376, %378 : vector<8x32xf32>
    %382 = arith.addf %380, %381 : vector<8x32xf32>
    %383 = math.tanh %382 : vector<8x32xf32>
    %384 = arith.mulf %379, %383 : vector<8x32xf32>
    %385 = arith.negf %369 : vector<8x128xf32>
    %386 = math.exp %385 : vector<8x128xf32>
    %cst_99 = arith.constant 1.000000e+00 : f32
    %387 = vector.broadcast %cst_99 : f32 to vector<8x128xf32>
    %388 = arith.addf %387, %386 : vector<8x128xf32>
    %389 = arith.divf %387, %388 : vector<8x128xf32>
    %390 = math.tanh %369 : vector<8x128xf32>
    %391 = vector.extract_strided_slice %389 {offsets = [0, 0], sizes = [8, 32], strides = [1, 1]} : vector<8x128xf32> to vector<8x32xf32>
    %392 = vector.extract_strided_slice %389 {offsets = [0, 32], sizes = [8, 32], strides = [1, 1]} : vector<8x128xf32> to vector<8x32xf32>
    %393 = vector.extract_strided_slice %390 {offsets = [0, 64], sizes = [8, 32], strides = [1, 1]} : vector<8x128xf32> to vector<8x32xf32>
    %394 = vector.extract_strided_slice %389 {offsets = [0, 96], sizes = [8, 32], strides = [1, 1]} : vector<8x128xf32> to vector<8x32xf32>
    %395 = arith.mulf %392, %348 : vector<8x32xf32>
    %396 = arith.mulf %391, %393 : vector<8x32xf32>
    %397 = arith.addf %395, %396 : vector<8x32xf32>
    %398 = math.tanh %397 : vector<8x32xf32>
    %399 = arith.mulf %394, %398 : vector<8x32xf32>
    %400 = arith.truncf %384 : vector<8x32xf32> to vector<8x32xbf16>
    %401 = arith.truncf %399 : vector<8x32xf32> to vector<8x32xbf16>
    %402 = arith.index_cast %358 : i32 to index
    %c0_100 = arith.constant 0 : index
    %403 = vector.load %arg14[%402, %c0_100] : memref<64x32xbf16, #tpu.memory_space<vmem>>, vector<8x32xbf16>
    tpu.vector_store %arg14[%402, %c0_100], %400 {strides = array<i32>} : memref<64x32xbf16, #tpu.memory_space<vmem>>, vector<8x32xbf16>,
    %404 = arith.index_cast %361 : i32 to index
    %c0_101 = arith.constant 0 : index
    %405 = vector.load %arg15[%404, %c0_101] : memref<64x32xbf16, #tpu.memory_space<vmem>>, vector<8x32xbf16>
    tpu.vector_store %arg15[%404, %c0_101], %401 {strides = array<i32>} : memref<64x32xbf16, #tpu.memory_space<vmem>>, vector<8x32xbf16>,
    %c8_i32_102 = arith.constant 8 : i32
    %c0_103 = arith.constant 0 : index
    %c0_104 = arith.constant 0 : index
    %406 = vector.load %arg14[%c0_103, %c0_104] : memref<64x32xbf16, #tpu.memory_space<vmem>>, vector<64x32xbf16>
    %c0_105 = arith.constant 0 : index
    %c0_106 = arith.constant 0 : index
    %407 = vector.load %arg6[%c0_105, %c0_106] : memref<64x256xbf16, #tpu.memory_space<vmem>>, vector<32x256xbf16>
    %cst_107 = arith.constant dense<0.000000e+00> : vector<64x256xf32>
    %408 = tpu.matmul %406, %407, %cst_107 {dimension_numbers = #tpu.dot_dimension_numbers<[1], [0], [0], [1], [0, 0, 1, 1], [], []>} : vector<64x32xbf16>, vector<32x256xbf16>, vector<64x256xf32> -> vector<64x256xf32>
    %c0_108 = arith.constant 0 : index
    %c0_109 = arith.constant 0 : index
    %409 = vector.load %arg15[%c0_108, %c0_109] : memref<64x32xbf16, #tpu.memory_space<vmem>>, vector<64x32xbf16>
    %c32 = arith.constant 32 : index
    %c0_110 = arith.constant 0 : index
    %410 = vector.load %arg6[%c32, %c0_110] : memref<64x256xbf16, #tpu.memory_space<vmem>>, vector<32x256xbf16>
    %cst_111 = arith.constant dense<0.000000e+00> : vector<64x256xf32>
    %411 = tpu.matmul %409, %410, %cst_111 {dimension_numbers = #tpu.dot_dimension_numbers<[1], [0], [0], [1], [0, 0, 1, 1], [], []>} : vector<64x32xbf16>, vector<32x256xbf16>, vector<64x256xf32> -> vector<64x256xf32>
    %412 = arith.addf %408, %411 : vector<64x256xf32>
    %c0_112 = arith.constant 0 : index
    %c0_113 = arith.constant 0 : index
    %413 = vector.load %arg9[%c0_112, %c0_113] : memref<1x256xf32, #tpu.memory_space<vmem>>, vector<1x256xf32>
    %414 = vector.broadcast %413 : vector<1x256xf32> to vector<64x256xf32>
    %415 = arith.addf %412, %414 : vector<64x256xf32>
    %c0_114 = arith.constant 0 : index
    %c0_115 = arith.constant 0 : index
    %416 = vector.load %arg13[%c0_114, %c0_115] : memref<64x256xf32, #tpu.memory_space<vmem>>, vector<64x256xf32>
    tpu.vector_store %arg13[%c0_114, %c0_115], %415 {strides = array<i32>} : memref<64x256xf32, #tpu.memory_space<vmem>>, vector<64x256xf32>,
    %c0_116 = arith.constant 0 : index
    %c0_117 = arith.constant 0 : index
    %417 = vector.load %arg7[%c0_116, %c0_117] : memref<32x128xbf16, #tpu.memory_space<vmem>>, vector<32x128xbf16>
    %c0_118 = arith.constant 0 : index
    %c0_119 = arith.constant 0 : index
    %418 = vector.load %arg8[%c0_118, %c0_119] : memref<32x128xbf16, #tpu.memory_space<vmem>>, vector<32x128xbf16>
    %cst_120 = arith.constant 0.000000e+00 : bf16
    %419 = vector.broadcast %cst_120 : bf16 to vector<8x32xbf16>
    %cst_121 = arith.constant 0.000000e+00 : f32
    %420 = vector.broadcast %cst_121 : f32 to vector<8x32xf32>
    %cst_122 = arith.constant 0.000000e+00 : bf16
    %421 = vector.broadcast %cst_122 : bf16 to vector<8x32xbf16>
    %cst_123 = arith.constant 0.000000e+00 : f32
    %422 = vector.broadcast %cst_123 : f32 to vector<8x32xf32>
    %c0_i32_124 = arith.constant 0 : i32
    %c8_i32_125 = arith.constant 8 : i32
    %423 = arith.muli %c0_i32_124, %c8_i32_125 : i32
    %424 = tpu.assume_multiple %423, 8 : i32
    %c7_i32_126 = arith.constant 7 : i32
    %425 = arith.subi %c7_i32_126, %c0_i32_124 : i32
    %c8_i32_127 = arith.constant 8 : i32
    %426 = arith.muli %425, %c8_i32_127 : i32
    %427 = tpu.assume_multiple %426, 8 : i32
    %428 = arith.index_cast %424 : i32 to index
    %c0_128 = arith.constant 0 : index
    %429 = vector.load %arg13[%428, %c0_128] : memref<64x256xf32, #tpu.memory_space<vmem>>, vector<8x128xf32>
    %cst_129 = arith.constant dense<0.000000e+00> : vector<8x128xf32>
    %430 = tpu.matmul %419, %417, %cst_129 {dimension_numbers = #tpu.dot_dimension_numbers<[1], [0], [0], [1], [0, 0, 1, 1], [], []>} : vector<8x32xbf16>, vector<32x128xbf16>, vector<8x128xf32> -> vector<8x128xf32>
    %431 = arith.addf %429, %430 : vector<8x128xf32>
    %432 = arith.index_cast %427 : i32 to index
    %c128_130 = arith.constant 128 : index
    %433 = vector.load %arg13[%432, %c128_130] : memref<64x256xf32, #tpu.memory_space<vmem>>, vector<8x128xf32>
    %cst_131 = arith.constant dense<0.000000e+00> : vector<8x128xf32>
    %434 = tpu.matmul %421, %418, %cst_131 {dimension_numbers = #tpu.dot_dimension_numbers<[1], [0], [0], [1], [0, 0, 1, 1], [], []>} : vector<8x32xbf16>, vector<32x128xbf16>, vector<8x128xf32> -> vector<8x128xf32>
    %435 = arith.addf %433, %434 : vector<8x128xf32>
    %436 = arith.negf %431 : vector<8x128xf32>
    %437 = math.exp %436 : vector<8x128xf32>
    %cst_132 = arith.constant 1.000000e+00 : f32
    %438 = vector.broadcast %cst_132 : f32 to vector<8x128xf32>
    %439 = arith.addf %438, %437 : vector<8x128xf32>
    %440 = arith.divf %438, %439 : vector<8x128xf32>
    %441 = math.tanh %431 : vector<8x128xf32>
    %442 = vector.extract_strided_slice %440 {offsets = [0, 0], sizes = [8, 32], strides = [1, 1]} : vector<8x128xf32> to vector<8x32xf32>
    %443 = vector.extract_strided_slice %440 {offsets = [0, 32], sizes = [8, 32], strides = [1, 1]} : vector<8x128xf32> to vector<8x32xf32>
    %444 = vector.extract_strided_slice %441 {offsets = [0, 64], sizes = [8, 32], strides = [1, 1]} : vector<8x128xf32> to vector<8x32xf32>
    %445 = vector.extract_strided_slice %440 {offsets = [0, 96], sizes = [8, 32], strides = [1, 1]} : vector<8x128xf32> to vector<8x32xf32>
    %446 = arith.mulf %443, %420 : vector<8x32xf32>
    %447 = arith.mulf %442, %444 : vector<8x32xf32>
    %448 = arith.addf %446, %447 : vector<8x32xf32>
    %449 = math.tanh %448 : vector<8x32xf32>
    %450 = arith.mulf %445, %449 : vector<8x32xf32>
    %451 = arith.negf %435 : vector<8x128xf32>
    %452 = math.exp %451 : vector<8x128xf32>
    %cst_133 = arith.constant 1.000000e+00 : f32
    %453 = vector.broadcast %cst_133 : f32 to vector<8x128xf32>
    %454 = arith.addf %453, %452 : vector<8x128xf32>
    %455 = arith.divf %453, %454 : vector<8x128xf32>
    %456 = math.tanh %435 : vector<8x128xf32>
    %457 = vector.extract_strided_slice %455 {offsets = [0, 0], sizes = [8, 32], strides = [1, 1]} : vector<8x128xf32> to vector<8x32xf32>
    %458 = vector.extract_strided_slice %455 {offsets = [0, 32], sizes = [8, 32], strides = [1, 1]} : vector<8x128xf32> to vector<8x32xf32>
    %459 = vector.extract_strided_slice %456 {offsets = [0, 64], sizes = [8, 32], strides = [1, 1]} : vector<8x128xf32> to vector<8x32xf32>
    %460 = vector.extract_strided_slice %455 {offsets = [0, 96], sizes = [8, 32], strides = [1, 1]} : vector<8x128xf32> to vector<8x32xf32>
    %461 = arith.mulf %458, %422 : vector<8x32xf32>
    %462 = arith.mulf %457, %459 : vector<8x32xf32>
    %463 = arith.addf %461, %462 : vector<8x32xf32>
    %464 = math.tanh %463 : vector<8x32xf32>
    %465 = arith.mulf %460, %464 : vector<8x32xf32>
    %466 = arith.truncf %450 : vector<8x32xf32> to vector<8x32xbf16>
    %467 = arith.truncf %465 : vector<8x32xf32> to vector<8x32xbf16>
    %468 = arith.index_cast %424 : i32 to index
    %c0_134 = arith.constant 0 : index
    %469 = vector.load %arg14[%468, %c0_134] : memref<64x32xbf16, #tpu.memory_space<vmem>>, vector<8x32xbf16>
    tpu.vector_store %arg14[%468, %c0_134], %466 {strides = array<i32>} : memref<64x32xbf16, #tpu.memory_space<vmem>>, vector<8x32xbf16>,
    %470 = arith.index_cast %427 : i32 to index
    %c0_135 = arith.constant 0 : index
    %471 = vector.load %arg15[%470, %c0_135] : memref<64x32xbf16, #tpu.memory_space<vmem>>, vector<8x32xbf16>
    tpu.vector_store %arg15[%470, %c0_135], %467 {strides = array<i32>} : memref<64x32xbf16, #tpu.memory_space<vmem>>, vector<8x32xbf16>,
    %c1_i32_136 = arith.constant 1 : i32
    %c8_i32_137 = arith.constant 8 : i32
    %472 = arith.muli %c1_i32_136, %c8_i32_137 : i32
    %473 = tpu.assume_multiple %472, 8 : i32
    %c7_i32_138 = arith.constant 7 : i32
    %474 = arith.subi %c7_i32_138, %c1_i32_136 : i32
    %c8_i32_139 = arith.constant 8 : i32
    %475 = arith.muli %474, %c8_i32_139 : i32
    %476 = tpu.assume_multiple %475, 8 : i32
    %477 = arith.index_cast %473 : i32 to index
    %c0_140 = arith.constant 0 : index
    %478 = vector.load %arg13[%477, %c0_140] : memref<64x256xf32, #tpu.memory_space<vmem>>, vector<8x128xf32>
    %cst_141 = arith.constant dense<0.000000e+00> : vector<8x128xf32>
    %479 = tpu.matmul %466, %417, %cst_141 {dimension_numbers = #tpu.dot_dimension_numbers<[1], [0], [0], [1], [0, 0, 1, 1], [], []>} : vector<8x32xbf16>, vector<32x128xbf16>, vector<8x128xf32> -> vector<8x128xf32>
    %480 = arith.addf %478, %479 : vector<8x128xf32>
    %481 = arith.index_cast %476 : i32 to index
    %c128_142 = arith.constant 128 : index
    %482 = vector.load %arg13[%481, %c128_142] : memref<64x256xf32, #tpu.memory_space<vmem>>, vector<8x128xf32>
    %cst_143 = arith.constant dense<0.000000e+00> : vector<8x128xf32>
    %483 = tpu.matmul %467, %418, %cst_143 {dimension_numbers = #tpu.dot_dimension_numbers<[1], [0], [0], [1], [0, 0, 1, 1], [], []>} : vector<8x32xbf16>, vector<32x128xbf16>, vector<8x128xf32> -> vector<8x128xf32>
    %484 = arith.addf %482, %483 : vector<8x128xf32>
    %485 = arith.negf %480 : vector<8x128xf32>
    %486 = math.exp %485 : vector<8x128xf32>
    %cst_144 = arith.constant 1.000000e+00 : f32
    %487 = vector.broadcast %cst_144 : f32 to vector<8x128xf32>
    %488 = arith.addf %487, %486 : vector<8x128xf32>
    %489 = arith.divf %487, %488 : vector<8x128xf32>
    %490 = math.tanh %480 : vector<8x128xf32>
    %491 = vector.extract_strided_slice %489 {offsets = [0, 0], sizes = [8, 32], strides = [1, 1]} : vector<8x128xf32> to vector<8x32xf32>
    %492 = vector.extract_strided_slice %489 {offsets = [0, 32], sizes = [8, 32], strides = [1, 1]} : vector<8x128xf32> to vector<8x32xf32>
    %493 = vector.extract_strided_slice %490 {offsets = [0, 64], sizes = [8, 32], strides = [1, 1]} : vector<8x128xf32> to vector<8x32xf32>
    %494 = vector.extract_strided_slice %489 {offsets = [0, 96], sizes = [8, 32], strides = [1, 1]} : vector<8x128xf32> to vector<8x32xf32>
    %495 = arith.mulf %492, %448 : vector<8x32xf32>
    %496 = arith.mulf %491, %493 : vector<8x32xf32>
    %497 = arith.addf %495, %496 : vector<8x32xf32>
    %498 = math.tanh %497 : vector<8x32xf32>
    %499 = arith.mulf %494, %498 : vector<8x32xf32>
    %500 = arith.negf %484 : vector<8x128xf32>
    %501 = math.exp %500 : vector<8x128xf32>
    %cst_145 = arith.constant 1.000000e+00 : f32
    %502 = vector.broadcast %cst_145 : f32 to vector<8x128xf32>
    %503 = arith.addf %502, %501 : vector<8x128xf32>
    %504 = arith.divf %502, %503 : vector<8x128xf32>
    %505 = math.tanh %484 : vector<8x128xf32>
    %506 = vector.extract_strided_slice %504 {offsets = [0, 0], sizes = [8, 32], strides = [1, 1]} : vector<8x128xf32> to vector<8x32xf32>
    %507 = vector.extract_strided_slice %504 {offsets = [0, 32], sizes = [8, 32], strides = [1, 1]} : vector<8x128xf32> to vector<8x32xf32>
    %508 = vector.extract_strided_slice %505 {offsets = [0, 64], sizes = [8, 32], strides = [1, 1]} : vector<8x128xf32> to vector<8x32xf32>
    %509 = vector.extract_strided_slice %504 {offsets = [0, 96], sizes = [8, 32], strides = [1, 1]} : vector<8x128xf32> to vector<8x32xf32>
    %510 = arith.mulf %507, %463 : vector<8x32xf32>
    %511 = arith.mulf %506, %508 : vector<8x32xf32>
    %512 = arith.addf %510, %511 : vector<8x32xf32>
    %513 = math.tanh %512 : vector<8x32xf32>
    %514 = arith.mulf %509, %513 : vector<8x32xf32>
    %515 = arith.truncf %499 : vector<8x32xf32> to vector<8x32xbf16>
    %516 = arith.truncf %514 : vector<8x32xf32> to vector<8x32xbf16>
    %517 = arith.index_cast %473 : i32 to index
    %c0_146 = arith.constant 0 : index
    %518 = vector.load %arg14[%517, %c0_146] : memref<64x32xbf16, #tpu.memory_space<vmem>>, vector<8x32xbf16>
    tpu.vector_store %arg14[%517, %c0_146], %515 {strides = array<i32>} : memref<64x32xbf16, #tpu.memory_space<vmem>>, vector<8x32xbf16>,
    %519 = arith.index_cast %476 : i32 to index
    %c0_147 = arith.constant 0 : index
    %520 = vector.load %arg15[%519, %c0_147] : memref<64x32xbf16, #tpu.memory_space<vmem>>, vector<8x32xbf16>
    tpu.vector_store %arg15[%519, %c0_147], %516 {strides = array<i32>} : memref<64x32xbf16, #tpu.memory_space<vmem>>, vector<8x32xbf16>,
    %c2_i32_148 = arith.constant 2 : i32
    %c8_i32_149 = arith.constant 8 : i32
    %521 = arith.muli %c2_i32_148, %c8_i32_149 : i32
    %522 = tpu.assume_multiple %521, 8 : i32
    %c7_i32_150 = arith.constant 7 : i32
    %523 = arith.subi %c7_i32_150, %c2_i32_148 : i32
    %c8_i32_151 = arith.constant 8 : i32
    %524 = arith.muli %523, %c8_i32_151 : i32
    %525 = tpu.assume_multiple %524, 8 : i32
    %526 = arith.index_cast %522 : i32 to index
    %c0_152 = arith.constant 0 : index
    %527 = vector.load %arg13[%526, %c0_152] : memref<64x256xf32, #tpu.memory_space<vmem>>, vector<8x128xf32>
    %cst_153 = arith.constant dense<0.000000e+00> : vector<8x128xf32>
    %528 = tpu.matmul %515, %417, %cst_153 {dimension_numbers = #tpu.dot_dimension_numbers<[1], [0], [0], [1], [0, 0, 1, 1], [], []>} : vector<8x32xbf16>, vector<32x128xbf16>, vector<8x128xf32> -> vector<8x128xf32>
    %529 = arith.addf %527, %528 : vector<8x128xf32>
    %530 = arith.index_cast %525 : i32 to index
    %c128_154 = arith.constant 128 : index
    %531 = vector.load %arg13[%530, %c128_154] : memref<64x256xf32, #tpu.memory_space<vmem>>, vector<8x128xf32>
    %cst_155 = arith.constant dense<0.000000e+00> : vector<8x128xf32>
    %532 = tpu.matmul %516, %418, %cst_155 {dimension_numbers = #tpu.dot_dimension_numbers<[1], [0], [0], [1], [0, 0, 1, 1], [], []>} : vector<8x32xbf16>, vector<32x128xbf16>, vector<8x128xf32> -> vector<8x128xf32>
    %533 = arith.addf %531, %532 : vector<8x128xf32>
    %534 = arith.negf %529 : vector<8x128xf32>
    %535 = math.exp %534 : vector<8x128xf32>
    %cst_156 = arith.constant 1.000000e+00 : f32
    %536 = vector.broadcast %cst_156 : f32 to vector<8x128xf32>
    %537 = arith.addf %536, %535 : vector<8x128xf32>
    %538 = arith.divf %536, %537 : vector<8x128xf32>
    %539 = math.tanh %529 : vector<8x128xf32>
    %540 = vector.extract_strided_slice %538 {offsets = [0, 0], sizes = [8, 32], strides = [1, 1]} : vector<8x128xf32> to vector<8x32xf32>
    %541 = vector.extract_strided_slice %538 {offsets = [0, 32], sizes = [8, 32], strides = [1, 1]} : vector<8x128xf32> to vector<8x32xf32>
    %542 = vector.extract_strided_slice %539 {offsets = [0, 64], sizes = [8, 32], strides = [1, 1]} : vector<8x128xf32> to vector<8x32xf32>
    %543 = vector.extract_strided_slice %538 {offsets = [0, 96], sizes = [8, 32], strides = [1, 1]} : vector<8x128xf32> to vector<8x32xf32>
    %544 = arith.mulf %541, %497 : vector<8x32xf32>
    %545 = arith.mulf %540, %542 : vector<8x32xf32>
    %546 = arith.addf %544, %545 : vector<8x32xf32>
    %547 = math.tanh %546 : vector<8x32xf32>
    %548 = arith.mulf %543, %547 : vector<8x32xf32>
    %549 = arith.negf %533 : vector<8x128xf32>
    %550 = math.exp %549 : vector<8x128xf32>
    %cst_157 = arith.constant 1.000000e+00 : f32
    %551 = vector.broadcast %cst_157 : f32 to vector<8x128xf32>
    %552 = arith.addf %551, %550 : vector<8x128xf32>
    %553 = arith.divf %551, %552 : vector<8x128xf32>
    %554 = math.tanh %533 : vector<8x128xf32>
    %555 = vector.extract_strided_slice %553 {offsets = [0, 0], sizes = [8, 32], strides = [1, 1]} : vector<8x128xf32> to vector<8x32xf32>
    %556 = vector.extract_strided_slice %553 {offsets = [0, 32], sizes = [8, 32], strides = [1, 1]} : vector<8x128xf32> to vector<8x32xf32>
    %557 = vector.extract_strided_slice %554 {offsets = [0, 64], sizes = [8, 32], strides = [1, 1]} : vector<8x128xf32> to vector<8x32xf32>
    %558 = vector.extract_strided_slice %553 {offsets = [0, 96], sizes = [8, 32], strides = [1, 1]} : vector<8x128xf32> to vector<8x32xf32>
    %559 = arith.mulf %556, %512 : vector<8x32xf32>
    %560 = arith.mulf %555, %557 : vector<8x32xf32>
    %561 = arith.addf %559, %560 : vector<8x32xf32>
    %562 = math.tanh %561 : vector<8x32xf32>
    %563 = arith.mulf %558, %562 : vector<8x32xf32>
    %564 = arith.truncf %548 : vector<8x32xf32> to vector<8x32xbf16>
    %565 = arith.truncf %563 : vector<8x32xf32> to vector<8x32xbf16>
    %566 = arith.index_cast %522 : i32 to index
    %c0_158 = arith.constant 0 : index
    %567 = vector.load %arg14[%566, %c0_158] : memref<64x32xbf16, #tpu.memory_space<vmem>>, vector<8x32xbf16>
    tpu.vector_store %arg14[%566, %c0_158], %564 {strides = array<i32>} : memref<64x32xbf16, #tpu.memory_space<vmem>>, vector<8x32xbf16>,
    %568 = arith.index_cast %525 : i32 to index
    %c0_159 = arith.constant 0 : index
    %569 = vector.load %arg15[%568, %c0_159] : memref<64x32xbf16, #tpu.memory_space<vmem>>, vector<8x32xbf16>
    tpu.vector_store %arg15[%568, %c0_159], %565 {strides = array<i32>} : memref<64x32xbf16, #tpu.memory_space<vmem>>, vector<8x32xbf16>,
    %c3_i32_160 = arith.constant 3 : i32
    %c8_i32_161 = arith.constant 8 : i32
    %570 = arith.muli %c3_i32_160, %c8_i32_161 : i32
    %571 = tpu.assume_multiple %570, 8 : i32
    %c7_i32_162 = arith.constant 7 : i32
    %572 = arith.subi %c7_i32_162, %c3_i32_160 : i32
    %c8_i32_163 = arith.constant 8 : i32
    %573 = arith.muli %572, %c8_i32_163 : i32
    %574 = tpu.assume_multiple %573, 8 : i32
    %575 = arith.index_cast %571 : i32 to index
    %c0_164 = arith.constant 0 : index
    %576 = vector.load %arg13[%575, %c0_164] : memref<64x256xf32, #tpu.memory_space<vmem>>, vector<8x128xf32>
    %cst_165 = arith.constant dense<0.000000e+00> : vector<8x128xf32>
    %577 = tpu.matmul %564, %417, %cst_165 {dimension_numbers = #tpu.dot_dimension_numbers<[1], [0], [0], [1], [0, 0, 1, 1], [], []>} : vector<8x32xbf16>, vector<32x128xbf16>, vector<8x128xf32> -> vector<8x128xf32>
    %578 = arith.addf %576, %577 : vector<8x128xf32>
    %579 = arith.index_cast %574 : i32 to index
    %c128_166 = arith.constant 128 : index
    %580 = vector.load %arg13[%579, %c128_166] : memref<64x256xf32, #tpu.memory_space<vmem>>, vector<8x128xf32>
    %cst_167 = arith.constant dense<0.000000e+00> : vector<8x128xf32>
    %581 = tpu.matmul %565, %418, %cst_167 {dimension_numbers = #tpu.dot_dimension_numbers<[1], [0], [0], [1], [0, 0, 1, 1], [], []>} : vector<8x32xbf16>, vector<32x128xbf16>, vector<8x128xf32> -> vector<8x128xf32>
    %582 = arith.addf %580, %581 : vector<8x128xf32>
    %583 = arith.negf %578 : vector<8x128xf32>
    %584 = math.exp %583 : vector<8x128xf32>
    %cst_168 = arith.constant 1.000000e+00 : f32
    %585 = vector.broadcast %cst_168 : f32 to vector<8x128xf32>
    %586 = arith.addf %585, %584 : vector<8x128xf32>
    %587 = arith.divf %585, %586 : vector<8x128xf32>
    %588 = math.tanh %578 : vector<8x128xf32>
    %589 = vector.extract_strided_slice %587 {offsets = [0, 0], sizes = [8, 32], strides = [1, 1]} : vector<8x128xf32> to vector<8x32xf32>
    %590 = vector.extract_strided_slice %587 {offsets = [0, 32], sizes = [8, 32], strides = [1, 1]} : vector<8x128xf32> to vector<8x32xf32>
    %591 = vector.extract_strided_slice %588 {offsets = [0, 64], sizes = [8, 32], strides = [1, 1]} : vector<8x128xf32> to vector<8x32xf32>
    %592 = vector.extract_strided_slice %587 {offsets = [0, 96], sizes = [8, 32], strides = [1, 1]} : vector<8x128xf32> to vector<8x32xf32>
    %593 = arith.mulf %590, %546 : vector<8x32xf32>
    %594 = arith.mulf %589, %591 : vector<8x32xf32>
    %595 = arith.addf %593, %594 : vector<8x32xf32>
    %596 = math.tanh %595 : vector<8x32xf32>
    %597 = arith.mulf %592, %596 : vector<8x32xf32>
    %598 = arith.negf %582 : vector<8x128xf32>
    %599 = math.exp %598 : vector<8x128xf32>
    %cst_169 = arith.constant 1.000000e+00 : f32
    %600 = vector.broadcast %cst_169 : f32 to vector<8x128xf32>
    %601 = arith.addf %600, %599 : vector<8x128xf32>
    %602 = arith.divf %600, %601 : vector<8x128xf32>
    %603 = math.tanh %582 : vector<8x128xf32>
    %604 = vector.extract_strided_slice %602 {offsets = [0, 0], sizes = [8, 32], strides = [1, 1]} : vector<8x128xf32> to vector<8x32xf32>
    %605 = vector.extract_strided_slice %602 {offsets = [0, 32], sizes = [8, 32], strides = [1, 1]} : vector<8x128xf32> to vector<8x32xf32>
    %606 = vector.extract_strided_slice %603 {offsets = [0, 64], sizes = [8, 32], strides = [1, 1]} : vector<8x128xf32> to vector<8x32xf32>
    %607 = vector.extract_strided_slice %602 {offsets = [0, 96], sizes = [8, 32], strides = [1, 1]} : vector<8x128xf32> to vector<8x32xf32>
    %608 = arith.mulf %605, %561 : vector<8x32xf32>
    %609 = arith.mulf %604, %606 : vector<8x32xf32>
    %610 = arith.addf %608, %609 : vector<8x32xf32>
    %611 = math.tanh %610 : vector<8x32xf32>
    %612 = arith.mulf %607, %611 : vector<8x32xf32>
    %613 = arith.truncf %597 : vector<8x32xf32> to vector<8x32xbf16>
    %614 = arith.truncf %612 : vector<8x32xf32> to vector<8x32xbf16>
    %615 = arith.index_cast %571 : i32 to index
    %c0_170 = arith.constant 0 : index
    %616 = vector.load %arg14[%615, %c0_170] : memref<64x32xbf16, #tpu.memory_space<vmem>>, vector<8x32xbf16>
    tpu.vector_store %arg14[%615, %c0_170], %613 {strides = array<i32>} : memref<64x32xbf16, #tpu.memory_space<vmem>>, vector<8x32xbf16>,
    %617 = arith.index_cast %574 : i32 to index
    %c0_171 = arith.constant 0 : index
    %618 = vector.load %arg15[%617, %c0_171] : memref<64x32xbf16, #tpu.memory_space<vmem>>, vector<8x32xbf16>
    tpu.vector_store %arg15[%617, %c0_171], %614 {strides = array<i32>} : memref<64x32xbf16, #tpu.memory_space<vmem>>, vector<8x32xbf16>,
    %c4_i32_172 = arith.constant 4 : i32
    %c8_i32_173 = arith.constant 8 : i32
    %619 = arith.muli %c4_i32_172, %c8_i32_173 : i32
    %620 = tpu.assume_multiple %619, 8 : i32
    %c7_i32_174 = arith.constant 7 : i32
    %621 = arith.subi %c7_i32_174, %c4_i32_172 : i32
    %c8_i32_175 = arith.constant 8 : i32
    %622 = arith.muli %621, %c8_i32_175 : i32
    %623 = tpu.assume_multiple %622, 8 : i32
    %624 = arith.index_cast %620 : i32 to index
    %c0_176 = arith.constant 0 : index
    %625 = vector.load %arg13[%624, %c0_176] : memref<64x256xf32, #tpu.memory_space<vmem>>, vector<8x128xf32>
    %cst_177 = arith.constant dense<0.000000e+00> : vector<8x128xf32>
    %626 = tpu.matmul %613, %417, %cst_177 {dimension_numbers = #tpu.dot_dimension_numbers<[1], [0], [0], [1], [0, 0, 1, 1], [], []>} : vector<8x32xbf16>, vector<32x128xbf16>, vector<8x128xf32> -> vector<8x128xf32>
    %627 = arith.addf %625, %626 : vector<8x128xf32>
    %628 = arith.index_cast %623 : i32 to index
    %c128_178 = arith.constant 128 : index
    %629 = vector.load %arg13[%628, %c128_178] : memref<64x256xf32, #tpu.memory_space<vmem>>, vector<8x128xf32>
    %cst_179 = arith.constant dense<0.000000e+00> : vector<8x128xf32>
    %630 = tpu.matmul %614, %418, %cst_179 {dimension_numbers = #tpu.dot_dimension_numbers<[1], [0], [0], [1], [0, 0, 1, 1], [], []>} : vector<8x32xbf16>, vector<32x128xbf16>, vector<8x128xf32> -> vector<8x128xf32>
    %631 = arith.addf %629, %630 : vector<8x128xf32>
    %632 = arith.negf %627 : vector<8x128xf32>
    %633 = math.exp %632 : vector<8x128xf32>
    %cst_180 = arith.constant 1.000000e+00 : f32
    %634 = vector.broadcast %cst_180 : f32 to vector<8x128xf32>
    %635 = arith.addf %634, %633 : vector<8x128xf32>
    %636 = arith.divf %634, %635 : vector<8x128xf32>
    %637 = math.tanh %627 : vector<8x128xf32>
    %638 = vector.extract_strided_slice %636 {offsets = [0, 0], sizes = [8, 32], strides = [1, 1]} : vector<8x128xf32> to vector<8x32xf32>
    %639 = vector.extract_strided_slice %636 {offsets = [0, 32], sizes = [8, 32], strides = [1, 1]} : vector<8x128xf32> to vector<8x32xf32>
    %640 = vector.extract_strided_slice %637 {offsets = [0, 64], sizes = [8, 32], strides = [1, 1]} : vector<8x128xf32> to vector<8x32xf32>
    %641 = vector.extract_strided_slice %636 {offsets = [0, 96], sizes = [8, 32], strides = [1, 1]} : vector<8x128xf32> to vector<8x32xf32>
    %642 = arith.mulf %639, %595 : vector<8x32xf32>
    %643 = arith.mulf %638, %640 : vector<8x32xf32>
    %644 = arith.addf %642, %643 : vector<8x32xf32>
    %645 = math.tanh %644 : vector<8x32xf32>
    %646 = arith.mulf %641, %645 : vector<8x32xf32>
    %647 = arith.negf %631 : vector<8x128xf32>
    %648 = math.exp %647 : vector<8x128xf32>
    %cst_181 = arith.constant 1.000000e+00 : f32
    %649 = vector.broadcast %cst_181 : f32 to vector<8x128xf32>
    %650 = arith.addf %649, %648 : vector<8x128xf32>
    %651 = arith.divf %649, %650 : vector<8x128xf32>
    %652 = math.tanh %631 : vector<8x128xf32>
    %653 = vector.extract_strided_slice %651 {offsets = [0, 0], sizes = [8, 32], strides = [1, 1]} : vector<8x128xf32> to vector<8x32xf32>
    %654 = vector.extract_strided_slice %651 {offsets = [0, 32], sizes = [8, 32], strides = [1, 1]} : vector<8x128xf32> to vector<8x32xf32>
    %655 = vector.extract_strided_slice %652 {offsets = [0, 64], sizes = [8, 32], strides = [1, 1]} : vector<8x128xf32> to vector<8x32xf32>
    %656 = vector.extract_strided_slice %651 {offsets = [0, 96], sizes = [8, 32], strides = [1, 1]} : vector<8x128xf32> to vector<8x32xf32>
    %657 = arith.mulf %654, %610 : vector<8x32xf32>
    %658 = arith.mulf %653, %655 : vector<8x32xf32>
    %659 = arith.addf %657, %658 : vector<8x32xf32>
    %660 = math.tanh %659 : vector<8x32xf32>
    %661 = arith.mulf %656, %660 : vector<8x32xf32>
    %662 = arith.truncf %646 : vector<8x32xf32> to vector<8x32xbf16>
    %663 = arith.truncf %661 : vector<8x32xf32> to vector<8x32xbf16>
    %664 = arith.index_cast %620 : i32 to index
    %c0_182 = arith.constant 0 : index
    %665 = vector.load %arg14[%664, %c0_182] : memref<64x32xbf16, #tpu.memory_space<vmem>>, vector<8x32xbf16>
    tpu.vector_store %arg14[%664, %c0_182], %662 {strides = array<i32>} : memref<64x32xbf16, #tpu.memory_space<vmem>>, vector<8x32xbf16>,
    %666 = arith.index_cast %623 : i32 to index
    %c0_183 = arith.constant 0 : index
    %667 = vector.load %arg15[%666, %c0_183] : memref<64x32xbf16, #tpu.memory_space<vmem>>, vector<8x32xbf16>
    tpu.vector_store %arg15[%666, %c0_183], %663 {strides = array<i32>} : memref<64x32xbf16, #tpu.memory_space<vmem>>, vector<8x32xbf16>,
    %c5_i32_184 = arith.constant 5 : i32
    %c8_i32_185 = arith.constant 8 : i32
    %668 = arith.muli %c5_i32_184, %c8_i32_185 : i32
    %669 = tpu.assume_multiple %668, 8 : i32
    %c7_i32_186 = arith.constant 7 : i32
    %670 = arith.subi %c7_i32_186, %c5_i32_184 : i32
    %c8_i32_187 = arith.constant 8 : i32
    %671 = arith.muli %670, %c8_i32_187 : i32
    %672 = tpu.assume_multiple %671, 8 : i32
    %673 = arith.index_cast %669 : i32 to index
    %c0_188 = arith.constant 0 : index
    %674 = vector.load %arg13[%673, %c0_188] : memref<64x256xf32, #tpu.memory_space<vmem>>, vector<8x128xf32>
    %cst_189 = arith.constant dense<0.000000e+00> : vector<8x128xf32>
    %675 = tpu.matmul %662, %417, %cst_189 {dimension_numbers = #tpu.dot_dimension_numbers<[1], [0], [0], [1], [0, 0, 1, 1], [], []>} : vector<8x32xbf16>, vector<32x128xbf16>, vector<8x128xf32> -> vector<8x128xf32>
    %676 = arith.addf %674, %675 : vector<8x128xf32>
    %677 = arith.index_cast %672 : i32 to index
    %c128_190 = arith.constant 128 : index
    %678 = vector.load %arg13[%677, %c128_190] : memref<64x256xf32, #tpu.memory_space<vmem>>, vector<8x128xf32>
    %cst_191 = arith.constant dense<0.000000e+00> : vector<8x128xf32>
    %679 = tpu.matmul %663, %418, %cst_191 {dimension_numbers = #tpu.dot_dimension_numbers<[1], [0], [0], [1], [0, 0, 1, 1], [], []>} : vector<8x32xbf16>, vector<32x128xbf16>, vector<8x128xf32> -> vector<8x128xf32>
    %680 = arith.addf %678, %679 : vector<8x128xf32>
    %681 = arith.negf %676 : vector<8x128xf32>
    %682 = math.exp %681 : vector<8x128xf32>
    %cst_192 = arith.constant 1.000000e+00 : f32
    %683 = vector.broadcast %cst_192 : f32 to vector<8x128xf32>
    %684 = arith.addf %683, %682 : vector<8x128xf32>
    %685 = arith.divf %683, %684 : vector<8x128xf32>
    %686 = math.tanh %676 : vector<8x128xf32>
    %687 = vector.extract_strided_slice %685 {offsets = [0, 0], sizes = [8, 32], strides = [1, 1]} : vector<8x128xf32> to vector<8x32xf32>
    %688 = vector.extract_strided_slice %685 {offsets = [0, 32], sizes = [8, 32], strides = [1, 1]} : vector<8x128xf32> to vector<8x32xf32>
    %689 = vector.extract_strided_slice %686 {offsets = [0, 64], sizes = [8, 32], strides = [1, 1]} : vector<8x128xf32> to vector<8x32xf32>
    %690 = vector.extract_strided_slice %685 {offsets = [0, 96], sizes = [8, 32], strides = [1, 1]} : vector<8x128xf32> to vector<8x32xf32>
    %691 = arith.mulf %688, %644 : vector<8x32xf32>
    %692 = arith.mulf %687, %689 : vector<8x32xf32>
    %693 = arith.addf %691, %692 : vector<8x32xf32>
    %694 = math.tanh %693 : vector<8x32xf32>
    %695 = arith.mulf %690, %694 : vector<8x32xf32>
    %696 = arith.negf %680 : vector<8x128xf32>
    %697 = math.exp %696 : vector<8x128xf32>
    %cst_193 = arith.constant 1.000000e+00 : f32
    %698 = vector.broadcast %cst_193 : f32 to vector<8x128xf32>
    %699 = arith.addf %698, %697 : vector<8x128xf32>
    %700 = arith.divf %698, %699 : vector<8x128xf32>
    %701 = math.tanh %680 : vector<8x128xf32>
    %702 = vector.extract_strided_slice %700 {offsets = [0, 0], sizes = [8, 32], strides = [1, 1]} : vector<8x128xf32> to vector<8x32xf32>
    %703 = vector.extract_strided_slice %700 {offsets = [0, 32], sizes = [8, 32], strides = [1, 1]} : vector<8x128xf32> to vector<8x32xf32>
    %704 = vector.extract_strided_slice %701 {offsets = [0, 64], sizes = [8, 32], strides = [1, 1]} : vector<8x128xf32> to vector<8x32xf32>
    %705 = vector.extract_strided_slice %700 {offsets = [0, 96], sizes = [8, 32], strides = [1, 1]} : vector<8x128xf32> to vector<8x32xf32>
    %706 = arith.mulf %703, %659 : vector<8x32xf32>
    %707 = arith.mulf %702, %704 : vector<8x32xf32>
    %708 = arith.addf %706, %707 : vector<8x32xf32>
    %709 = math.tanh %708 : vector<8x32xf32>
    %710 = arith.mulf %705, %709 : vector<8x32xf32>
    %711 = arith.truncf %695 : vector<8x32xf32> to vector<8x32xbf16>
    %712 = arith.truncf %710 : vector<8x32xf32> to vector<8x32xbf16>
    %713 = arith.index_cast %669 : i32 to index
    %c0_194 = arith.constant 0 : index
    %714 = vector.load %arg14[%713, %c0_194] : memref<64x32xbf16, #tpu.memory_space<vmem>>, vector<8x32xbf16>
    tpu.vector_store %arg14[%713, %c0_194], %711 {strides = array<i32>} : memref<64x32xbf16, #tpu.memory_space<vmem>>, vector<8x32xbf16>,
    %715 = arith.index_cast %672 : i32 to index
    %c0_195 = arith.constant 0 : index
    %716 = vector.load %arg15[%715, %c0_195] : memref<64x32xbf16, #tpu.memory_space<vmem>>, vector<8x32xbf16>
    tpu.vector_store %arg15[%715, %c0_195], %712 {strides = array<i32>} : memref<64x32xbf16, #tpu.memory_space<vmem>>, vector<8x32xbf16>,
    %c6_i32_196 = arith.constant 6 : i32
    %c8_i32_197 = arith.constant 8 : i32
    %717 = arith.muli %c6_i32_196, %c8_i32_197 : i32
    %718 = tpu.assume_multiple %717, 8 : i32
    %c7_i32_198 = arith.constant 7 : i32
    %719 = arith.subi %c7_i32_198, %c6_i32_196 : i32
    %c8_i32_199 = arith.constant 8 : i32
    %720 = arith.muli %719, %c8_i32_199 : i32
    %721 = tpu.assume_multiple %720, 8 : i32
    %722 = arith.index_cast %718 : i32 to index
    %c0_200 = arith.constant 0 : index
    %723 = vector.load %arg13[%722, %c0_200] : memref<64x256xf32, #tpu.memory_space<vmem>>, vector<8x128xf32>
    %cst_201 = arith.constant dense<0.000000e+00> : vector<8x128xf32>
    %724 = tpu.matmul %711, %417, %cst_201 {dimension_numbers = #tpu.dot_dimension_numbers<[1], [0], [0], [1], [0, 0, 1, 1], [], []>} : vector<8x32xbf16>, vector<32x128xbf16>, vector<8x128xf32> -> vector<8x128xf32>
    %725 = arith.addf %723, %724 : vector<8x128xf32>
    %726 = arith.index_cast %721 : i32 to index
    %c128_202 = arith.constant 128 : index
    %727 = vector.load %arg13[%726, %c128_202] : memref<64x256xf32, #tpu.memory_space<vmem>>, vector<8x128xf32>
    %cst_203 = arith.constant dense<0.000000e+00> : vector<8x128xf32>
    %728 = tpu.matmul %712, %418, %cst_203 {dimension_numbers = #tpu.dot_dimension_numbers<[1], [0], [0], [1], [0, 0, 1, 1], [], []>} : vector<8x32xbf16>, vector<32x128xbf16>, vector<8x128xf32> -> vector<8x128xf32>
    %729 = arith.addf %727, %728 : vector<8x128xf32>
    %730 = arith.negf %725 : vector<8x128xf32>
    %731 = math.exp %730 : vector<8x128xf32>
    %cst_204 = arith.constant 1.000000e+00 : f32
    %732 = vector.broadcast %cst_204 : f32 to vector<8x128xf32>
    %733 = arith.addf %732, %731 : vector<8x128xf32>
    %734 = arith.divf %732, %733 : vector<8x128xf32>
    %735 = math.tanh %725 : vector<8x128xf32>
    %736 = vector.extract_strided_slice %734 {offsets = [0, 0], sizes = [8, 32], strides = [1, 1]} : vector<8x128xf32> to vector<8x32xf32>
    %737 = vector.extract_strided_slice %734 {offsets = [0, 32], sizes = [8, 32], strides = [1, 1]} : vector<8x128xf32> to vector<8x32xf32>
    %738 = vector.extract_strided_slice %735 {offsets = [0, 64], sizes = [8, 32], strides = [1, 1]} : vector<8x128xf32> to vector<8x32xf32>
    %739 = vector.extract_strided_slice %734 {offsets = [0, 96], sizes = [8, 32], strides = [1, 1]} : vector<8x128xf32> to vector<8x32xf32>
    %740 = arith.mulf %737, %693 : vector<8x32xf32>
    %741 = arith.mulf %736, %738 : vector<8x32xf32>
    %742 = arith.addf %740, %741 : vector<8x32xf32>
    %743 = math.tanh %742 : vector<8x32xf32>
    %744 = arith.mulf %739, %743 : vector<8x32xf32>
    %745 = arith.negf %729 : vector<8x128xf32>
    %746 = math.exp %745 : vector<8x128xf32>
    %cst_205 = arith.constant 1.000000e+00 : f32
    %747 = vector.broadcast %cst_205 : f32 to vector<8x128xf32>
    %748 = arith.addf %747, %746 : vector<8x128xf32>
    %749 = arith.divf %747, %748 : vector<8x128xf32>
    %750 = math.tanh %729 : vector<8x128xf32>
    %751 = vector.extract_strided_slice %749 {offsets = [0, 0], sizes = [8, 32], strides = [1, 1]} : vector<8x128xf32> to vector<8x32xf32>
    %752 = vector.extract_strided_slice %749 {offsets = [0, 32], sizes = [8, 32], strides = [1, 1]} : vector<8x128xf32> to vector<8x32xf32>
    %753 = vector.extract_strided_slice %750 {offsets = [0, 64], sizes = [8, 32], strides = [1, 1]} : vector<8x128xf32> to vector<8x32xf32>
    %754 = vector.extract_strided_slice %749 {offsets = [0, 96], sizes = [8, 32], strides = [1, 1]} : vector<8x128xf32> to vector<8x32xf32>
    %755 = arith.mulf %752, %708 : vector<8x32xf32>
    %756 = arith.mulf %751, %753 : vector<8x32xf32>
    %757 = arith.addf %755, %756 : vector<8x32xf32>
    %758 = math.tanh %757 : vector<8x32xf32>
    %759 = arith.mulf %754, %758 : vector<8x32xf32>
    %760 = arith.truncf %744 : vector<8x32xf32> to vector<8x32xbf16>
    %761 = arith.truncf %759 : vector<8x32xf32> to vector<8x32xbf16>
    %762 = arith.index_cast %718 : i32 to index
    %c0_206 = arith.constant 0 : index
    %763 = vector.load %arg14[%762, %c0_206] : memref<64x32xbf16, #tpu.memory_space<vmem>>, vector<8x32xbf16>
    tpu.vector_store %arg14[%762, %c0_206], %760 {strides = array<i32>} : memref<64x32xbf16, #tpu.memory_space<vmem>>, vector<8x32xbf16>,
    %764 = arith.index_cast %721 : i32 to index
    %c0_207 = arith.constant 0 : index
    %765 = vector.load %arg15[%764, %c0_207] : memref<64x32xbf16, #tpu.memory_space<vmem>>, vector<8x32xbf16>
    tpu.vector_store %arg15[%764, %c0_207], %761 {strides = array<i32>} : memref<64x32xbf16, #tpu.memory_space<vmem>>, vector<8x32xbf16>,
    %c7_i32_208 = arith.constant 7 : i32
    %c8_i32_209 = arith.constant 8 : i32
    %766 = arith.muli %c7_i32_208, %c8_i32_209 : i32
    %767 = tpu.assume_multiple %766, 8 : i32
    %c7_i32_210 = arith.constant 7 : i32
    %768 = arith.subi %c7_i32_210, %c7_i32_208 : i32
    %c8_i32_211 = arith.constant 8 : i32
    %769 = arith.muli %768, %c8_i32_211 : i32
    %770 = tpu.assume_multiple %769, 8 : i32
    %771 = arith.index_cast %767 : i32 to index
    %c0_212 = arith.constant 0 : index
    %772 = vector.load %arg13[%771, %c0_212] : memref<64x256xf32, #tpu.memory_space<vmem>>, vector<8x128xf32>
    %cst_213 = arith.constant dense<0.000000e+00> : vector<8x128xf32>
    %773 = tpu.matmul %760, %417, %cst_213 {dimension_numbers = #tpu.dot_dimension_numbers<[1], [0], [0], [1], [0, 0, 1, 1], [], []>} : vector<8x32xbf16>, vector<32x128xbf16>, vector<8x128xf32> -> vector<8x128xf32>
    %774 = arith.addf %772, %773 : vector<8x128xf32>
    %775 = arith.index_cast %770 : i32 to index
    %c128_214 = arith.constant 128 : index
    %776 = vector.load %arg13[%775, %c128_214] : memref<64x256xf32, #tpu.memory_space<vmem>>, vector<8x128xf32>
    %cst_215 = arith.constant dense<0.000000e+00> : vector<8x128xf32>
    %777 = tpu.matmul %761, %418, %cst_215 {dimension_numbers = #tpu.dot_dimension_numbers<[1], [0], [0], [1], [0, 0, 1, 1], [], []>} : vector<8x32xbf16>, vector<32x128xbf16>, vector<8x128xf32> -> vector<8x128xf32>
    %778 = arith.addf %776, %777 : vector<8x128xf32>
    %779 = arith.negf %774 : vector<8x128xf32>
    %780 = math.exp %779 : vector<8x128xf32>
    %cst_216 = arith.constant 1.000000e+00 : f32
    %781 = vector.broadcast %cst_216 : f32 to vector<8x128xf32>
    %782 = arith.addf %781, %780 : vector<8x128xf32>
    %783 = arith.divf %781, %782 : vector<8x128xf32>
    %784 = math.tanh %774 : vector<8x128xf32>
    %785 = vector.extract_strided_slice %783 {offsets = [0, 0], sizes = [8, 32], strides = [1, 1]} : vector<8x128xf32> to vector<8x32xf32>
    %786 = vector.extract_strided_slice %783 {offsets = [0, 32], sizes = [8, 32], strides = [1, 1]} : vector<8x128xf32> to vector<8x32xf32>
    %787 = vector.extract_strided_slice %784 {offsets = [0, 64], sizes = [8, 32], strides = [1, 1]} : vector<8x128xf32> to vector<8x32xf32>
    %788 = vector.extract_strided_slice %783 {offsets = [0, 96], sizes = [8, 32], strides = [1, 1]} : vector<8x128xf32> to vector<8x32xf32>
    %789 = arith.mulf %786, %742 : vector<8x32xf32>
    %790 = arith.mulf %785, %787 : vector<8x32xf32>
    %791 = arith.addf %789, %790 : vector<8x32xf32>
    %792 = math.tanh %791 : vector<8x32xf32>
    %793 = arith.mulf %788, %792 : vector<8x32xf32>
    %794 = arith.negf %778 : vector<8x128xf32>
    %795 = math.exp %794 : vector<8x128xf32>
    %cst_217 = arith.constant 1.000000e+00 : f32
    %796 = vector.broadcast %cst_217 : f32 to vector<8x128xf32>
    %797 = arith.addf %796, %795 : vector<8x128xf32>
    %798 = arith.divf %796, %797 : vector<8x128xf32>
    %799 = math.tanh %778 : vector<8x128xf32>
    %800 = vector.extract_strided_slice %798 {offsets = [0, 0], sizes = [8, 32], strides = [1, 1]} : vector<8x128xf32> to vector<8x32xf32>
    %801 = vector.extract_strided_slice %798 {offsets = [0, 32], sizes = [8, 32], strides = [1, 1]} : vector<8x128xf32> to vector<8x32xf32>
    %802 = vector.extract_strided_slice %799 {offsets = [0, 64], sizes = [8, 32], strides = [1, 1]} : vector<8x128xf32> to vector<8x32xf32>
    %803 = vector.extract_strided_slice %798 {offsets = [0, 96], sizes = [8, 32], strides = [1, 1]} : vector<8x128xf32> to vector<8x32xf32>
    %804 = arith.mulf %801, %757 : vector<8x32xf32>
    %805 = arith.mulf %800, %802 : vector<8x32xf32>
    %806 = arith.addf %804, %805 : vector<8x32xf32>
    %807 = math.tanh %806 : vector<8x32xf32>
    %808 = arith.mulf %803, %807 : vector<8x32xf32>
    %809 = arith.truncf %793 : vector<8x32xf32> to vector<8x32xbf16>
    %810 = arith.truncf %808 : vector<8x32xf32> to vector<8x32xbf16>
    %811 = arith.index_cast %767 : i32 to index
    %c0_218 = arith.constant 0 : index
    %812 = vector.load %arg14[%811, %c0_218] : memref<64x32xbf16, #tpu.memory_space<vmem>>, vector<8x32xbf16>
    tpu.vector_store %arg14[%811, %c0_218], %809 {strides = array<i32>} : memref<64x32xbf16, #tpu.memory_space<vmem>>, vector<8x32xbf16>,
    %813 = arith.index_cast %770 : i32 to index
    %c0_219 = arith.constant 0 : index
    %814 = vector.load %arg15[%813, %c0_219] : memref<64x32xbf16, #tpu.memory_space<vmem>>, vector<8x32xbf16>
    tpu.vector_store %arg15[%813, %c0_219], %810 {strides = array<i32>} : memref<64x32xbf16, #tpu.memory_space<vmem>>, vector<8x32xbf16>,
    %c8_i32_220 = arith.constant 8 : i32
    %c56_i32 = arith.constant 56 : i32
    %815 = tpu.assume_multiple %c56_i32, 8 : i32
    %c0_221 = arith.constant 0 : index
    %c0_222 = arith.constant 0 : index
    %816 = vector.load %arg14[%c0_221, %c0_222] : memref<64x32xbf16, #tpu.memory_space<vmem>>, vector<8x32xbf16>
    %c0_223 = arith.constant 0 : index
    %c0_224 = arith.constant 0 : index
    %817 = vector.load %arg15[%c0_223, %c0_224] : memref<64x32xbf16, #tpu.memory_space<vmem>>, vector<8x32xbf16>
    %818 = arith.index_cast %815 : i32 to index
    %c0_225 = arith.constant 0 : index
    %819 = vector.load %arg14[%818, %c0_225] : memref<64x32xbf16, #tpu.memory_space<vmem>>, vector<8x32xbf16>
    %820 = arith.index_cast %815 : i32 to index
    %c0_226 = arith.constant 0 : index
    %821 = vector.load %arg15[%820, %c0_226] : memref<64x32xbf16, #tpu.memory_space<vmem>>, vector<8x32xbf16>
    %822 = tpu.concatenate %816, %817, %819, %821 in 1 : vector<8x32xbf16>, vector<8x32xbf16>, vector<8x32xbf16>, vector<8x32xbf16> -> vector<8x128xbf16>
    %c0_227 = arith.constant 0 : index
    %c0_228 = arith.constant 0 : index
    %823 = vector.load %arg10[%c0_227, %c0_228] : memref<128x2xbf16, #tpu.memory_space<vmem>>, vector<128x2xbf16>
    %cst_229 = arith.constant dense<0.000000e+00> : vector<8x2xf32>
    %824 = tpu.matmul %822, %823, %cst_229 {dimension_numbers = #tpu.dot_dimension_numbers<[1], [0], [0], [1], [0, 0, 1, 1], [], []>} : vector<8x128xbf16>, vector<128x2xbf16>, vector<8x2xf32> -> vector<8x2xf32>
    %c0_230 = arith.constant 0 : index
    %c0_231 = arith.constant 0 : index
    %825 = vector.load %arg11[%c0_230, %c0_231] : memref<1x2xf32, #tpu.memory_space<vmem>>, vector<1x2xf32>
    %826 = vector.broadcast %825 : vector<1x2xf32> to vector<8x2xf32>
    %827 = arith.addf %824, %826 : vector<8x2xf32>
    %c0_232 = arith.constant 0 : index
    %c0_233 = arith.constant 0 : index
    %828 = vector.load %arg12[%c0_232, %c0_233] : memref<8x2xf32, #tpu.memory_space<vmem>>, vector<8x2xf32>
    tpu.vector_store %arg12[%c0_232, %c0_233], %827 {strides = array<i32>} : memref<8x2xf32, #tpu.memory_space<vmem>>, vector<8x2xf32>,
    return
  }
  func.func @transform_0(%arg0: i32) -> (i32, i32, i32) {
    %c0_i32 = arith.constant 0 : i32
    %c0_i32_0 = arith.constant 0 : i32
    %c0_i32_1 = arith.constant 0 : i32
    return %arg0, %c0_i32, %c0_i32_0 : i32, i32, i32
  }
  func.func @transform_1(%arg0: i32) -> (i32, i32) {
    %c0_i32 = arith.constant 0 : i32
    %c0_i32_0 = arith.constant 0 : i32
    %c0_i32_1 = arith.constant 0 : i32
    return %c0_i32, %c0_i32_0 : i32, i32
  }
  func.func @transform_2(%arg0: i32) -> (i32, i32) {
    %c0_i32 = arith.constant 0 : i32
    %c0_i32_0 = arith.constant 0 : i32
    %c0_i32_1 = arith.constant 0 : i32
    return %c0_i32, %c0_i32_0 : i32, i32
  }
  func.func @transform_3(%arg0: i32) -> (i32, i32) {
    %c0_i32 = arith.constant 0 : i32
    %c0_i32_0 = arith.constant 0 : i32
    %c0_i32_1 = arith.constant 0 : i32
    return %c0_i32, %c0_i32_0 : i32, i32
  }
  func.func @transform_4(%arg0: i32) -> (i32, i32) {
    %c0_i32 = arith.constant 0 : i32
    %c0_i32_0 = arith.constant 0 : i32
    %c0_i32_1 = arith.constant 0 : i32
    return %c0_i32, %c0_i32_0 : i32, i32
  }
  func.func @transform_5(%arg0: i32) -> (i32, i32) {
    %c0_i32 = arith.constant 0 : i32
    %c0_i32_0 = arith.constant 0 : i32
    %c0_i32_1 = arith.constant 0 : i32
    return %c0_i32, %c0_i32_0 : i32, i32
  }
  func.func @transform_6(%arg0: i32) -> (i32, i32) {
    %c0_i32 = arith.constant 0 : i32
    %c0_i32_0 = arith.constant 0 : i32
    %c0_i32_1 = arith.constant 0 : i32
    return %c0_i32, %c0_i32_0 : i32, i32
  }
  func.func @transform_7(%arg0: i32) -> (i32, i32) {
    %c0_i32 = arith.constant 0 : i32
    %c0_i32_0 = arith.constant 0 : i32
    %c0_i32_1 = arith.constant 0 : i32
    return %c0_i32, %c0_i32_0 : i32, i32
  }
  func.func @transform_8(%arg0: i32) -> (i32, i32) {
    %c0_i32 = arith.constant 0 : i32
    %c0_i32_0 = arith.constant 0 : i32
    %c0_i32_1 = arith.constant 0 : i32
    return %c0_i32, %c0_i32_0 : i32, i32
  }
  func.func @transform_9(%arg0: i32) -> (i32, i32) {
    %c0_i32 = arith.constant 0 : i32
    %c0_i32_0 = arith.constant 0 : i32
    %c0_i32_1 = arith.constant 0 : i32
    return %c0_i32, %c0_i32_0 : i32, i32
  }
  func.func @transform_10(%arg0: i32) -> (i32, i32) {
    %c0_i32 = arith.constant 0 : i32
    %c0_i32_0 = arith.constant 0 : i32
    %c0_i32_1 = arith.constant 0 : i32
    return %c0_i32, %c0_i32_0 : i32, i32
  }
  func.func @transform_11(%arg0: i32) -> (i32, i32) {
    %c0_i32 = arith.constant 0 : i32
    %c0_i32_0 = arith.constant 0 : i32
    return %arg0, %c0_i32 : i32, i32
  }
}

</mosaic_0001>

<llo_original>
// kernel: tpu_custom_call.1
$region0: #{tpu_custom_call.1}
  #allocation0 [shape = 'u32[]', space=smem, size = 0x4, offset = 0x4, fixed_abs, tag = 'smem constant byte address 0x4 - core index']
  #allocation1 [shape = 'u32[144,128]{1,0:T(1,128)}', space=vmem, size = 0x12000, scoped, tag = 'internal scratch']
  #allocation2 [shape = 'f32[64,256]{1,0:T(8,128)}', space=vmem, size = 0x10000, scoped, tag = 'scratch operand']
  #allocation3 [shape = 'bf16[64,32]{1,0:T(8,128)(2,1)}', space=vmem, size = 0x4000, scoped, tag = 'scratch operand']
  #allocation4 [shape = 'bf16[64,32]{1,0:T(8,128)(2,1)}', space=vmem, size = 0x4000, scoped, tag = 'scratch operand']
  %s0 = inlined_call_operand.vmem [shape: bf16[1,64,32], index: 0, kind: input, shape index: {}]
  %s1 = inlined_call_operand.vmem [shape: bf16[32,256], index: 1, kind: input, shape index: {}]
  %s2 = inlined_call_operand.vmem [shape: bf16[32,128], index: 2, kind: input, shape index: {}]
  %s3 = inlined_call_operand.hbm [shape: bf16[32,128], index: 3, kind: input, shape index: {}]
  %s4 = inlined_call_operand.vmem [shape: f32[1,256], index: 4, kind: input, shape index: {}]
  %s5 = inlined_call_operand.vmem [shape: bf16[64,256], index: 5, kind: input, shape index: {}]
  %s6 = inlined_call_operand.hbm [shape: bf16[32,128], index: 6, kind: input, shape index: {}]
  %s7 = inlined_call_operand.hbm [shape: bf16[32,128], index: 7, kind: input, shape index: {}]
  %s8 = inlined_call_operand.vmem [shape: f32[1,256], index: 8, kind: input, shape index: {}]
  %s9 = inlined_call_operand.vmem [shape: bf16[128,2], index: 9, kind: input, shape index: {}]
  %s10 = inlined_call_operand.vmem [shape: f32[1,2], index: 10, kind: input, shape index: {}]
  %s11 = inlined_call_operand.vmem [shape: f32[8,2], index: 11, kind: output, shape index: {}]
  %s12 = sld [smem:[#allocation0]]
  $region66: #{tpu_custom_call.1} parent=0
    _
  %s14 = ssub.s32 1, %s12
  %s15 = scalar_select 0, %s14, %s12
  $region1: #{tpu_custom_call.1} parent=0
    #allocation5 [shape = 'u8[8192]{0}', space=vmem, size = 0x2000, scoped, tag = 'input window, operand 3, single buffered']
    #allocation6 [shape = 's32[1]{0}', space=sflag, size = 0x4, scoped, tag = 'scoped memory for tpu_custom_call.1']
    #allocation7 [shape = 'u8[8192]{0}', space=vmem, size = 0x2000, scoped, tag = 'input window, operand 6, single buffered']
    #allocation8 [shape = 's32[1]{0}', space=sflag, size = 0x4, scoped, tag = 'scoped memory for tpu_custom_call.1']
    #allocation9 [shape = 'u8[8192]{0}', space=vmem, size = 0x2000, scoped, tag = 'input window, operand 7, single buffered']
    %16 = vsyncpa [#allocation6], 0
    %17 = vsyncpa [#allocation8], 0
    // Predicated region
    $region2: #{tpu_custom_call.1} parent=1 // pred_check
      _
    $region3: #{tpu_custom_call.1} parent=1 // pred_check_branch
      %19 = sbr.rel (0) target = $region5
    $region4: #{tpu_custom_call.1} parent=1 // pred_region
      _
    $region5: #{tpu_custom_call.1} parent=1 // pred_fallthru
      _
    // Predicated region
    $region6: #{tpu_custom_call.1} parent=1 // pred_check
      _
    $region7: #{tpu_custom_call.1} parent=1 // pred_check_branch
      %21 = sbr.rel (0) target = $region9
    $region8: #{tpu_custom_call.1} parent=1 // pred_region
      _
    $region9: #{tpu_custom_call.1} parent=1 // pred_fallthru
      _
    // Predicated region
    $region10: #{tpu_custom_call.1} parent=1 // pred_check
      _
    $region11: #{tpu_custom_call.1} parent=1 // pred_check_branch
      %23 = sbr.rel (0) target = $region13
    $region12: #{tpu_custom_call.1} parent=1 // pred_region
      _
    $region13: #{tpu_custom_call.1} parent=1 // pred_fallthru
      _
    // Predicated region
    $region14: #{tpu_custom_call.1} parent=1 // pred_check
      _
    $region15: #{tpu_custom_call.1} parent=1 // pred_check_branch
      %25 = sbr.rel (0) target = $region17
    $region16: #{tpu_custom_call.1} parent=1 // pred_region
      %s27 = ssub.s32 256, 256
      %28 = vsyncadd [#allocation6], %s27
      %s29 = sshll.u32 [#allocation5], 4
      %s30 = int_to_ptr.vmem [resolvable:$true] %s29
      %35 = dma.hbm_to_vmem [thread:$0]  %s3, 256, %s30, [#allocation6], 64, 64, 4
    $region17: #{tpu_custom_call.1} parent=1 // pred_fallthru
      _
    // Predicated region
    $region18: #{tpu_custom_call.1} parent=1 // pred_check
      _
    $region19: #{tpu_custom_call.1} parent=1 // pred_check_branch
      %37 = sbr.rel (0) target = $region21
    $region20: #{tpu_custom_call.1} parent=1 // pred_region
      _
    $region21: #{tpu_custom_call.1} parent=1 // pred_fallthru
      _
    // Predicated region
    $region22: #{tpu_custom_call.1} parent=1 // pred_check
      _
    $region23: #{tpu_custom_call.1} parent=1 // pred_check_branch
      %39 = sbr.rel (0) target = $region25
    $region24: #{tpu_custom_call.1} parent=1 // pred_region
      _
    $region25: #{tpu_custom_call.1} parent=1 // pred_fallthru
      _
    // Predicated region
    $region26: #{tpu_custom_call.1} parent=1 // pred_check
      _
    $region27: #{tpu_custom_call.1} parent=1 // pred_check_branch
      %41 = sbr.rel (0) target = $region29
    $region28: #{tpu_custom_call.1} parent=1 // pred_region
      %s43 = ssub.s32 256, 256
      %44 = vsyncadd [#allocation8], %s43
      %s45 = sshll.u32 [#allocation7], 4
      %s46 = int_to_ptr.vmem [resolvable:$true] %s45
      %51 = dma.hbm_to_vmem [thread:$0]  %s6, 256, %s46, [#allocation8], 64, 64, 4
    $region29: #{tpu_custom_call.1} parent=1 // pred_fallthru
      _
    // Predicated region
    $region30: #{tpu_custom_call.1} parent=1 // pred_check
      _
    $region31: #{tpu_custom_call.1} parent=1 // pred_check_branch
      %53 = sbr.rel (0) target = $region33
    $region32: #{tpu_custom_call.1} parent=1 // pred_region
      %s55 = ssub.s32 256, 256
      %56 = vsyncadd [#allocation8], %s55
      %s57 = sshll.u32 [#allocation9], 4
      %s58 = int_to_ptr.vmem [resolvable:$true] %s57
      %63 = dma.hbm_to_vmem [thread:$0]  %s7, 256, %s58, [#allocation8], 64, 64, 4
    $region33: #{tpu_custom_call.1} parent=1 // pred_fallthru
      _
    // Predicated region
    $region34: #{tpu_custom_call.1} parent=1 // pred_check
      _
    $region35: #{tpu_custom_call.1} parent=1 // pred_check_branch
      %65 = sbr.rel (0) target = $region37
    $region36: #{tpu_custom_call.1} parent=1 // pred_region
      _
    $region37: #{tpu_custom_call.1} parent=1 // pred_fallthru
      _
    // Predicated region
    $region38: #{tpu_custom_call.1} parent=1 // pred_check
      _
    $region39: #{tpu_custom_call.1} parent=1 // pred_check_branch
      %67 = sbr.rel (0) target = $region41
    $region40: #{tpu_custom_call.1} parent=1 // pred_region
      _
    $region41: #{tpu_custom_call.1} parent=1 // pred_fallthru
      _
    // Predicated region
    $region42: #{tpu_custom_call.1} parent=1 // pred_check
      _
    $region43: #{tpu_custom_call.1} parent=1 // pred_check_branch
      %69 = sbr.rel (0) target = $region45
    $region44: #{tpu_custom_call.1} parent=1 // pred_region
      _
    $region45: #{tpu_custom_call.1} parent=1 // pred_fallthru
      _
    // Predicated region
    $region46: #{tpu_custom_call.1} parent=1 // pred_check
      _
    $region47: #{tpu_custom_call.1} parent=1 // pred_check_branch
      %71 = sbr.rel (0) target = $region49
    $region48: #{tpu_custom_call.1} parent=1 // pred_region
      %72 = dma.done [#allocation6], 256
    $region49: #{tpu_custom_call.1} parent=1 // pred_fallthru
      _
    // Predicated region
    $region50: #{tpu_custom_call.1} parent=1 // pred_check
      _
    $region51: #{tpu_custom_call.1} parent=1 // pred_check_branch
      %74 = sbr.rel (0) target = $region53
    $region52: #{tpu_custom_call.1} parent=1 // pred_region
      %75 = dma.done [#allocation8], 256
    $region53: #{tpu_custom_call.1} parent=1 // pred_fallthru
      _
    // Predicated region
    $region54: #{tpu_custom_call.1} parent=1 // pred_check
      _
    $region55: #{tpu_custom_call.1} parent=1 // pred_check_branch
      %77 = sbr.rel (0) target = $region57
    $region56: #{tpu_custom_call.1} parent=1 // pred_region
      %78 = dma.done [#allocation8], 256
    $region57: #{tpu_custom_call.1} parent=1 // pred_fallthru
      _
    %v80 = vld [vmem:[%s0] sm:$0xf]
    %v81 = vld [vmem:[%s0 + $0x4] sm:$0xf]
    %v82 = vld [vmem:[%s0 + $0x8] sm:$0xf]
    %v83 = vld [vmem:[%s0 + $0xc] sm:$0xf]
    %v84 = vld [vmem:[%s0 + $0x10] sm:$0xf]
    %v85 = vld [vmem:[%s0 + $0x14] sm:$0xf]
    %v86 = vld [vmem:[%s0 + $0x18] sm:$0xf]
    %v87 = vld [vmem:[%s0 + $0x1c] sm:$0xf]
    %v88 = vld [vmem:[%s1] sm:$0xff]
    %v89 = vld [vmem:[%s1 + $0x8] sm:$0xff]
    %v90 = vld [vmem:[%s1 + $0x10] sm:$0xff]
    %v91 = vld [vmem:[%s1 + $0x18] sm:$0xff]
    %v92 = vld [vmem:[%s4] sm:$0x3]
    %v94 = vlaneseq
    %v95 = vshrl.u32 %v94, 7
    %v96 = vsub.s32 0, %v95
    %v97 = vrot.slane %v92, %v96
    %v98 = vlaneseq
    %v99 = vshrl.u32 %v98, 7
    %v100 = vsub.s32 1, %v99
    %v101 = vrot.slane %v92, %v100
    %v112 = vunpack.c.l.b16 %v80
    %v113 = vunpack.c.l.b16 %v81
    %v114 = vunpack.c.l.b16 %v82
    %v115 = vunpack.c.l.b16 %v83
    %v116 = vunpack.c.l.b16 %v84
    %v117 = vunpack.c.l.b16 %v85
    %v118 = vunpack.c.l.b16 %v86
    %v119 = vunpack.c.l.b16 %v87
    %v120 = vpack.c.b16 %v113, %v112
    %v121 = vpack.c.b16 %v115, %v114
    %v122 = vpack.c.b16 %v117, %v116
    %v123 = vpack.c.b16 %v119, %v118
    %v128 = vunpack.c.l.b16 %v88
    %v129 = vunpack.c.h.b16 %v88
    %v130 = vunpack.c.l.b16 %v89
    %v131 = vunpack.c.h.b16 %v89
    %v132 = vunpack.c.l.b16 %v90
    %v133 = vunpack.c.h.b16 %v90
    %v134 = vunpack.c.l.b16 %v91
    %v135 = vunpack.c.h.b16 %v91
    %v136 = vpack.c.b16 %v130, %v128
    %v137 = vpack.c.b16 %v131, %v129
    %v138 = vpack.c.b16 %v134, %v132
    %v139 = vpack.c.b16 %v135, %v133
    %vm144 = vcmask 261120
    %v146 = vsel %vm144, %v120, 0
    %v149 = vsel %vm144, %v121, 0
    %v152 = vsel %vm144, %v122, 0
    %v155 = vsel %vm144, %v123, 0
    %157 = vmatprep.subr.bf16.mxu0 0
    %158 = vmatpush1.bf16.msra.mxu0 0
    %159 = vmatprep.subr.bf16.mxu0 0
    %160 = vmatpush1.bf16.msra.mxu0 0
    %161 = vmatprep.subr.bf16.mxu0 0
    %162 = vmatpush1.bf16.msra.mxu0 0
    %163 = vmatprep.subr.bf16.mxu0 0
    %164 = vmatpush1.bf16.msra.mxu0 0
    %165 = vmatprep.subr.bf16.mxu0 0
    %166 = vmatpush1.bf16.msra.mxu0 0
    %167 = vmatprep.subr.bf16.mxu0 0
    %168 = vmatpush1.bf16.msra.mxu0 0
    %169 = vmatprep.subr.bf16.mxu0 %v139
    %170 = vmatpush1.bf16.msra.mxu0 %v138
    %171 = vmatprep.subr.bf16.mxu0 %v137
    %172 = vmatpush1.bf16.msra.mxu0 %v136
    %173 = vmatprep.subr.bf16.mxu0 0
    %174 = vmatpush2.bf16.msra.mxu0 0
    %175 = vmatprep.subr.bf16.mxu0 0
    %176 = vmatpush2.bf16.msra.mxu0 0
    %177 = vmatprep.subr.bf16.mxu0 0
    %178 = vmatpush2.bf16.msra.mxu0 0
    %179 = vmatprep.subr.bf16.mxu0 0
    %180 = vmatpush2.bf16.msra.mxu0 0
    %181 = vmatprep.subr.bf16.mxu0 0
    %182 = vmatpush2.bf16.msra.mxu0 0
    %183 = vmatprep.subr.bf16.mxu0 0
    %184 = vmatpush2.bf16.msra.mxu0 0
    %185 = vmatprep.subr.bf16.mxu0 0
    %186 = vmatpush2.bf16.msra.mxu0 0
    %187 = vmatprep.subr.bf16.mxu0 0
    %188 = vmatpush2.bf16.msra.mxu0 0
    %189 = vmatprep.mubr.bf16.mxu0 0
    %190 = vmatmul.mubr.bf16.gmra.mxu0 %v146
    %v191 = vpop.f32.mrf.mxu0
    %v192 = vadd.f32 %v97, %v191
    %v193 = vpop.f32.mrf.mxu0
    %v194 = vadd.f32 %v101, %v193
    %v195 = vpop.f32.mrf.mxu0
    %v196 = vadd.f32 %v97, %v195
    %v197 = vpop.f32.mrf.mxu0
    %v198 = vadd.f32 %v101, %v197
    %199 = vmatprep.mubr.bf16.mxu0 0
    %200 = vmatmul.mubr.bf16.gmra.mxu0 %v149
    %v201 = vpop.f32.mrf.mxu0
    %v202 = vadd.f32 %v97, %v201
    %v203 = vpop.f32.mrf.mxu0
    %v204 = vadd.f32 %v101, %v203
    %v205 = vpop.f32.mrf.mxu0
    %v206 = vadd.f32 %v97, %v205
    %v207 = vpop.f32.mrf.mxu0
    %v208 = vadd.f32 %v101, %v207
    %209 = vmatprep.mubr.bf16.mxu0 0
    %210 = vmatmul.mubr.bf16.gmra.mxu0 %v152
    %v211 = vpop.f32.mrf.mxu0
    %v212 = vadd.f32 %v97, %v211
    %v213 = vpop.f32.mrf.mxu0
    %v214 = vadd.f32 %v101, %v213
    %v215 = vpop.f32.mrf.mxu0
    %v216 = vadd.f32 %v97, %v215
    %v217 = vpop.f32.mrf.mxu0
    %v218 = vadd.f32 %v101, %v217
    %219 = vmatprep.mubr.bf16.mxu0 0
    %220 = vmatmul.mubr.bf16.gmra.mxu0 %v155
    %v221 = vpop.f32.mrf.mxu0
    %v222 = vadd.f32 %v97, %v221
    %v223 = vpop.f32.mrf.mxu0
    %v224 = vadd.f32 %v101, %v223
    %v225 = vpop.f32.mrf.mxu0
    %v226 = vadd.f32 %v97, %v225
    %v227 = vpop.f32.mrf.mxu0
    %v228 = vadd.f32 %v101, %v227
    %229 = vdwg.mxu0
    %230 = vst [vmem:[#allocation2] sm:$0xff] %v192
    %231 = vst [vmem:[#allocation2 + $0x8] sm:$0xff] %v194
    %232 = vst [vmem:[#allocation2 + $0x10] sm:$0xff] %v196
    %233 = vst [vmem:[#allocation2 + $0x18] sm:$0xff] %v198
    %234 = vst [vmem:[#allocation2 + $0x20] sm:$0xff] %v202
    %235 = vst [vmem:[#allocation2 + $0x28] sm:$0xff] %v204
    %236 = vst [vmem:[#allocation2 + $0x30] sm:$0xff] %v206
    %237 = vst [vmem:[#allocation2 + $0x38] sm:$0xff] %v208
    %238 = vst [vmem:[#allocation2 + $0x40] sm:$0xff] %v212
    %239 = vst [vmem:[#allocation2 + $0x48] sm:$0xff] %v214
    %240 = vst [vmem:[#allocation2 + $0x50] sm:$0xff] %v216
    %241 = vst [vmem:[#allocation2 + $0x58] sm:$0xff] %v218
    %242 = vst [vmem:[#allocation2 + $0x60] sm:$0xff] %v222
    %243 = vst [vmem:[#allocation2 + $0x68] sm:$0xff] %v224
    %244 = vst [vmem:[#allocation2 + $0x70] sm:$0xff] %v226
    %245 = vst [vmem:[#allocation2 + $0x78] sm:$0xff] %v228
    %v246 = vld [vmem:[%s2] sm:$0xf]
    %v247 = vld [vmem:[%s2 + $0x4] sm:$0xf]
    %v248 = vld [vmem:[%s2 + $0x8] sm:$0xf]
    %v249 = vld [vmem:[%s2 + $0xc] sm:$0xf]
    %v250 = vld [vmem:[#allocation5] sm:$0xf]
    %v251 = vld [vmem:[#allocation5 + $0x4] sm:$0xf]
    %v252 = vld [vmem:[#allocation5 + $0x8] sm:$0xf]
    %v253 = vld [vmem:[#allocation5 + $0xc] sm:$0xf]
    %s254 = smul.u32 0, 2
    %s255 = smul.addr %s254, 8
    %s256 = scalar_lea.vmem [#allocation2], %s255
    %v257 = vld [vmem:[%s256] sm:$0xff]
    %v262 = vunpack.c.l.b16 %v246
    %v263 = vunpack.c.l.b16 %v247
    %v264 = vunpack.c.l.b16 %v248
    %v265 = vunpack.c.l.b16 %v249
    %v266 = vpack.c.b16 %v263, %v262
    %v267 = vpack.c.b16 %v265, %v264
    %v271 = vsel %vm144, 0, 0
    %273 = vmatprep.subr.bf16.mxu0 0
    %274 = vmatpush1.bf16.msra.mxu0 0
    %275 = vmatprep.subr.bf16.mxu0 0
    %276 = vmatpush1.bf16.msra.mxu0 0
    %277 = vmatprep.subr.bf16.mxu0 0
    %278 = vmatpush1.bf16.msra.mxu0 0
    %279 = vmatprep.subr.bf16.mxu0 0
    %280 = vmatpush1.bf16.msra.mxu0 0
    %281 = vmatprep.subr.bf16.mxu0 0
    %282 = vmatpush1.bf16.msra.mxu0 0
    %283 = vmatprep.subr.bf16.mxu0 0
    %284 = vmatpush1.bf16.msra.mxu0 0
    %285 = vmatprep.subr.bf16.mxu0 0
    %286 = vmatpush1.bf16.msra.mxu0 %v267
    %287 = vmatprep.subr.bf16.mxu0 0
    %288 = vmatpush1.bf16.msra.mxu0 %v266
    %289 = vmatprep.subr.bf16.mxu0 0
    %290 = vmatpush2.bf16.msra.mxu0 0
    %291 = vmatprep.subr.bf16.mxu0 0
    %292 = vmatpush2.bf16.msra.mxu0 0
    %293 = vmatprep.subr.bf16.mxu0 0
    %294 = vmatpush2.bf16.msra.mxu0 0
    %295 = vmatprep.subr.bf16.mxu0 0
    %296 = vmatpush2.bf16.msra.mxu0 0
    %297 = vmatprep.subr.bf16.mxu0 0
    %298 = vmatpush2.bf16.msra.mxu0 0
    %299 = vmatprep.subr.bf16.mxu0 0
    %300 = vmatpush2.bf16.msra.mxu0 0
    %301 = vmatprep.subr.bf16.mxu0 0
    %302 = vmatpush2.bf16.msra.mxu0 0
    %303 = vmatprep.subr.bf16.mxu0 0
    %304 = vmatpush2.bf16.msra.mxu0 0
    %305 = vmatprep.mubr.bf16.mxu0 0
    %306 = vmatmul.mubr.bf16.gmra.mxu0 %v271
    %v307 = vpop.f32.mrf.mxu0
    %v308 = vadd.f32 0.0, %v307
    %v309 = vpop.f32.mrf.mxu0
    %v310 = vpop.f32.mrf.mxu0
    %v311 = vpop.f32.mrf.mxu0
    %312 = vdwg.mxu0
    %v313 = vadd.f32 %v257, %v308
    %s314 = smul.u32 7, 2
    %s315 = smul.addr %s314, 8
    %s316 = scalar_lea.vmem [#allocation2], %s315
    %v317 = vld [vmem:[%s316 + $0x8] sm:$0xff]
    %v322 = vunpack.c.l.b16 %v250
    %v323 = vunpack.c.l.b16 %v251
    %v324 = vunpack.c.l.b16 %v252
    %v325 = vunpack.c.l.b16 %v253
    %v326 = vpack.c.b16 %v323, %v322
    %v327 = vpack.c.b16 %v325, %v324
    %330 = vmatprep.subr.bf16.mxu0 0
    %331 = vmatpush1.bf16.msra.mxu0 0
    %332 = vmatprep.subr.bf16.mxu0 0
    %333 = vmatpush1.bf16.msra.mxu0 0
    %334 = vmatprep.subr.bf16.mxu0 0
    %335 = vmatpush1.bf16.msra.mxu0 0
    %336 = vmatprep.subr.bf16.mxu0 0
    %337 = vmatpush1.bf16.msra.mxu0 0
    %338 = vmatprep.subr.bf16.mxu0 0
    %339 = vmatpush1.bf16.msra.mxu0 0
    %340 = vmatprep.subr.bf16.mxu0 0
    %341 = vmatpush1.bf16.msra.mxu0 0
    %342 = vmatprep.subr.bf16.mxu0 0
    %343 = vmatpush1.bf16.msra.mxu0 %v327
    %344 = vmatprep.subr.bf16.mxu0 0
    %345 = vmatpush1.bf16.msra.mxu0 %v326
    %346 = vmatprep.subr.bf16.mxu0 0
    %347 = vmatpush2.bf16.msra.mxu0 0
    %348 = vmatprep.subr.bf16.mxu0 0
    %349 = vmatpush2.bf16.msra.mxu0 0
    %350 = vmatprep.subr.bf16.mxu0 0
    %351 = vmatpush2.bf16.msra.mxu0 0
    %352 = vmatprep.subr.bf16.mxu0 0
    %353 = vmatpush2.bf16.msra.mxu0 0
    %354 = vmatprep.subr.bf16.mxu0 0
    %355 = vmatpush2.bf16.msra.mxu0 0
    %356 = vmatprep.subr.bf16.mxu0 0
    %357 = vmatpush2.bf16.msra.mxu0 0
    %358 = vmatprep.subr.bf16.mxu0 0
    %359 = vmatpush2.bf16.msra.mxu0 0
    %360 = vmatprep.subr.bf16.mxu0 0
    %361 = vmatpush2.bf16.msra.mxu0 0
    %362 = vmatprep.mubr.bf16.mxu0 0
    %363 = vmatmul.mubr.bf16.gmra.mxu0 %v271
    %v364 = vpop.f32.mrf.mxu0
    %v365 = vadd.f32 0.0, %v364
    %v366 = vpop.f32.mrf.mxu0
    %v367 = vpop.f32.mrf.mxu0
    %v368 = vpop.f32.mrf.mxu0
    %369 = vdwg.mxu0
    %v370 = vadd.f32 %v317, %v365
    %v371 = vxor.u32 %v313, 2147483648
    %v372 = vmul.f32 %v371, 1.442695
    %v373 = vpow.pop %v372
    %v374 = vadd.f32 %v373, 1.0
    %v375 = vrcp.pop %v374
    %v376 = vmul.f32 1.0, %v375
    %v377 = vtanh.pop %v313
    %v378 = vmul.f32 %v376, 0.0
    %380 = vrot.lane.b32.xlu0 %v377, 64
    %v381 = vpop.permute.xlu0 %380
    %v383 = vmul.f32 %v376, %v381
    %385 = vrot.lane.b32.xlu0 %v383, 32
    %v386 = vpop.permute.xlu0 %385
    %v388 = vadd.f32 %v378, %v386
    %v389 = vtanh.pop %v388
    %391 = vrot.lane.b32.xlu0 %v389, 64
    %v392 = vpop.permute.xlu0 %391
    %v394 = vmul.f32 %v376, %v392
    %v395 = vxor.u32 %v370, 2147483648
    %v396 = vmul.f32 %v395, 1.442695
    %v397 = vpow.pop %v396
    %v398 = vadd.f32 %v397, 1.0
    %v399 = vrcp.pop %v398
    %v400 = vmul.f32 1.0, %v399
    %v401 = vtanh.pop %v370
    %v402 = vmul.f32 %v400, 0.0
    %404 = vrot.lane.b32.xlu0 %v401, 64
    %v405 = vpop.permute.xlu0 %404
    %v407 = vmul.f32 %v400, %v405
    %409 = vrot.lane.b32.xlu0 %v407, 32
    %v410 = vpop.permute.xlu0 %409
    %v412 = vadd.f32 %v402, %v410
    %v413 = vtanh.pop %v412
    %415 = vrot.lane.b32.xlu0 %v413, 64
    %v416 = vpop.permute.xlu0 %415
    %v418 = vmul.f32 %v400, %v416
    %v419 = vpack.c.bf16 %v394, %v394
    %v420 = vpack.c.bf16 %v418, %v418
    %v422 = vunpack.c.l.b16 %v419
    %v423 = vpack.c.b16 %v422, %v422
    %424 = vrot.lane.b32.xlu0 %v423, 32
    %v425 = vpop.permute.xlu0 %424
    %vm427 = vcmask 257024
    %428 = vst.msk [vmem:[#allocation3] sm:$0xf] %vm427, %v425
    %v430 = vunpack.c.l.b16 %v420
    %v431 = vpack.c.b16 %v430, %v430
    %432 = vrot.lane.b32.xlu0 %v431, 32
    %v433 = vpop.permute.xlu0 %432
    %s435 = scalar_lea.vmem [#allocation4], 28
    %436 = vst.msk [vmem:[%s435] sm:$0xf] %vm427, %v433
    %s437 = smul.u32 1, 2
    %s438 = smul.addr %s437, 8
    %s439 = scalar_lea.vmem [#allocation2], %s438
    %v440 = vld [vmem:[%s439] sm:$0xff]
    %441 = vrot.lane.b32.xlu0 %v419, 32
    %v442 = vpop.permute.xlu0 %441
    %v444 = vsel %vm144, %v442, 0
    %446 = vmatprep.subr.bf16.mxu0 0
    %447 = vmatpush1.bf16.msra.mxu0 0
    %448 = vmatprep.subr.bf16.mxu0 0
    %449 = vmatpush1.bf16.msra.mxu0 0
    %450 = vmatprep.subr.bf16.mxu0 0
    %451 = vmatpush1.bf16.msra.mxu0 0
    %452 = vmatprep.subr.bf16.mxu0 0
    %453 = vmatpush1.bf16.msra.mxu0 0
    %454 = vmatprep.subr.bf16.mxu0 0
    %455 = vmatpush1.bf16.msra.mxu0 0
    %456 = vmatprep.subr.bf16.mxu0 0
    %457 = vmatpush1.bf16.msra.mxu0 0
    %458 = vmatprep.subr.bf16.mxu0 0
    %459 = vmatpush1.bf16.msra.mxu0 %v267
    %460 = vmatprep.subr.bf16.mxu0 0
    %461 = vmatpush1.bf16.msra.mxu0 %v266
    %462 = vmatprep.subr.bf16.mxu0 0
    %463 = vmatpush2.bf16.msra.mxu0 0
    %464 = vmatprep.subr.bf16.mxu0 0
    %465 = vmatpush2.bf16.msra.mxu0 0
    %466 = vmatprep.subr.bf16.mxu0 0
    %467 = vmatpush2.bf16.msra.mxu0 0
    %468 = vmatprep.subr.bf16.mxu0 0
    %469 = vmatpush2.bf16.msra.mxu0 0
    %470 = vmatprep.subr.bf16.mxu0 0
    %471 = vmatpush2.bf16.msra.mxu0 0
    %472 = vmatprep.subr.bf16.mxu0 0
    %473 = vmatpush2.bf16.msra.mxu0 0
    %474 = vmatprep.subr.bf16.mxu0 0
    %475 = vmatpush2.bf16.msra.mxu0 0
    %476 = vmatprep.subr.bf16.mxu0 0
    %477 = vmatpush2.bf16.msra.mxu0 0
    %478 = vmatprep.mubr.bf16.mxu0 0
    %479 = vmatmul.mubr.bf16.gmra.mxu0 %v444
    %v480 = vpop.f32.mrf.mxu0
    %v481 = vadd.f32 0.0, %v480
    %v482 = vpop.f32.mrf.mxu0
    %v483 = vpop.f32.mrf.mxu0
    %v484 = vpop.f32.mrf.mxu0
    %485 = vdwg.mxu0
    %v486 = vadd.f32 %v440, %v481
    %s487 = smul.u32 6, 2
    %s488 = smul.addr %s487, 8
    %s489 = scalar_lea.vmem [#allocation2], %s488
    %v490 = vld [vmem:[%s489 + $0x8] sm:$0xff]
    %491 = vrot.lane.b32.xlu0 %v420, 32
    %v492 = vpop.permute.xlu0 %491
    %v494 = vsel %vm144, %v492, 0
    %496 = vmatprep.subr.bf16.mxu0 0
    %497 = vmatpush1.bf16.msra.mxu0 0
    %498 = vmatprep.subr.bf16.mxu0 0
    %499 = vmatpush1.bf16.msra.mxu0 0
    %500 = vmatprep.subr.bf16.mxu0 0
    %501 = vmatpush1.bf16.msra.mxu0 0
    %502 = vmatprep.subr.bf16.mxu0 0
    %503 = vmatpush1.bf16.msra.mxu0 0
    %504 = vmatprep.subr.bf16.mxu0 0
    %505 = vmatpush1.bf16.msra.mxu0 0
    %506 = vmatprep.subr.bf16.mxu0 0
    %507 = vmatpush1.bf16.msra.mxu0 0
    %508 = vmatprep.subr.bf16.mxu0 0
    %509 = vmatpush1.bf16.msra.mxu0 %v327
    %510 = vmatprep.subr.bf16.mxu0 0
    %511 = vmatpush1.bf16.msra.mxu0 %v326
    %512 = vmatprep.subr.bf16.mxu0 0
    %513 = vmatpush2.bf16.msra.mxu0 0
    %514 = vmatprep.subr.bf16.mxu0 0
    %515 = vmatpush2.bf16.msra.mxu0 0
    %516 = vmatprep.subr.bf16.mxu0 0
    %517 = vmatpush2.bf16.msra.mxu0 0
    %518 = vmatprep.subr.bf16.mxu0 0
    %519 = vmatpush2.bf16.msra.mxu0 0
    %520 = vmatprep.subr.bf16.mxu0 0
    %521 = vmatpush2.bf16.msra.mxu0 0
    %522 = vmatprep.subr.bf16.mxu0 0
    %523 = vmatpush2.bf16.msra.mxu0 0
    %524 = vmatprep.subr.bf16.mxu0 0
    %525 = vmatpush2.bf16.msra.mxu0 0
    %526 = vmatprep.subr.bf16.mxu0 0
    %527 = vmatpush2.bf16.msra.mxu0 0
    %528 = vmatprep.mubr.bf16.mxu0 0
    %529 = vmatmul.mubr.bf16.gmra.mxu0 %v494
    %v530 = vpop.f32.mrf.mxu0
    %v531 = vadd.f32 0.0, %v530
    %v532 = vpop.f32.mrf.mxu0
    %v533 = vpop.f32.mrf.mxu0
    %v534 = vpop.f32.mrf.mxu0
    %535 = vdwg.mxu0
    %v536 = vadd.f32 %v490, %v531
    %v537 = vxor.u32 %v486, 2147483648
    %v538 = vmul.f32 %v537, 1.442695
    %v539 = vpow.pop %v538
    %v540 = vadd.f32 %v539, 1.0
    %v541 = vrcp.pop %v540
    %v542 = vmul.f32 1.0, %v541
    %v543 = vtanh.pop %v486
    %v544 = vmul.f32 %v542, %v388
    %546 = vrot.lane.b32.xlu0 %v543, 64
    %v547 = vpop.permute.xlu0 %546
    %v549 = vmul.f32 %v542, %v547
    %551 = vrot.lane.b32.xlu0 %v549, 32
    %v552 = vpop.permute.xlu0 %551
    %v554 = vadd.f32 %v544, %v552
    %v555 = vtanh.pop %v554
    %557 = vrot.lane.b32.xlu0 %v555, 64
    %v558 = vpop.permute.xlu0 %557
    %v560 = vmul.f32 %v542, %v558
    %v561 = vxor.u32 %v536, 2147483648
    %v562 = vmul.f32 %v561, 1.442695
    %v563 = vpow.pop %v562
    %v564 = vadd.f32 %v563, 1.0
    %v565 = vrcp.pop %v564
    %v566 = vmul.f32 1.0, %v565
    %v567 = vtanh.pop %v536
    %v568 = vmul.f32 %v566, %v412
    %570 = vrot.lane.b32.xlu0 %v567, 64
    %v571 = vpop.permute.xlu0 %570
    %v573 = vmul.f32 %v566, %v571
    %575 = vrot.lane.b32.xlu0 %v573, 32
    %v576 = vpop.permute.xlu0 %575
    %v578 = vadd.f32 %v568, %v576
    %v579 = vtanh.pop %v578
    %581 = vrot.lane.b32.xlu0 %v579, 64
    %v582 = vpop.permute.xlu0 %581
    %v584 = vmul.f32 %v566, %v582
    %v585 = vpack.c.bf16 %v560, %v560
    %v586 = vpack.c.bf16 %v584, %v584
    %v588 = vunpack.c.l.b16 %v585
    %v589 = vpack.c.b16 %v588, %v588
    %590 = vrot.lane.b32.xlu0 %v589, 32
    %v591 = vpop.permute.xlu0 %590
    %s593 = scalar_lea.vmem [#allocation3], 4
    %594 = vst.msk [vmem:[%s593] sm:$0xf] %vm427, %v591
    %v596 = vunpack.c.l.b16 %v586
    %v597 = vpack.c.b16 %v596, %v596
    %598 = vrot.lane.b32.xlu0 %v597, 32
    %v599 = vpop.permute.xlu0 %598
    %s601 = scalar_lea.vmem [#allocation4], 24
    %602 = vst.msk [vmem:[%s601] sm:$0xf] %vm427, %v599
    %s603 = smul.u32 2, 2
    %s604 = smul.addr %s603, 8
    %s605 = scalar_lea.vmem [#allocation2], %s604
    %v606 = vld [vmem:[%s605] sm:$0xff]
    %607 = vrot.lane.b32.xlu0 %v585, 32
    %v608 = vpop.permute.xlu0 %607
    %v610 = vsel %vm144, %v608, 0
    %612 = vmatprep.subr.bf16.mxu0 0
    %613 = vmatpush1.bf16.msra.mxu0 0
    %614 = vmatprep.subr.bf16.mxu0 0
    %615 = vmatpush1.bf16.msra.mxu0 0
    %616 = vmatprep.subr.bf16.mxu0 0
    %617 = vmatpush1.bf16.msra.mxu0 0
    %618 = vmatprep.subr.bf16.mxu0 0
    %619 = vmatpush1.bf16.msra.mxu0 0
    %620 = vmatprep.subr.bf16.mxu0 0
    %621 = vmatpush1.bf16.msra.mxu0 0
    %622 = vmatprep.subr.bf16.mxu0 0
    %623 = vmatpush1.bf16.msra.mxu0 0
    %624 = vmatprep.subr.bf16.mxu0 0
    %625 = vmatpush1.bf16.msra.mxu0 %v267
    %626 = vmatprep.subr.bf16.mxu0 0
    %627 = vmatpush1.bf16.msra.mxu0 %v266
    %628 = vmatprep.subr.bf16.mxu0 0
    %629 = vmatpush2.bf16.msra.mxu0 0
    %630 = vmatprep.subr.bf16.mxu0 0
    %631 = vmatpush2.bf16.msra.mxu0 0
    %632 = vmatprep.subr.bf16.mxu0 0
    %633 = vmatpush2.bf16.msra.mxu0 0
    %634 = vmatprep.subr.bf16.mxu0 0
    %635 = vmatpush2.bf16.msra.mxu0 0
    %636 = vmatprep.subr.bf16.mxu0 0
    %637 = vmatpush2.bf16.msra.mxu0 0
    %638 = vmatprep.subr.bf16.mxu0 0
    %639 = vmatpush2.bf16.msra.mxu0 0
    %640 = vmatprep.subr.bf16.mxu0 0
    %641 = vmatpush2.bf16.msra.mxu0 0
    %642 = vmatprep.subr.bf16.mxu0 0
    %643 = vmatpush2.bf16.msra.mxu0 0
    %644 = vmatprep.mubr.bf16.mxu0 0
    %645 = vmatmul.mubr.bf16.gmra.mxu0 %v610
    %v646 = vpop.f32.mrf.mxu0
    %v647 = vadd.f32 0.0, %v646
    %v648 = vpop.f32.mrf.mxu0
    %v649 = vpop.f32.mrf.mxu0
    %v650 = vpop.f32.mrf.mxu0
    %651 = vdwg.mxu0
    %v652 = vadd.f32 %v606, %v647
    %s653 = smul.u32 5, 2
    %s654 = smul.addr %s653, 8
    %s655 = scalar_lea.vmem [#allocation2], %s654
    %v656 = vld [vmem:[%s655 + $0x8] sm:$0xff]
    %657 = vrot.lane.b32.xlu0 %v586, 32
    %v658 = vpop.permute.xlu0 %657
    %v660 = vsel %vm144, %v658, 0
    %662 = vmatprep.subr.bf16.mxu0 0
    %663 = vmatpush1.bf16.msra.mxu0 0
    %664 = vmatprep.subr.bf16.mxu0 0
    %665 = vmatpush1.bf16.msra.mxu0 0
    %666 = vmatprep.subr.bf16.mxu0 0
    %667 = vmatpush1.bf16.msra.mxu0 0
    %668 = vmatprep.subr.bf16.mxu0 0
    %669 = vmatpush1.bf16.msra.mxu0 0
    %670 = vmatprep.subr.bf16.mxu0 0
    %671 = vmatpush1.bf16.msra.mxu0 0
    %672 = vmatprep.subr.bf16.mxu0 0
    %673 = vmatpush1.bf16.msra.mxu0 0
    %674 = vmatprep.subr.bf16.mxu0 0
    %675 = vmatpush1.bf16.msra.mxu0 %v327
    %676 = vmatprep.subr.bf16.mxu0 0
    %677 = vmatpush1.bf16.msra.mxu0 %v326
    %678 = vmatprep.subr.bf16.mxu0 0
    %679 = vmatpush2.bf16.msra.mxu0 0
    %680 = vmatprep.subr.bf16.mxu0 0
    %681 = vmatpush2.bf16.msra.mxu0 0
    %682 = vmatprep.subr.bf16.mxu0 0
    %683 = vmatpush2.bf16.msra.mxu0 0
    %684 = vmatprep.subr.bf16.mxu0 0
    %685 = vmatpush2.bf16.msra.mxu0 0
    %686 = vmatprep.subr.bf16.mxu0 0
    %687 = vmatpush2.bf16.msra.mxu0 0
    %688 = vmatprep.subr.bf16.mxu0 0
    %689 = vmatpush2.bf16.msra.mxu0 0
    %690 = vmatprep.subr.bf16.mxu0 0
    %691 = vmatpush2.bf16.msra.mxu0 0
    %692 = vmatprep.subr.bf16.mxu0 0
    %693 = vmatpush2.bf16.msra.mxu0 0
    %694 = vmatprep.mubr.bf16.mxu0 0
    %695 = vmatmul.mubr.bf16.gmra.mxu0 %v660
    %v696 = vpop.f32.mrf.mxu0
    %v697 = vadd.f32 0.0, %v696
    %v698 = vpop.f32.mrf.mxu0
    %v699 = vpop.f32.mrf.mxu0
    %v700 = vpop.f32.mrf.mxu0
    %701 = vdwg.mxu0
    %v702 = vadd.f32 %v656, %v697
    %v703 = vxor.u32 %v652, 2147483648
    %v704 = vmul.f32 %v703, 1.442695
    %v705 = vpow.pop %v704
    %v706 = vadd.f32 %v705, 1.0
    %v707 = vrcp.pop %v706
    %v708 = vmul.f32 1.0, %v707
    %v709 = vtanh.pop %v652
    %v710 = vmul.f32 %v708, %v554
    %712 = vrot.lane.b32.xlu0 %v709, 64
    %v713 = vpop.permute.xlu0 %712
    %v715 = vmul.f32 %v708, %v713
    %717 = vrot.lane.b32.xlu0 %v715, 32
    %v718 = vpop.permute.xlu0 %717
    %v720 = vadd.f32 %v710, %v718
    %v721 = vtanh.pop %v720
    %723 = vrot.lane.b32.xlu0 %v721, 64
    %v724 = vpop.permute.xlu0 %723
    %v726 = vmul.f32 %v708, %v724
    %v727 = vxor.u32 %v702, 2147483648
    %v728 = vmul.f32 %v727, 1.442695
    %v729 = vpow.pop %v728
    %v730 = vadd.f32 %v729, 1.0
    %v731 = vrcp.pop %v730
    %v732 = vmul.f32 1.0, %v731
    %v733 = vtanh.pop %v702
    %v734 = vmul.f32 %v732, %v578
    %736 = vrot.lane.b32.xlu0 %v733, 64
    %v737 = vpop.permute.xlu0 %736
    %v739 = vmul.f32 %v732, %v737
    %741 = vrot.lane.b32.xlu0 %v739, 32
    %v742 = vpop.permute.xlu0 %741
    %v744 = vadd.f32 %v734, %v742
    %v745 = vtanh.pop %v744
    %747 = vrot.lane.b32.xlu0 %v745, 64
    %v748 = vpop.permute.xlu0 %747
    %v750 = vmul.f32 %v732, %v748
    %v751 = vpack.c.bf16 %v726, %v726
    %v752 = vpack.c.bf16 %v750, %v750
    %v754 = vunpack.c.l.b16 %v751
    %v755 = vpack.c.b16 %v754, %v754
    %756 = vrot.lane.b32.xlu0 %v755, 32
    %v757 = vpop.permute.xlu0 %756
    %s759 = scalar_lea.vmem [#allocation3], 8
    %760 = vst.msk [vmem:[%s759] sm:$0xf] %vm427, %v757
    %v762 = vunpack.c.l.b16 %v752
    %v763 = vpack.c.b16 %v762, %v762
    %764 = vrot.lane.b32.xlu0 %v763, 32
    %v765 = vpop.permute.xlu0 %764
    %s767 = scalar_lea.vmem [#allocation4], 20
    %768 = vst.msk [vmem:[%s767] sm:$0xf] %vm427, %v765
    %s769 = smul.u32 3, 2
    %s770 = smul.addr %s769, 8
    %s771 = scalar_lea.vmem [#allocation2], %s770
    %v772 = vld [vmem:[%s771] sm:$0xff]
    %773 = vrot.lane.b32.xlu0 %v751, 32
    %v774 = vpop.permute.xlu0 %773
    %v776 = vsel %vm144, %v774, 0
    %778 = vmatprep.subr.bf16.mxu0 0
    %779 = vmatpush1.bf16.msra.mxu0 0
    %780 = vmatprep.subr.bf16.mxu0 0
    %781 = vmatpush1.bf16.msra.mxu0 0
    %782 = vmatprep.subr.bf16.mxu0 0
    %783 = vmatpush1.bf16.msra.mxu0 0
    %784 = vmatprep.subr.bf16.mxu0 0
    %785 = vmatpush1.bf16.msra.mxu0 0
    %786 = vmatprep.subr.bf16.mxu0 0
    %787 = vmatpush1.bf16.msra.mxu0 0
    %788 = vmatprep.subr.bf16.mxu0 0
    %789 = vmatpush1.bf16.msra.mxu0 0
    %790 = vmatprep.subr.bf16.mxu0 0
    %791 = vmatpush1.bf16.msra.mxu0 %v267
    %792 = vmatprep.subr.bf16.mxu0 0
    %793 = vmatpush1.bf16.msra.mxu0 %v266
    %794 = vmatprep.subr.bf16.mxu0 0
    %795 = vmatpush2.bf16.msra.mxu0 0
    %796 = vmatprep.subr.bf16.mxu0 0
    %797 = vmatpush2.bf16.msra.mxu0 0
    %798 = vmatprep.subr.bf16.mxu0 0
    %799 = vmatpush2.bf16.msra.mxu0 0
    %800 = vmatprep.subr.bf16.mxu0 0
    %801 = vmatpush2.bf16.msra.mxu0 0
    %802 = vmatprep.subr.bf16.mxu0 0
    %803 = vmatpush2.bf16.msra.mxu0 0
    %804 = vmatprep.subr.bf16.mxu0 0
    %805 = vmatpush2.bf16.msra.mxu0 0
    %806 = vmatprep.subr.bf16.mxu0 0
    %807 = vmatpush2.bf16.msra.mxu0 0
    %808 = vmatprep.subr.bf16.mxu0 0
    %809 = vmatpush2.bf16.msra.mxu0 0
    %810 = vmatprep.mubr.bf16.mxu0 0
    %811 = vmatmul.mubr.bf16.gmra.mxu0 %v776
    %v812 = vpop.f32.mrf.mxu0
    %v813 = vadd.f32 0.0, %v812
    %v814 = vpop.f32.mrf.mxu0
    %v815 = vpop.f32.mrf.mxu0
    %v816 = vpop.f32.mrf.mxu0
    %817 = vdwg.mxu0
    %v818 = vadd.f32 %v772, %v813
    %s819 = smul.u32 4, 2
    %s820 = smul.addr %s819, 8
    %s821 = scalar_lea.vmem [#allocation2], %s820
    %v822 = vld [vmem:[%s821 + $0x8] sm:$0xff]
    %823 = vrot.lane.b32.xlu0 %v752, 32
    %v824 = vpop.permute.xlu0 %823
    %v826 = vsel %vm144, %v824, 0
    %828 = vmatprep.subr.bf16.mxu0 0
    %829 = vmatpush1.bf16.msra.mxu0 0
    %830 = vmatprep.subr.bf16.mxu0 0
    %831 = vmatpush1.bf16.msra.mxu0 0
    %832 = vmatprep.subr.bf16.mxu0 0
    %833 = vmatpush1.bf16.msra.mxu0 0
    %834 = vmatprep.subr.bf16.mxu0 0
    %835 = vmatpush1.bf16.msra.mxu0 0
    %836 = vmatprep.subr.bf16.mxu0 0
    %837 = vmatpush1.bf16.msra.mxu0 0
    %838 = vmatprep.subr.bf16.mxu0 0
    %839 = vmatpush1.bf16.msra.mxu0 0
    %840 = vmatprep.subr.bf16.mxu0 0
    %841 = vmatpush1.bf16.msra.mxu0 %v327
    %842 = vmatprep.subr.bf16.mxu0 0
    %843 = vmatpush1.bf16.msra.mxu0 %v326
    %844 = vmatprep.subr.bf16.mxu0 0
    %845 = vmatpush2.bf16.msra.mxu0 0
    %846 = vmatprep.subr.bf16.mxu0 0
    %847 = vmatpush2.bf16.msra.mxu0 0
    %848 = vmatprep.subr.bf16.mxu0 0
    %849 = vmatpush2.bf16.msra.mxu0 0
    %850 = vmatprep.subr.bf16.mxu0 0
    %851 = vmatpush2.bf16.msra.mxu0 0
    %852 = vmatprep.subr.bf16.mxu0 0
    %853 = vmatpush2.bf16.msra.mxu0 0
    %854 = vmatprep.subr.bf16.mxu0 0
    %855 = vmatpush2.bf16.msra.mxu0 0
    %856 = vmatprep.subr.bf16.mxu0 0
    %857 = vmatpush2.bf16.msra.mxu0 0
    %858 = vmatprep.subr.bf16.mxu0 0
    %859 = vmatpush2.bf16.msra.mxu0 0
    %860 = vmatprep.mubr.bf16.mxu0 0
    %861 = vmatmul.mubr.bf16.gmra.mxu0 %v826
    %v862 = vpop.f32.mrf.mxu0
    %v863 = vadd.f32 0.0, %v862
    %v864 = vpop.f32.mrf.mxu0
    %v865 = vpop.f32.mrf.mxu0
    %v866 = vpop.f32.mrf.mxu0
    %867 = vdwg.mxu0
    %v868 = vadd.f32 %v822, %v863
    %v869 = vxor.u32 %v818, 2147483648
    %v870 = vmul.f32 %v869, 1.442695
    %v871 = vpow.pop %v870
    %v872 = vadd.f32 %v871, 1.0
    %v873 = vrcp.pop %v872
    %v874 = vmul.f32 1.0, %v873
    %v875 = vtanh.pop %v818
    %v876 = vmul.f32 %v874, %v720
    %878 = vrot.lane.b32.xlu0 %v875, 64
    %v879 = vpop.permute.xlu0 %878
    %v881 = vmul.f32 %v874, %v879
    %883 = vrot.lane.b32.xlu0 %v881, 32
    %v884 = vpop.permute.xlu0 %883
    %v886 = vadd.f32 %v876, %v884
    %v887 = vtanh.pop %v886
    %889 = vrot.lane.b32.xlu0 %v887, 64
    %v890 = vpop.permute.xlu0 %889
    %v892 = vmul.f32 %v874, %v890
    %v893 = vxor.u32 %v868, 2147483648
    %v894 = vmul.f32 %v893, 1.442695
    %v895 = vpow.pop %v894
    %v896 = vadd.f32 %v895, 1.0
    %v897 = vrcp.pop %v896
    %v898 = vmul.f32 1.0, %v897
    %v899 = vtanh.pop %v868
    %v900 = vmul.f32 %v898, %v744
    %902 = vrot.lane.b32.xlu0 %v899, 64
    %v903 = vpop.permute.xlu0 %902
    %v905 = vmul.f32 %v898, %v903
    %907 = vrot.lane.b32.xlu0 %v905, 32
    %v908 = vpop.permute.xlu0 %907
    %v910 = vadd.f32 %v900, %v908
    %v911 = vtanh.pop %v910
    %913 = vrot.lane.b32.xlu0 %v911, 64
    %v914 = vpop.permute.xlu0 %913
    %v916 = vmul.f32 %v898, %v914
    %v917 = vpack.c.bf16 %v892, %v892
    %v918 = vpack.c.bf16 %v916, %v916
    %v920 = vunpack.c.l.b16 %v917
    %v921 = vpack.c.b16 %v920, %v920
    %922 = vrot.lane.b32.xlu0 %v921, 32
    %v923 = vpop.permute.xlu0 %922
    %s925 = scalar_lea.vmem [#allocation3], 12
    %926 = vst.msk [vmem:[%s925] sm:$0xf] %vm427, %v923
    %v928 = vunpack.c.l.b16 %v918
    %v929 = vpack.c.b16 %v928, %v928
    %930 = vrot.lane.b32.xlu0 %v929, 32
    %v931 = vpop.permute.xlu0 %930
    %s933 = scalar_lea.vmem [#allocation4], 16
    %934 = vst.msk [vmem:[%s933] sm:$0xf] %vm427, %v931
    %v935 = vld [vmem:[%s821] sm:$0xff]
    %936 = vrot.lane.b32.xlu0 %v917, 32
    %v937 = vpop.permute.xlu0 %936
    %v939 = vsel %vm144, %v937, 0
    %941 = vmatprep.subr.bf16.mxu0 0
    %942 = vmatpush1.bf16.msra.mxu0 0
    %943 = vmatprep.subr.bf16.mxu0 0
    %944 = vmatpush1.bf16.msra.mxu0 0
    %945 = vmatprep.subr.bf16.mxu0 0
    %946 = vmatpush1.bf16.msra.mxu0 0
    %947 = vmatprep.subr.bf16.mxu0 0
    %948 = vmatpush1.bf16.msra.mxu0 0
    %949 = vmatprep.subr.bf16.mxu0 0
    %950 = vmatpush1.bf16.msra.mxu0 0
    %951 = vmatprep.subr.bf16.mxu0 0
    %952 = vmatpush1.bf16.msra.mxu0 0
    %953 = vmatprep.subr.bf16.mxu0 0
    %954 = vmatpush1.bf16.msra.mxu0 %v267
    %955 = vmatprep.subr.bf16.mxu0 0
    %956 = vmatpush1.bf16.msra.mxu0 %v266
    %957 = vmatprep.subr.bf16.mxu0 0
    %958 = vmatpush2.bf16.msra.mxu0 0
    %959 = vmatprep.subr.bf16.mxu0 0
    %960 = vmatpush2.bf16.msra.mxu0 0
    %961 = vmatprep.subr.bf16.mxu0 0
    %962 = vmatpush2.bf16.msra.mxu0 0
    %963 = vmatprep.subr.bf16.mxu0 0
    %964 = vmatpush2.bf16.msra.mxu0 0
    %965 = vmatprep.subr.bf16.mxu0 0
    %966 = vmatpush2.bf16.msra.mxu0 0
    %967 = vmatprep.subr.bf16.mxu0 0
    %968 = vmatpush2.bf16.msra.mxu0 0
    %969 = vmatprep.subr.bf16.mxu0 0
    %970 = vmatpush2.bf16.msra.mxu0 0
    %971 = vmatprep.subr.bf16.mxu0 0
    %972 = vmatpush2.bf16.msra.mxu0 0
    %973 = vmatprep.mubr.bf16.mxu0 0
    %974 = vmatmul.mubr.bf16.gmra.mxu0 %v939
    %v975 = vpop.f32.mrf.mxu0
    %v976 = vadd.f32 0.0, %v975
    %v977 = vpop.f32.mrf.mxu0
    %v978 = vpop.f32.mrf.mxu0
    %v979 = vpop.f32.mrf.mxu0
    %980 = vdwg.mxu0
    %v981 = vadd.f32 %v935, %v976
    %v982 = vld [vmem:[%s771 + $0x8] sm:$0xff]
    %983 = vrot.lane.b32.xlu0 %v918, 32
    %v984 = vpop.permute.xlu0 %983
    %v986 = vsel %vm144, %v984, 0
    %988 = vmatprep.subr.bf16.mxu0 0
    %989 = vmatpush1.bf16.msra.mxu0 0
    %990 = vmatprep.subr.bf16.mxu0 0
    %991 = vmatpush1.bf16.msra.mxu0 0
    %992 = vmatprep.subr.bf16.mxu0 0
    %993 = vmatpush1.bf16.msra.mxu0 0
    %994 = vmatprep.subr.bf16.mxu0 0
    %995 = vmatpush1.bf16.msra.mxu0 0
    %996 = vmatprep.subr.bf16.mxu0 0
    %997 = vmatpush1.bf16.msra.mxu0 0
    %998 = vmatprep.subr.bf16.mxu0 0
    %999 = vmatpush1.bf16.msra.mxu0 0
    %1000 = vmatprep.subr.bf16.mxu0 0
    %1001 = vmatpush1.bf16.msra.mxu0 %v327
    %1002 = vmatprep.subr.bf16.mxu0 0
    %1003 = vmatpush1.bf16.msra.mxu0 %v326
    %1004 = vmatprep.subr.bf16.mxu0 0
    %1005 = vmatpush2.bf16.msra.mxu0 0
    %1006 = vmatprep.subr.bf16.mxu0 0
    %1007 = vmatpush2.bf16.msra.mxu0 0
    %1008 = vmatprep.subr.bf16.mxu0 0
    %1009 = vmatpush2.bf16.msra.mxu0 0
    %1010 = vmatprep.subr.bf16.mxu0 0
    %1011 = vmatpush2.bf16.msra.mxu0 0
    %1012 = vmatprep.subr.bf16.mxu0 0
    %1013 = vmatpush2.bf16.msra.mxu0 0
    %1014 = vmatprep.subr.bf16.mxu0 0
    %1015 = vmatpush2.bf16.msra.mxu0 0
    %1016 = vmatprep.subr.bf16.mxu0 0
    %1017 = vmatpush2.bf16.msra.mxu0 0
    %1018 = vmatprep.subr.bf16.mxu0 0
    %1019 = vmatpush2.bf16.msra.mxu0 0
    %1020 = vmatprep.mubr.bf16.mxu0 0
    %1021 = vmatmul.mubr.bf16.gmra.mxu0 %v986
    %v1022 = vpop.f32.mrf.mxu0
    %v1023 = vadd.f32 0.0, %v1022
    %v1024 = vpop.f32.mrf.mxu0
    %v1025 = vpop.f32.mrf.mxu0
    %v1026 = vpop.f32.mrf.mxu0
    %1027 = vdwg.mxu0
    %v1028 = vadd.f32 %v982, %v1023
    %v1029 = vxor.u32 %v981, 2147483648
    %v1030 = vmul.f32 %v1029, 1.442695
    %v1031 = vpow.pop %v1030
    %v1032 = vadd.f32 %v1031, 1.0
    %v1033 = vrcp.pop %v1032
    %v1034 = vmul.f32 1.0, %v1033
    %v1035 = vtanh.pop %v981
    %v1036 = vmul.f32 %v1034, %v886
    %1038 = vrot.lane.b32.xlu0 %v1035, 64
    %v1039 = vpop.permute.xlu0 %1038
    %v1041 = vmul.f32 %v1034, %v1039
    %1043 = vrot.lane.b32.xlu0 %v1041, 32
    %v1044 = vpop.permute.xlu0 %1043
    %v1046 = vadd.f32 %v1036, %v1044
    %v1047 = vtanh.pop %v1046
    %1049 = vrot.lane.b32.xlu0 %v1047, 64
    %v1050 = vpop.permute.xlu0 %1049
    %v1052 = vmul.f32 %v1034, %v1050
    %v1053 = vxor.u32 %v1028, 2147483648
    %v1054 = vmul.f32 %v1053, 1.442695
    %v1055 = vpow.pop %v1054
    %v1056 = vadd.f32 %v1055, 1.0
    %v1057 = vrcp.pop %v1056
    %v1058 = vmul.f32 1.0, %v1057
    %v1059 = vtanh.pop %v1028
    %v1060 = vmul.f32 %v1058, %v910
    %1062 = vrot.lane.b32.xlu0 %v1059, 64
    %v1063 = vpop.permute.xlu0 %1062
    %v1065 = vmul.f32 %v1058, %v1063
    %1067 = vrot.lane.b32.xlu0 %v1065, 32
    %v1068 = vpop.permute.xlu0 %1067
    %v1070 = vadd.f32 %v1060, %v1068
    %v1071 = vtanh.pop %v1070
    %1073 = vrot.lane.b32.xlu0 %v1071, 64
    %v1074 = vpop.permute.xlu0 %1073
    %v1076 = vmul.f32 %v1058, %v1074
    %v1077 = vpack.c.bf16 %v1052, %v1052
    %v1078 = vpack.c.bf16 %v1076, %v1076
    %v1080 = vunpack.c.l.b16 %v1077
    %v1081 = vpack.c.b16 %v1080, %v1080
    %1082 = vrot.lane.b32.xlu0 %v1081, 32
    %v1083 = vpop.permute.xlu0 %1082
    %s1085 = scalar_lea.vmem [#allocation3], 16
    %1086 = vst.msk [vmem:[%s1085] sm:$0xf] %vm427, %v1083
    %v1088 = vunpack.c.l.b16 %v1078
    %v1089 = vpack.c.b16 %v1088, %v1088
    %1090 = vrot.lane.b32.xlu0 %v1089, 32
    %v1091 = vpop.permute.xlu0 %1090
    %s1093 = scalar_lea.vmem [#allocation4], 12
    %1094 = vst.msk [vmem:[%s1093] sm:$0xf] %vm427, %v1091
    %v1095 = vld [vmem:[%s655] sm:$0xff]
    %1096 = vrot.lane.b32.xlu0 %v1077, 32
    %v1097 = vpop.permute.xlu0 %1096
    %v1099 = vsel %vm144, %v1097, 0
    %1101 = vmatprep.subr.bf16.mxu0 0
    %1102 = vmatpush1.bf16.msra.mxu0 0
    %1103 = vmatprep.subr.bf16.mxu0 0
    %1104 = vmatpush1.bf16.msra.mxu0 0
    %1105 = vmatprep.subr.bf16.mxu0 0
    %1106 = vmatpush1.bf16.msra.mxu0 0
    %1107 = vmatprep.subr.bf16.mxu0 0
    %1108 = vmatpush1.bf16.msra.mxu0 0
    %1109 = vmatprep.subr.bf16.mxu0 0
    %1110 = vmatpush1.bf16.msra.mxu0 0
    %1111 = vmatprep.subr.bf16.mxu0 0
    %1112 = vmatpush1.bf16.msra.mxu0 0
    %1113 = vmatprep.subr.bf16.mxu0 0
    %1114 = vmatpush1.bf16.msra.mxu0 %v267
    %1115 = vmatprep.subr.bf16.mxu0 0
    %1116 = vmatpush1.bf16.msra.mxu0 %v266
    %1117 = vmatprep.subr.bf16.mxu0 0
    %1118 = vmatpush2.bf16.msra.mxu0 0
    %1119 = vmatprep.subr.bf16.mxu0 0
    %1120 = vmatpush2.bf16.msra.mxu0 0
    %1121 = vmatprep.subr.bf16.mxu0 0
    %1122 = vmatpush2.bf16.msra.mxu0 0
    %1123 = vmatprep.subr.bf16.mxu0 0
    %1124 = vmatpush2.bf16.msra.mxu0 0
    %1125 = vmatprep.subr.bf16.mxu0 0
    %1126 = vmatpush2.bf16.msra.mxu0 0
    %1127 = vmatprep.subr.bf16.mxu0 0
    %1128 = vmatpush2.bf16.msra.mxu0 0
    %1129 = vmatprep.subr.bf16.mxu0 0
    %1130 = vmatpush2.bf16.msra.mxu0 0
    %1131 = vmatprep.subr.bf16.mxu0 0
    %1132 = vmatpush2.bf16.msra.mxu0 0
    %1133 = vmatprep.mubr.bf16.mxu0 0
    %1134 = vmatmul.mubr.bf16.gmra.mxu0 %v1099
    %v1135 = vpop.f32.mrf.mxu0
    %v1136 = vadd.f32 0.0, %v1135
    %v1137 = vpop.f32.mrf.mxu0
    %v1138 = vpop.f32.mrf.mxu0
    %v1139 = vpop.f32.mrf.mxu0
    %1140 = vdwg.mxu0
    %v1141 = vadd.f32 %v1095, %v1136
    %v1142 = vld [vmem:[%s605 + $0x8] sm:$0xff]
    %1143 = vrot.lane.b32.xlu0 %v1078, 32
    %v1144 = vpop.permute.xlu0 %1143
    %v1146 = vsel %vm144, %v1144, 0
    %1148 = vmatprep.subr.bf16.mxu0 0
    %1149 = vmatpush1.bf16.msra.mxu0 0
    %1150 = vmatprep.subr.bf16.mxu0 0
    %1151 = vmatpush1.bf16.msra.mxu0 0
    %1152 = vmatprep.subr.bf16.mxu0 0
    %1153 = vmatpush1.bf16.msra.mxu0 0
    %1154 = vmatprep.subr.bf16.mxu0 0
    %1155 = vmatpush1.bf16.msra.mxu0 0
    %1156 = vmatprep.subr.bf16.mxu0 0
    %1157 = vmatpush1.bf16.msra.mxu0 0
    %1158 = vmatprep.subr.bf16.mxu0 0
    %1159 = vmatpush1.bf16.msra.mxu0 0
    %1160 = vmatprep.subr.bf16.mxu0 0
    %1161 = vmatpush1.bf16.msra.mxu0 %v327
    %1162 = vmatprep.subr.bf16.mxu0 0
    %1163 = vmatpush1.bf16.msra.mxu0 %v326
    %1164 = vmatprep.subr.bf16.mxu0 0
    %1165 = vmatpush2.bf16.msra.mxu0 0
    %1166 = vmatprep.subr.bf16.mxu0 0
    %1167 = vmatpush2.bf16.msra.mxu0 0
    %1168 = vmatprep.subr.bf16.mxu0 0
    %1169 = vmatpush2.bf16.msra.mxu0 0
    %1170 = vmatprep.subr.bf16.mxu0 0
    %1171 = vmatpush2.bf16.msra.mxu0 0
    %1172 = vmatprep.subr.bf16.mxu0 0
    %1173 = vmatpush2.bf16.msra.mxu0 0
    %1174 = vmatprep.subr.bf16.mxu0 0
    %1175 = vmatpush2.bf16.msra.mxu0 0
    %1176 = vmatprep.subr.bf16.mxu0 0
    %1177 = vmatpush2.bf16.msra.mxu0 0
    %1178 = vmatprep.subr.bf16.mxu0 0
    %1179 = vmatpush2.bf16.msra.mxu0 0
    %1180 = vmatprep.mubr.bf16.mxu0 0
    %1181 = vmatmul.mubr.bf16.gmra.mxu0 %v1146
    %v1182 = vpop.f32.mrf.mxu0
    %v1183 = vadd.f32 0.0, %v1182
    %v1184 = vpop.f32.mrf.mxu0
    %v1185 = vpop.f32.mrf.mxu0
    %v1186 = vpop.f32.mrf.mxu0
    %1187 = vdwg.mxu0
    %v1188 = vadd.f32 %v1142, %v1183
    %v1189 = vxor.u32 %v1141, 2147483648
    %v1190 = vmul.f32 %v1189, 1.442695
    %v1191 = vpow.pop %v1190
    %v1192 = vadd.f32 %v1191, 1.0
    %v1193 = vrcp.pop %v1192
    %v1194 = vmul.f32 1.0, %v1193
    %v1195 = vtanh.pop %v1141
    %v1196 = vmul.f32 %v1194, %v1046
    %1198 = vrot.lane.b32.xlu0 %v1195, 64
    %v1199 = vpop.permute.xlu0 %1198
    %v1201 = vmul.f32 %v1194, %v1199
    %1203 = vrot.lane.b32.xlu0 %v1201, 32
    %v1204 = vpop.permute.xlu0 %1203
    %v1206 = vadd.f32 %v1196, %v1204
    %v1207 = vtanh.pop %v1206
    %1209 = vrot.lane.b32.xlu0 %v1207, 64
    %v1210 = vpop.permute.xlu0 %1209
    %v1212 = vmul.f32 %v1194, %v1210
    %v1213 = vxor.u32 %v1188, 2147483648
    %v1214 = vmul.f32 %v1213, 1.442695
    %v1215 = vpow.pop %v1214
    %v1216 = vadd.f32 %v1215, 1.0
    %v1217 = vrcp.pop %v1216
    %v1218 = vmul.f32 1.0, %v1217
    %v1219 = vtanh.pop %v1188
    %v1220 = vmul.f32 %v1218, %v1070
    %1222 = vrot.lane.b32.xlu0 %v1219, 64
    %v1223 = vpop.permute.xlu0 %1222
    %v1225 = vmul.f32 %v1218, %v1223
    %1227 = vrot.lane.b32.xlu0 %v1225, 32
    %v1228 = vpop.permute.xlu0 %1227
    %v1230 = vadd.f32 %v1220, %v1228
    %v1231 = vtanh.pop %v1230
    %1233 = vrot.lane.b32.xlu0 %v1231, 64
    %v1234 = vpop.permute.xlu0 %1233
    %v1236 = vmul.f32 %v1218, %v1234
    %v1237 = vpack.c.bf16 %v1212, %v1212
    %v1238 = vpack.c.bf16 %v1236, %v1236
    %v1240 = vunpack.c.l.b16 %v1237
    %v1241 = vpack.c.b16 %v1240, %v1240
    %1242 = vrot.lane.b32.xlu0 %v1241, 32
    %v1243 = vpop.permute.xlu0 %1242
    %s1245 = scalar_lea.vmem [#allocation3], 20
    %1246 = vst.msk [vmem:[%s1245] sm:$0xf] %vm427, %v1243
    %v1248 = vunpack.c.l.b16 %v1238
    %v1249 = vpack.c.b16 %v1248, %v1248
    %1250 = vrot.lane.b32.xlu0 %v1249, 32
    %v1251 = vpop.permute.xlu0 %1250
    %s1253 = scalar_lea.vmem [#allocation4], 8
    %1254 = vst.msk [vmem:[%s1253] sm:$0xf] %vm427, %v1251
    %v1255 = vld [vmem:[%s489] sm:$0xff]
    %1256 = vrot.lane.b32.xlu0 %v1237, 32
    %v1257 = vpop.permute.xlu0 %1256
    %v1259 = vsel %vm144, %v1257, 0
    %1261 = vmatprep.subr.bf16.mxu0 0
    %1262 = vmatpush1.bf16.msra.mxu0 0
    %1263 = vmatprep.subr.bf16.mxu0 0
    %1264 = vmatpush1.bf16.msra.mxu0 0
    %1265 = vmatprep.subr.bf16.mxu0 0
    %1266 = vmatpush1.bf16.msra.mxu0 0
    %1267 = vmatprep.subr.bf16.mxu0 0
    %1268 = vmatpush1.bf16.msra.mxu0 0
    %1269 = vmatprep.subr.bf16.mxu0 0
    %1270 = vmatpush1.bf16.msra.mxu0 0
    %1271 = vmatprep.subr.bf16.mxu0 0
    %1272 = vmatpush1.bf16.msra.mxu0 0
    %1273 = vmatprep.subr.bf16.mxu0 0
    %1274 = vmatpush1.bf16.msra.mxu0 %v267
    %1275 = vmatprep.subr.bf16.mxu0 0
    %1276 = vmatpush1.bf16.msra.mxu0 %v266
    %1277 = vmatprep.subr.bf16.mxu0 0
    %1278 = vmatpush2.bf16.msra.mxu0 0
    %1279 = vmatprep.subr.bf16.mxu0 0
    %1280 = vmatpush2.bf16.msra.mxu0 0
    %1281 = vmatprep.subr.bf16.mxu0 0
    %1282 = vmatpush2.bf16.msra.mxu0 0
    %1283 = vmatprep.subr.bf16.mxu0 0
    %1284 = vmatpush2.bf16.msra.mxu0 0
    %1285 = vmatprep.subr.bf16.mxu0 0
    %1286 = vmatpush2.bf16.msra.mxu0 0
    %1287 = vmatprep.subr.bf16.mxu0 0
    %1288 = vmatpush2.bf16.msra.mxu0 0
    %1289 = vmatprep.subr.bf16.mxu0 0
    %1290 = vmatpush2.bf16.msra.mxu0 0
    %1291 = vmatprep.subr.bf16.mxu0 0
    %1292 = vmatpush2.bf16.msra.mxu0 0
    %1293 = vmatprep.mubr.bf16.mxu0 0
    %1294 = vmatmul.mubr.bf16.gmra.mxu0 %v1259
    %v1295 = vpop.f32.mrf.mxu0
    %v1296 = vadd.f32 0.0, %v1295
    %v1297 = vpop.f32.mrf.mxu0
    %v1298 = vpop.f32.mrf.mxu0
    %v1299 = vpop.f32.mrf.mxu0
    %1300 = vdwg.mxu0
    %v1301 = vadd.f32 %v1255, %v1296
    %v1302 = vld [vmem:[%s439 + $0x8] sm:$0xff]
    %1303 = vrot.lane.b32.xlu0 %v1238, 32
    %v1304 = vpop.permute.xlu0 %1303
    %v1306 = vsel %vm144, %v1304, 0
    %1308 = vmatprep.subr.bf16.mxu0 0
    %1309 = vmatpush1.bf16.msra.mxu0 0
    %1310 = vmatprep.subr.bf16.mxu0 0
    %1311 = vmatpush1.bf16.msra.mxu0 0
    %1312 = vmatprep.subr.bf16.mxu0 0
    %1313 = vmatpush1.bf16.msra.mxu0 0
    %1314 = vmatprep.subr.bf16.mxu0 0
    %1315 = vmatpush1.bf16.msra.mxu0 0
    %1316 = vmatprep.subr.bf16.mxu0 0
    %1317 = vmatpush1.bf16.msra.mxu0 0
    %1318 = vmatprep.subr.bf16.mxu0 0
    %1319 = vmatpush1.bf16.msra.mxu0 0
    %1320 = vmatprep.subr.bf16.mxu0 0
    %1321 = vmatpush1.bf16.msra.mxu0 %v327
    %1322 = vmatprep.subr.bf16.mxu0 0
    %1323 = vmatpush1.bf16.msra.mxu0 %v326
    %1324 = vmatprep.subr.bf16.mxu0 0
    %1325 = vmatpush2.bf16.msra.mxu0 0
    %1326 = vmatprep.subr.bf16.mxu0 0
    %1327 = vmatpush2.bf16.msra.mxu0 0
    %1328 = vmatprep.subr.bf16.mxu0 0
    %1329 = vmatpush2.bf16.msra.mxu0 0
    %1330 = vmatprep.subr.bf16.mxu0 0
    %1331 = vmatpush2.bf16.msra.mxu0 0
    %1332 = vmatprep.subr.bf16.mxu0 0
    %1333 = vmatpush2.bf16.msra.mxu0 0
    %1334 = vmatprep.subr.bf16.mxu0 0
    %1335 = vmatpush2.bf16.msra.mxu0 0
    %1336 = vmatprep.subr.bf16.mxu0 0
    %1337 = vmatpush2.bf16.msra.mxu0 0
    %1338 = vmatprep.subr.bf16.mxu0 0
    %1339 = vmatpush2.bf16.msra.mxu0 0
    %1340 = vmatprep.mubr.bf16.mxu0 0
    %1341 = vmatmul.mubr.bf16.gmra.mxu0 %v1306
    %v1342 = vpop.f32.mrf.mxu0
    %v1343 = vadd.f32 0.0, %v1342
    %v1344 = vpop.f32.mrf.mxu0
    %v1345 = vpop.f32.mrf.mxu0
    %v1346 = vpop.f32.mrf.mxu0
    %1347 = vdwg.mxu0
    %v1348 = vadd.f32 %v1302, %v1343
    %v1349 = vxor.u32 %v1301, 2147483648
    %v1350 = vmul.f32 %v1349, 1.442695
    %v1351 = vpow.pop %v1350
    %v1352 = vadd.f32 %v1351, 1.0
    %v1353 = vrcp.pop %v1352
    %v1354 = vmul.f32 1.0, %v1353
    %v1355 = vtanh.pop %v1301
    %v1356 = vmul.f32 %v1354, %v1206
    %1358 = vrot.lane.b32.xlu0 %v1355, 64
    %v1359 = vpop.permute.xlu0 %1358
    %v1361 = vmul.f32 %v1354, %v1359
    %1363 = vrot.lane.b32.xlu0 %v1361, 32
    %v1364 = vpop.permute.xlu0 %1363
    %v1366 = vadd.f32 %v1356, %v1364
    %v1367 = vtanh.pop %v1366
    %1369 = vrot.lane.b32.xlu0 %v1367, 64
    %v1370 = vpop.permute.xlu0 %1369
    %v1372 = vmul.f32 %v1354, %v1370
    %v1373 = vxor.u32 %v1348, 2147483648
    %v1374 = vmul.f32 %v1373, 1.442695
    %v1375 = vpow.pop %v1374
    %v1376 = vadd.f32 %v1375, 1.0
    %v1377 = vrcp.pop %v1376
    %v1378 = vmul.f32 1.0, %v1377
    %v1379 = vtanh.pop %v1348
    %v1380 = vmul.f32 %v1378, %v1230
    %1382 = vrot.lane.b32.xlu0 %v1379, 64
    %v1383 = vpop.permute.xlu0 %1382
    %v1385 = vmul.f32 %v1378, %v1383
    %1387 = vrot.lane.b32.xlu0 %v1385, 32
    %v1388 = vpop.permute.xlu0 %1387
    %v1390 = vadd.f32 %v1380, %v1388
    %v1391 = vtanh.pop %v1390
    %1393 = vrot.lane.b32.xlu0 %v1391, 64
    %v1394 = vpop.permute.xlu0 %1393
    %v1396 = vmul.f32 %v1378, %v1394
    %v1397 = vpack.c.bf16 %v1372, %v1372
    %v1398 = vpack.c.bf16 %v1396, %v1396
    %v1400 = vunpack.c.l.b16 %v1397
    %v1401 = vpack.c.b16 %v1400, %v1400
    %1402 = vrot.lane.b32.xlu0 %v1401, 32
    %v1403 = vpop.permute.xlu0 %1402
    %s1405 = scalar_lea.vmem [#allocation3], 24
    %1406 = vst.msk [vmem:[%s1405] sm:$0xf] %vm427, %v1403
    %v1408 = vunpack.c.l.b16 %v1398
    %v1409 = vpack.c.b16 %v1408, %v1408
    %1410 = vrot.lane.b32.xlu0 %v1409, 32
    %v1411 = vpop.permute.xlu0 %1410
    %s1413 = scalar_lea.vmem [#allocation4], 4
    %1414 = vst.msk [vmem:[%s1413] sm:$0xf] %vm427, %v1411
    %v1415 = vld [vmem:[%s316] sm:$0xff]
    %1416 = vrot.lane.b32.xlu0 %v1397, 32
    %v1417 = vpop.permute.xlu0 %1416
    %v1419 = vsel %vm144, %v1417, 0
    %1421 = vmatprep.subr.bf16.mxu0 0
    %1422 = vmatpush1.bf16.msra.mxu0 0
    %1423 = vmatprep.subr.bf16.mxu0 0
    %1424 = vmatpush1.bf16.msra.mxu0 0
    %1425 = vmatprep.subr.bf16.mxu0 0
    %1426 = vmatpush1.bf16.msra.mxu0 0
    %1427 = vmatprep.subr.bf16.mxu0 0
    %1428 = vmatpush1.bf16.msra.mxu0 0
    %1429 = vmatprep.subr.bf16.mxu0 0
    %1430 = vmatpush1.bf16.msra.mxu0 0
    %1431 = vmatprep.subr.bf16.mxu0 0
    %1432 = vmatpush1.bf16.msra.mxu0 0
    %1433 = vmatprep.subr.bf16.mxu0 0
    %1434 = vmatpush1.bf16.msra.mxu0 %v267
    %1435 = vmatprep.subr.bf16.mxu0 0
    %1436 = vmatpush1.bf16.msra.mxu0 %v266
    %1437 = vmatprep.subr.bf16.mxu0 0
    %1438 = vmatpush2.bf16.msra.mxu0 0
    %1439 = vmatprep.subr.bf16.mxu0 0
    %1440 = vmatpush2.bf16.msra.mxu0 0
    %1441 = vmatprep.subr.bf16.mxu0 0
    %1442 = vmatpush2.bf16.msra.mxu0 0
    %1443 = vmatprep.subr.bf16.mxu0 0
    %1444 = vmatpush2.bf16.msra.mxu0 0
    %1445 = vmatprep.subr.bf16.mxu0 0
    %1446 = vmatpush2.bf16.msra.mxu0 0
    %1447 = vmatprep.subr.bf16.mxu0 0
    %1448 = vmatpush2.bf16.msra.mxu0 0
    %1449 = vmatprep.subr.bf16.mxu0 0
    %1450 = vmatpush2.bf16.msra.mxu0 0
    %1451 = vmatprep.subr.bf16.mxu0 0
    %1452 = vmatpush2.bf16.msra.mxu0 0
    %1453 = vmatprep.mubr.bf16.mxu0 0
    %1454 = vmatmul.mubr.bf16.gmra.mxu0 %v1419
    %v1455 = vpop.f32.mrf.mxu0
    %v1456 = vadd.f32 0.0, %v1455
    %v1457 = vpop.f32.mrf.mxu0
    %v1458 = vpop.f32.mrf.mxu0
    %v1459 = vpop.f32.mrf.mxu0
    %1460 = vdwg.mxu0
    %v1461 = vadd.f32 %v1415, %v1456
    %v1462 = vld [vmem:[%s256 + $0x8] sm:$0xff]
    %1463 = vrot.lane.b32.xlu0 %v1398, 32
    %v1464 = vpop.permute.xlu0 %1463
    %v1466 = vsel %vm144, %v1464, 0
    %1468 = vmatprep.subr.bf16.mxu0 0
    %1469 = vmatpush1.bf16.msra.mxu0 0
    %1470 = vmatprep.subr.bf16.mxu0 0
    %1471 = vmatpush1.bf16.msra.mxu0 0
    %1472 = vmatprep.subr.bf16.mxu0 0
    %1473 = vmatpush1.bf16.msra.mxu0 0
    %1474 = vmatprep.subr.bf16.mxu0 0
    %1475 = vmatpush1.bf16.msra.mxu0 0
    %1476 = vmatprep.subr.bf16.mxu0 0
    %1477 = vmatpush1.bf16.msra.mxu0 0
    %1478 = vmatprep.subr.bf16.mxu0 0
    %1479 = vmatpush1.bf16.msra.mxu0 0
    %1480 = vmatprep.subr.bf16.mxu0 0
    %1481 = vmatpush1.bf16.msra.mxu0 %v327
    %1482 = vmatprep.subr.bf16.mxu0 0
    %1483 = vmatpush1.bf16.msra.mxu0 %v326
    %1484 = vmatprep.subr.bf16.mxu0 0
    %1485 = vmatpush2.bf16.msra.mxu0 0
    %1486 = vmatprep.subr.bf16.mxu0 0
    %1487 = vmatpush2.bf16.msra.mxu0 0
    %1488 = vmatprep.subr.bf16.mxu0 0
    %1489 = vmatpush2.bf16.msra.mxu0 0
    %1490 = vmatprep.subr.bf16.mxu0 0
    %1491 = vmatpush2.bf16.msra.mxu0 0
    %1492 = vmatprep.subr.bf16.mxu0 0
    %1493 = vmatpush2.bf16.msra.mxu0 0
    %1494 = vmatprep.subr.bf16.mxu0 0
    %1495 = vmatpush2.bf16.msra.mxu0 0
    %1496 = vmatprep.subr.bf16.mxu0 0
    %1497 = vmatpush2.bf16.msra.mxu0 0
    %1498 = vmatprep.subr.bf16.mxu0 0
    %1499 = vmatpush2.bf16.msra.mxu0 0
    %1500 = vmatprep.mubr.bf16.mxu0 0
    %1501 = vmatmul.mubr.bf16.gmra.mxu0 %v1466
    %v1502 = vpop.f32.mrf.mxu0
    %v1503 = vadd.f32 0.0, %v1502
    %v1504 = vpop.f32.mrf.mxu0
    %v1505 = vpop.f32.mrf.mxu0
    %v1506 = vpop.f32.mrf.mxu0
    %1507 = vdwg.mxu0
    %v1508 = vadd.f32 %v1462, %v1503
    %v1509 = vxor.u32 %v1461, 2147483648
    %v1510 = vmul.f32 %v1509, 1.442695
    %v1511 = vpow.pop %v1510
    %v1512 = vadd.f32 %v1511, 1.0
    %v1513 = vrcp.pop %v1512
    %v1514 = vmul.f32 1.0, %v1513
    %v1515 = vtanh.pop %v1461
    %v1516 = vmul.f32 %v1514, %v1366
    %1518 = vrot.lane.b32.xlu0 %v1515, 64
    %v1519 = vpop.permute.xlu0 %1518
    %v1521 = vmul.f32 %v1514, %v1519
    %1523 = vrot.lane.b32.xlu0 %v1521, 32
    %v1524 = vpop.permute.xlu0 %1523
    %v1526 = vadd.f32 %v1516, %v1524
    %v1527 = vtanh.pop %v1526
    %1529 = vrot.lane.b32.xlu0 %v1527, 64
    %v1530 = vpop.permute.xlu0 %1529
    %v1532 = vmul.f32 %v1514, %v1530
    %v1533 = vxor.u32 %v1508, 2147483648
    %v1534 = vmul.f32 %v1533, 1.442695
    %v1535 = vpow.pop %v1534
    %v1536 = vadd.f32 %v1535, 1.0
    %v1537 = vrcp.pop %v1536
    %v1538 = vmul.f32 1.0, %v1537
    %v1539 = vtanh.pop %v1508
    %v1540 = vmul.f32 %v1538, %v1390
    %1542 = vrot.lane.b32.xlu0 %v1539, 64
    %v1543 = vpop.permute.xlu0 %1542
    %v1545 = vmul.f32 %v1538, %v1543
    %1547 = vrot.lane.b32.xlu0 %v1545, 32
    %v1548 = vpop.permute.xlu0 %1547
    %v1550 = vadd.f32 %v1540, %v1548
    %v1551 = vtanh.pop %v1550
    %1553 = vrot.lane.b32.xlu0 %v1551, 64
    %v1554 = vpop.permute.xlu0 %1553
    %v1556 = vmul.f32 %v1538, %v1554
    %v1557 = vpack.c.bf16 %v1532, %v1532
    %v1558 = vpack.c.bf16 %v1556, %v1556
    %v1560 = vunpack.c.l.b16 %v1557
    %v1561 = vpack.c.b16 %v1560, %v1560
    %1562 = vrot.lane.b32.xlu0 %v1561, 32
    %v1563 = vpop.permute.xlu0 %1562
    %s1565 = scalar_lea.vmem [#allocation3], 28
    %1566 = vst.msk [vmem:[%s1565] sm:$0xf] %vm427, %v1563
    %v1568 = vunpack.c.l.b16 %v1558
    %v1569 = vpack.c.b16 %v1568, %v1568
    %1570 = vrot.lane.b32.xlu0 %v1569, 32
    %v1571 = vpop.permute.xlu0 %1570
    %1573 = vst.msk [vmem:[#allocation4] sm:$0xf] %vm427, %v1571
    %v1574 = vld [vmem:[#allocation3] sm:$0xf]
    %v1575 = vld [vmem:[#allocation3 + $0x4] sm:$0xf]
    %v1576 = vld [vmem:[#allocation3 + $0x8] sm:$0xf]
    %v1577 = vld [vmem:[#allocation3 + $0xc] sm:$0xf]
    %v1578 = vld [vmem:[#allocation3 + $0x10] sm:$0xf]
    %v1579 = vld [vmem:[#allocation3 + $0x14] sm:$0xf]
    %v1580 = vld [vmem:[#allocation3 + $0x18] sm:$0xf]
    %v1581 = vld [vmem:[#allocation3 + $0x1c] sm:$0xf]
    %v1582 = vld [vmem:[%s5] sm:$0xff]
    %v1583 = vld [vmem:[%s5 + $0x8] sm:$0xff]
    %v1584 = vld [vmem:[%s5 + $0x10] sm:$0xff]
    %v1585 = vld [vmem:[%s5 + $0x18] sm:$0xff]
    %v1586 = vld [vmem:[#allocation4] sm:$0xf]
    %v1587 = vld [vmem:[#allocation4 + $0x4] sm:$0xf]
    %v1588 = vld [vmem:[#allocation4 + $0x8] sm:$0xf]
    %v1589 = vld [vmem:[#allocation4 + $0xc] sm:$0xf]
    %v1590 = vld [vmem:[#allocation4 + $0x10] sm:$0xf]
    %v1591 = vld [vmem:[#allocation4 + $0x14] sm:$0xf]
    %v1592 = vld [vmem:[#allocation4 + $0x18] sm:$0xf]
    %v1593 = vld [vmem:[#allocation4 + $0x1c] sm:$0xf]
    %v1594 = vld [vmem:[%s5 + $0x20] sm:$0xff]
    %v1595 = vld [vmem:[%s5 + $0x28] sm:$0xff]
    %v1596 = vld [vmem:[%s5 + $0x30] sm:$0xff]
    %v1597 = vld [vmem:[%s5 + $0x38] sm:$0xff]
    %v1606 = vunpack.c.l.b16 %v1586
    %v1607 = vunpack.c.l.b16 %v1587
    %v1608 = vunpack.c.l.b16 %v1588
    %v1609 = vunpack.c.l.b16 %v1589
    %v1610 = vunpack.c.l.b16 %v1590
    %v1611 = vunpack.c.l.b16 %v1591
    %v1612 = vunpack.c.l.b16 %v1592
    %v1613 = vunpack.c.l.b16 %v1593
    %v1614 = vpack.c.b16 %v1607, %v1606
    %v1615 = vpack.c.b16 %v1609, %v1608
    %v1616 = vpack.c.b16 %v1611, %v1610
    %v1617 = vpack.c.b16 %v1613, %v1612
    %v1622 = vunpack.c.l.b16 %v1594
    %v1623 = vunpack.c.h.b16 %v1594
    %v1624 = vunpack.c.l.b16 %v1595
    %v1625 = vunpack.c.h.b16 %v1595
    %v1626 = vunpack.c.l.b16 %v1596
    %v1627 = vunpack.c.h.b16 %v1596
    %v1628 = vunpack.c.l.b16 %v1597
    %v1629 = vunpack.c.h.b16 %v1597
    %v1630 = vpack.c.b16 %v1624, %v1622
    %v1631 = vpack.c.b16 %v1625, %v1623
    %v1632 = vpack.c.b16 %v1628, %v1626
    %v1633 = vpack.c.b16 %v1629, %v1627
    %v1639 = vsel %vm144, %v1614, 0
    %v1642 = vsel %vm144, %v1615, 0
    %v1645 = vsel %vm144, %v1616, 0
    %v1648 = vsel %vm144, %v1617, 0
    %1650 = vmatprep.subr.bf16.mxu0 0
    %1651 = vmatpush1.bf16.msra.mxu0 0
    %1652 = vmatprep.subr.bf16.mxu0 0
    %1653 = vmatpush1.bf16.msra.mxu0 0
    %1654 = vmatprep.subr.bf16.mxu0 0
    %1655 = vmatpush1.bf16.msra.mxu0 0
    %1656 = vmatprep.subr.bf16.mxu0 0
    %1657 = vmatpush1.bf16.msra.mxu0 0
    %1658 = vmatprep.subr.bf16.mxu0 0
    %1659 = vmatpush1.bf16.msra.mxu0 0
    %1660 = vmatprep.subr.bf16.mxu0 0
    %1661 = vmatpush1.bf16.msra.mxu0 0
    %1662 = vmatprep.subr.bf16.mxu0 %v1633
    %1663 = vmatpush1.bf16.msra.mxu0 %v1632
    %1664 = vmatprep.subr.bf16.mxu0 %v1631
    %1665 = vmatpush1.bf16.msra.mxu0 %v1630
    %1666 = vmatprep.subr.bf16.mxu0 0
    %1667 = vmatpush2.bf16.msra.mxu0 0
    %1668 = vmatprep.subr.bf16.mxu0 0
    %1669 = vmatpush2.bf16.msra.mxu0 0
    %1670 = vmatprep.subr.bf16.mxu0 0
    %1671 = vmatpush2.bf16.msra.mxu0 0
    %1672 = vmatprep.subr.bf16.mxu0 0
    %1673 = vmatpush2.bf16.msra.mxu0 0
    %1674 = vmatprep.subr.bf16.mxu0 0
    %1675 = vmatpush2.bf16.msra.mxu0 0
    %1676 = vmatprep.subr.bf16.mxu0 0
    %1677 = vmatpush2.bf16.msra.mxu0 0
    %1678 = vmatprep.subr.bf16.mxu0 0
    %1679 = vmatpush2.bf16.msra.mxu0 0
    %1680 = vmatprep.subr.bf16.mxu0 0
    %1681 = vmatpush2.bf16.msra.mxu0 0
    %1682 = vmatprep.mubr.bf16.mxu0 0
    %1683 = vmatmul.mubr.bf16.gmra.mxu0 %v1639
    %v1684 = vpop.f32.mrf.mxu0
    %v1685 = vadd.f32 0.0, %v1684
    %v1686 = vpop.f32.mrf.mxu0
    %v1687 = vadd.f32 0.0, %v1686
    %v1688 = vpop.f32.mrf.mxu0
    %v1689 = vadd.f32 0.0, %v1688
    %v1690 = vpop.f32.mrf.mxu0
    %v1691 = vadd.f32 0.0, %v1690
    %1692 = vmatprep.mubr.bf16.mxu0 0
    %1693 = vmatmul.mubr.bf16.gmra.mxu0 %v1642
    %v1694 = vpop.f32.mrf.mxu0
    %v1695 = vadd.f32 0.0, %v1694
    %v1696 = vpop.f32.mrf.mxu0
    %v1697 = vadd.f32 0.0, %v1696
    %v1698 = vpop.f32.mrf.mxu0
    %v1699 = vadd.f32 0.0, %v1698
    %v1700 = vpop.f32.mrf.mxu0
    %v1701 = vadd.f32 0.0, %v1700
    %1702 = vmatprep.mubr.bf16.mxu0 0
    %1703 = vmatmul.mubr.bf16.gmra.mxu0 %v1645
    %v1704 = vpop.f32.mrf.mxu0
    %v1705 = vadd.f32 0.0, %v1704
    %v1706 = vpop.f32.mrf.mxu0
    %v1707 = vadd.f32 0.0, %v1706
    %v1708 = vpop.f32.mrf.mxu0
    %v1709 = vadd.f32 0.0, %v1708
    %v1710 = vpop.f32.mrf.mxu0
    %v1711 = vadd.f32 0.0, %v1710
    %1712 = vmatprep.mubr.bf16.mxu0 0
    %1713 = vmatmul.mubr.bf16.gmra.mxu0 %v1648
    %v1714 = vpop.f32.mrf.mxu0
    %v1715 = vadd.f32 0.0, %v1714
    %v1716 = vpop.f32.mrf.mxu0
    %v1717 = vadd.f32 0.0, %v1716
    %v1718 = vpop.f32.mrf.mxu0
    %v1719 = vadd.f32 0.0, %v1718
    %v1720 = vpop.f32.mrf.mxu0
    %v1721 = vadd.f32 0.0, %v1720
    %1722 = vdwg.mxu0
    %v1731 = vunpack.c.l.b16 %v1574
    %v1732 = vunpack.c.l.b16 %v1575
    %v1733 = vunpack.c.l.b16 %v1576
    %v1734 = vunpack.c.l.b16 %v1577
    %v1735 = vunpack.c.l.b16 %v1578
    %v1736 = vunpack.c.l.b16 %v1579
    %v1737 = vunpack.c.l.b16 %v1580
    %v1738 = vunpack.c.l.b16 %v1581
    %v1739 = vpack.c.b16 %v1732, %v1731
    %v1740 = vpack.c.b16 %v1734, %v1733
    %v1741 = vpack.c.b16 %v1736, %v1735
    %v1742 = vpack.c.b16 %v1738, %v1737
    %v1747 = vunpack.c.l.b16 %v1582
    %v1748 = vunpack.c.h.b16 %v1582
    %v1749 = vunpack.c.l.b16 %v1583
    %v1750 = vunpack.c.h.b16 %v1583
    %v1751 = vunpack.c.l.b16 %v1584
    %v1752 = vunpack.c.h.b16 %v1584
    %v1753 = vunpack.c.l.b16 %v1585
    %v1754 = vunpack.c.h.b16 %v1585
    %v1755 = vpack.c.b16 %v1749, %v1747
    %v1756 = vpack.c.b16 %v1750, %v1748
    %v1757 = vpack.c.b16 %v1753, %v1751
    %v1758 = vpack.c.b16 %v1754, %v1752
    %v1764 = vsel %vm144, %v1739, 0
    %v1767 = vsel %vm144, %v1740, 0
    %v1770 = vsel %vm144, %v1741, 0
    %v1773 = vsel %vm144, %v1742, 0
    %1775 = vmatprep.subr.bf16.mxu0 0
    %1776 = vmatpush1.bf16.msra.mxu0 0
    %1777 = vmatprep.subr.bf16.mxu0 0
    %1778 = vmatpush1.bf16.msra.mxu0 0
    %1779 = vmatprep.subr.bf16.mxu0 0
    %1780 = vmatpush1.bf16.msra.mxu0 0
    %1781 = vmatprep.subr.bf16.mxu0 0
    %1782 = vmatpush1.bf16.msra.mxu0 0
    %1783 = vmatprep.subr.bf16.mxu0 0
    %1784 = vmatpush1.bf16.msra.mxu0 0
    %1785 = vmatprep.subr.bf16.mxu0 0
    %1786 = vmatpush1.bf16.msra.mxu0 0
    %1787 = vmatprep.subr.bf16.mxu0 %v1758
    %1788 = vmatpush1.bf16.msra.mxu0 %v1757
    %1789 = vmatprep.subr.bf16.mxu0 %v1756
    %1790 = vmatpush1.bf16.msra.mxu0 %v1755
    %1791 = vmatprep.subr.bf16.mxu0 0
    %1792 = vmatpush2.bf16.msra.mxu0 0
    %1793 = vmatprep.subr.bf16.mxu0 0
    %1794 = vmatpush2.bf16.msra.mxu0 0
    %1795 = vmatprep.subr.bf16.mxu0 0
    %1796 = vmatpush2.bf16.msra.mxu0 0
    %1797 = vmatprep.subr.bf16.mxu0 0
    %1798 = vmatpush2.bf16.msra.mxu0 0
    %1799 = vmatprep.subr.bf16.mxu0 0
    %1800 = vmatpush2.bf16.msra.mxu0 0
    %1801 = vmatprep.subr.bf16.mxu0 0
    %1802 = vmatpush2.bf16.msra.mxu0 0
    %1803 = vmatprep.subr.bf16.mxu0 0
    %1804 = vmatpush2.bf16.msra.mxu0 0
    %1805 = vmatprep.subr.bf16.mxu0 0
    %1806 = vmatpush2.bf16.msra.mxu0 0
    %1807 = vmatprep.mubr.bf16.mxu0 0
    %1808 = vmatmul.mubr.bf16.gmra.mxu0 %v1764
    %v1809 = vpop.f32.mrf.mxu0
    %v1810 = vadd.f32 %v1685, %v1809
    %v1811 = vpop.f32.mrf.mxu0
    %v1812 = vadd.f32 %v1687, %v1811
    %v1813 = vpop.f32.mrf.mxu0
    %v1814 = vadd.f32 %v1689, %v1813
    %v1815 = vpop.f32.mrf.mxu0
    %v1816 = vadd.f32 %v1691, %v1815
    %1817 = vmatprep.mubr.bf16.mxu0 0
    %1818 = vmatmul.mubr.bf16.gmra.mxu0 %v1767
    %v1819 = vpop.f32.mrf.mxu0
    %v1820 = vadd.f32 %v1695, %v1819
    %v1821 = vpop.f32.mrf.mxu0
    %v1822 = vadd.f32 %v1697, %v1821
    %v1823 = vpop.f32.mrf.mxu0
    %v1824 = vadd.f32 %v1699, %v1823
    %v1825 = vpop.f32.mrf.mxu0
    %v1826 = vadd.f32 %v1701, %v1825
    %1827 = vmatprep.mubr.bf16.mxu0 0
    %1828 = vmatmul.mubr.bf16.gmra.mxu0 %v1770
    %v1829 = vpop.f32.mrf.mxu0
    %v1830 = vadd.f32 %v1705, %v1829
    %v1831 = vpop.f32.mrf.mxu0
    %v1832 = vadd.f32 %v1707, %v1831
    %v1833 = vpop.f32.mrf.mxu0
    %v1834 = vadd.f32 %v1709, %v1833
    %v1835 = vpop.f32.mrf.mxu0
    %v1836 = vadd.f32 %v1711, %v1835
    %1837 = vmatprep.mubr.bf16.mxu0 0
    %1838 = vmatmul.mubr.bf16.gmra.mxu0 %v1773
    %v1839 = vpop.f32.mrf.mxu0
    %v1840 = vadd.f32 %v1715, %v1839
    %v1841 = vpop.f32.mrf.mxu0
    %v1842 = vadd.f32 %v1717, %v1841
    %v1843 = vpop.f32.mrf.mxu0
    %v1844 = vadd.f32 %v1719, %v1843
    %v1845 = vpop.f32.mrf.mxu0
    %v1846 = vadd.f32 %v1721, %v1845
    %1847 = vdwg.mxu0
    %v1848 = vld [vmem:[%s8] sm:$0x3]
    %v1850 = vlaneseq
    %v1851 = vshrl.u32 %v1850, 7
    %v1852 = vsub.s32 0, %v1851
    %v1853 = vrot.slane %v1848, %v1852
    %v1854 = vlaneseq
    %v1855 = vshrl.u32 %v1854, 7
    %v1856 = vsub.s32 1, %v1855
    %v1857 = vrot.slane %v1848, %v1856
    %v1860 = vadd.f32 %v1810, %v1853
    %v1861 = vadd.f32 %v1812, %v1857
    %v1862 = vadd.f32 %v1814, %v1853
    %v1863 = vadd.f32 %v1816, %v1857
    %v1864 = vadd.f32 %v1820, %v1853
    %v1865 = vadd.f32 %v1822, %v1857
    %v1866 = vadd.f32 %v1824, %v1853
    %v1867 = vadd.f32 %v1826, %v1857
    %v1868 = vadd.f32 %v1830, %v1853
    %v1869 = vadd.f32 %v1832, %v1857
    %v1870 = vadd.f32 %v1834, %v1853
    %v1871 = vadd.f32 %v1836, %v1857
    %v1872 = vadd.f32 %v1840, %v1853
    %v1873 = vadd.f32 %v1842, %v1857
    %v1874 = vadd.f32 %v1844, %v1853
    %v1875 = vadd.f32 %v1846, %v1857
    %1876 = vst [vmem:[#allocation2] sm:$0xff] %v1860
    %1877 = vst [vmem:[#allocation2 + $0x8] sm:$0xff] %v1861
    %1878 = vst [vmem:[#allocation2 + $0x10] sm:$0xff] %v1862
    %1879 = vst [vmem:[#allocation2 + $0x18] sm:$0xff] %v1863
    %1880 = vst [vmem:[#allocation2 + $0x20] sm:$0xff] %v1864
    %1881 = vst [vmem:[#allocation2 + $0x28] sm:$0xff] %v1865
    %1882 = vst [vmem:[#allocation2 + $0x30] sm:$0xff] %v1866
    %1883 = vst [vmem:[#allocation2 + $0x38] sm:$0xff] %v1867
    %1884 = vst [vmem:[#allocation2 + $0x40] sm:$0xff] %v1868
    %1885 = vst [vmem:[#allocation2 + $0x48] sm:$0xff] %v1869
    %1886 = vst [vmem:[#allocation2 + $0x50] sm:$0xff] %v1870
    %1887 = vst [vmem:[#allocation2 + $0x58] sm:$0xff] %v1871
    %1888 = vst [vmem:[#allocation2 + $0x60] sm:$0xff] %v1872
    %1889 = vst [vmem:[#allocation2 + $0x68] sm:$0xff] %v1873
    %1890 = vst [vmem:[#allocation2 + $0x70] sm:$0xff] %v1874
    %1891 = vst [vmem:[#allocation2 + $0x78] sm:$0xff] %v1875
    %v1892 = vld [vmem:[#allocation7] sm:$0xf]
    %v1893 = vld [vmem:[#allocation7 + $0x4] sm:$0xf]
    %v1894 = vld [vmem:[#allocation7 + $0x8] sm:$0xf]
    %v1895 = vld [vmem:[#allocation7 + $0xc] sm:$0xf]
    %v1896 = vld [vmem:[#allocation9] sm:$0xf]
    %v1897 = vld [vmem:[#allocation9 + $0x4] sm:$0xf]
    %v1898 = vld [vmem:[#allocation9 + $0x8] sm:$0xf]
    %v1899 = vld [vmem:[#allocation9 + $0xc] sm:$0xf]
    %v1900 = vld [vmem:[%s256] sm:$0xff]
    %v1905 = vunpack.c.l.b16 %v1892
    %v1906 = vunpack.c.l.b16 %v1893
    %v1907 = vunpack.c.l.b16 %v1894
    %v1908 = vunpack.c.l.b16 %v1895
    %v1909 = vpack.c.b16 %v1906, %v1905
    %v1910 = vpack.c.b16 %v1908, %v1907
    %1913 = vmatprep.subr.bf16.mxu0 0
    %1914 = vmatpush1.bf16.msra.mxu0 0
    %1915 = vmatprep.subr.bf16.mxu0 0
    %1916 = vmatpush1.bf16.msra.mxu0 0
    %1917 = vmatprep.subr.bf16.mxu0 0
    %1918 = vmatpush1.bf16.msra.mxu0 0
    %1919 = vmatprep.subr.bf16.mxu0 0
    %1920 = vmatpush1.bf16.msra.mxu0 0
    %1921 = vmatprep.subr.bf16.mxu0 0
    %1922 = vmatpush1.bf16.msra.mxu0 0
    %1923 = vmatprep.subr.bf16.mxu0 0
    %1924 = vmatpush1.bf16.msra.mxu0 0
    %1925 = vmatprep.subr.bf16.mxu0 0
    %1926 = vmatpush1.bf16.msra.mxu0 %v1910
    %1927 = vmatprep.subr.bf16.mxu0 0
    %1928 = vmatpush1.bf16.msra.mxu0 %v1909
    %1929 = vmatprep.subr.bf16.mxu0 0
    %1930 = vmatpush2.bf16.msra.mxu0 0
    %1931 = vmatprep.subr.bf16.mxu0 0
    %1932 = vmatpush2.bf16.msra.mxu0 0
    %1933 = vmatprep.subr.bf16.mxu0 0
    %1934 = vmatpush2.bf16.msra.mxu0 0
    %1935 = vmatprep.subr.bf16.mxu0 0
    %1936 = vmatpush2.bf16.msra.mxu0 0
    %1937 = vmatprep.subr.bf16.mxu0 0
    %1938 = vmatpush2.bf16.msra.mxu0 0
    %1939 = vmatprep.subr.bf16.mxu0 0
    %1940 = vmatpush2.bf16.msra.mxu0 0
    %1941 = vmatprep.subr.bf16.mxu0 0
    %1942 = vmatpush2.bf16.msra.mxu0 0
    %1943 = vmatprep.subr.bf16.mxu0 0
    %1944 = vmatpush2.bf16.msra.mxu0 0
    %1945 = vmatprep.mubr.bf16.mxu0 0
    %1946 = vmatmul.mubr.bf16.gmra.mxu0 %v271
    %v1947 = vpop.f32.mrf.mxu0
    %v1948 = vadd.f32 0.0, %v1947
    %v1949 = vpop.f32.mrf.mxu0
    %v1950 = vpop.f32.mrf.mxu0
    %v1951 = vpop.f32.mrf.mxu0
    %1952 = vdwg.mxu0
    %v1953 = vadd.f32 %v1900, %v1948
    %v1954 = vld [vmem:[%s316 + $0x8] sm:$0xff]
    %v1959 = vunpack.c.l.b16 %v1896
    %v1960 = vunpack.c.l.b16 %v1897
    %v1961 = vunpack.c.l.b16 %v1898
    %v1962 = vunpack.c.l.b16 %v1899
    %v1963 = vpack.c.b16 %v1960, %v1959
    %v1964 = vpack.c.b16 %v1962, %v1961
    %1967 = vmatprep.subr.bf16.mxu0 0
    %1968 = vmatpush1.bf16.msra.mxu0 0
    %1969 = vmatprep.subr.bf16.mxu0 0
    %1970 = vmatpush1.bf16.msra.mxu0 0
    %1971 = vmatprep.subr.bf16.mxu0 0
    %1972 = vmatpush1.bf16.msra.mxu0 0
    %1973 = vmatprep.subr.bf16.mxu0 0
    %1974 = vmatpush1.bf16.msra.mxu0 0
    %1975 = vmatprep.subr.bf16.mxu0 0
    %1976 = vmatpush1.bf16.msra.mxu0 0
    %1977 = vmatprep.subr.bf16.mxu0 0
    %1978 = vmatpush1.bf16.msra.mxu0 0
    %1979 = vmatprep.subr.bf16.mxu0 0
    %1980 = vmatpush1.bf16.msra.mxu0 %v1964
    %1981 = vmatprep.subr.bf16.mxu0 0
    %1982 = vmatpush1.bf16.msra.mxu0 %v1963
    %1983 = vmatprep.subr.bf16.mxu0 0
    %1984 = vmatpush2.bf16.msra.mxu0 0
    %1985 = vmatprep.subr.bf16.mxu0 0
    %1986 = vmatpush2.bf16.msra.mxu0 0
    %1987 = vmatprep.subr.bf16.mxu0 0
    %1988 = vmatpush2.bf16.msra.mxu0 0
    %1989 = vmatprep.subr.bf16.mxu0 0
    %1990 = vmatpush2.bf16.msra.mxu0 0
    %1991 = vmatprep.subr.bf16.mxu0 0
    %1992 = vmatpush2.bf16.msra.mxu0 0
    %1993 = vmatprep.subr.bf16.mxu0 0
    %1994 = vmatpush2.bf16.msra.mxu0 0
    %1995 = vmatprep.subr.bf16.mxu0 0
    %1996 = vmatpush2.bf16.msra.mxu0 0
    %1997 = vmatprep.subr.bf16.mxu0 0
    %1998 = vmatpush2.bf16.msra.mxu0 0
    %1999 = vmatprep.mubr.bf16.mxu0 0
    %2000 = vmatmul.mubr.bf16.gmra.mxu0 %v271
    %v2001 = vpop.f32.mrf.mxu0
    %v2002 = vadd.f32 0.0, %v2001
    %v2003 = vpop.f32.mrf.mxu0
    %v2004 = vpop.f32.mrf.mxu0
    %v2005 = vpop.f32.mrf.mxu0
    %2006 = vdwg.mxu0
    %v2007 = vadd.f32 %v1954, %v2002
    %v2008 = vxor.u32 %v1953, 2147483648
    %v2009 = vmul.f32 %v2008, 1.442695
    %v2010 = vpow.pop %v2009
    %v2011 = vadd.f32 %v2010, 1.0
    %v2012 = vrcp.pop %v2011
    %v2013 = vmul.f32 1.0, %v2012
    %v2014 = vtanh.pop %v1953
    %v2015 = vmul.f32 %v2013, 0.0
    %2017 = vrot.lane.b32.xlu0 %v2014, 64
    %v2018 = vpop.permute.xlu0 %2017
    %v2020 = vmul.f32 %v2013, %v2018
    %2022 = vrot.lane.b32.xlu0 %v2020, 32
    %v2023 = vpop.permute.xlu0 %2022
    %v2025 = vadd.f32 %v2015, %v2023
    %v2026 = vtanh.pop %v2025
    %2028 = vrot.lane.b32.xlu0 %v2026, 64
    %v2029 = vpop.permute.xlu0 %2028
    %v2031 = vmul.f32 %v2013, %v2029
    %v2032 = vxor.u32 %v2007, 2147483648
    %v2033 = vmul.f32 %v2032, 1.442695
    %v2034 = vpow.pop %v2033
    %v2035 = vadd.f32 %v2034, 1.0
    %v2036 = vrcp.pop %v2035
    %v2037 = vmul.f32 1.0, %v2036
    %v2038 = vtanh.pop %v2007
    %v2039 = vmul.f32 %v2037, 0.0
    %2041 = vrot.lane.b32.xlu0 %v2038, 64
    %v2042 = vpop.permute.xlu0 %2041
    %v2044 = vmul.f32 %v2037, %v2042
    %2046 = vrot.lane.b32.xlu0 %v2044, 32
    %v2047 = vpop.permute.xlu0 %2046
    %v2049 = vadd.f32 %v2039, %v2047
    %v2050 = vtanh.pop %v2049
    %2052 = vrot.lane.b32.xlu0 %v2050, 64
    %v2053 = vpop.permute.xlu0 %2052
    %v2055 = vmul.f32 %v2037, %v2053
    %v2056 = vpack.c.bf16 %v2031, %v2031
    %v2057 = vpack.c.bf16 %v2055, %v2055
    %v2059 = vunpack.c.l.b16 %v2056
    %v2060 = vpack.c.b16 %v2059, %v2059
    %2061 = vrot.lane.b32.xlu0 %v2060, 32
    %v2062 = vpop.permute.xlu0 %2061
    %2064 = vst.msk [vmem:[#allocation3] sm:$0xf] %vm427, %v2062
    %v2066 = vunpack.c.l.b16 %v2057
    %v2067 = vpack.c.b16 %v2066, %v2066
    %2068 = vrot.lane.b32.xlu0 %v2067, 32
    %v2069 = vpop.permute.xlu0 %2068
    %2071 = vst.msk [vmem:[%s435] sm:$0xf] %vm427, %v2069
    %v2072 = vld [vmem:[%s439] sm:$0xff]
    %2073 = vrot.lane.b32.xlu0 %v2056, 32
    %v2074 = vpop.permute.xlu0 %2073
    %v2076 = vsel %vm144, %v2074, 0
    %2078 = vmatprep.subr.bf16.mxu0 0
    %2079 = vmatpush1.bf16.msra.mxu0 0
    %2080 = vmatprep.subr.bf16.mxu0 0
    %2081 = vmatpush1.bf16.msra.mxu0 0
    %2082 = vmatprep.subr.bf16.mxu0 0
    %2083 = vmatpush1.bf16.msra.mxu0 0
    %2084 = vmatprep.subr.bf16.mxu0 0
    %2085 = vmatpush1.bf16.msra.mxu0 0
    %2086 = vmatprep.subr.bf16.mxu0 0
    %2087 = vmatpush1.bf16.msra.mxu0 0
    %2088 = vmatprep.subr.bf16.mxu0 0
    %2089 = vmatpush1.bf16.msra.mxu0 0
    %2090 = vmatprep.subr.bf16.mxu0 0
    %2091 = vmatpush1.bf16.msra.mxu0 %v1910
    %2092 = vmatprep.subr.bf16.mxu0 0
    %2093 = vmatpush1.bf16.msra.mxu0 %v1909
    %2094 = vmatprep.subr.bf16.mxu0 0
    %2095 = vmatpush2.bf16.msra.mxu0 0
    %2096 = vmatprep.subr.bf16.mxu0 0
    %2097 = vmatpush2.bf16.msra.mxu0 0
    %2098 = vmatprep.subr.bf16.mxu0 0
    %2099 = vmatpush2.bf16.msra.mxu0 0
    %2100 = vmatprep.subr.bf16.mxu0 0
    %2101 = vmatpush2.bf16.msra.mxu0 0
    %2102 = vmatprep.subr.bf16.mxu0 0
    %2103 = vmatpush2.bf16.msra.mxu0 0
    %2104 = vmatprep.subr.bf16.mxu0 0
    %2105 = vmatpush2.bf16.msra.mxu0 0
    %2106 = vmatprep.subr.bf16.mxu0 0
    %2107 = vmatpush2.bf16.msra.mxu0 0
    %2108 = vmatprep.subr.bf16.mxu0 0
    %2109 = vmatpush2.bf16.msra.mxu0 0
    %2110 = vmatprep.mubr.bf16.mxu0 0
    %2111 = vmatmul.mubr.bf16.gmra.mxu0 %v2076
    %v2112 = vpop.f32.mrf.mxu0
    %v2113 = vadd.f32 0.0, %v2112
    %v2114 = vpop.f32.mrf.mxu0
    %v2115 = vpop.f32.mrf.mxu0
    %v2116 = vpop.f32.mrf.mxu0
    %2117 = vdwg.mxu0
    %v2118 = vadd.f32 %v2072, %v2113
    %v2119 = vld [vmem:[%s489 + $0x8] sm:$0xff]
    %2120 = vrot.lane.b32.xlu0 %v2057, 32
    %v2121 = vpop.permute.xlu0 %2120
    %v2123 = vsel %vm144, %v2121, 0
    %2125 = vmatprep.subr.bf16.mxu0 0
    %2126 = vmatpush1.bf16.msra.mxu0 0
    %2127 = vmatprep.subr.bf16.mxu0 0
    %2128 = vmatpush1.bf16.msra.mxu0 0
    %2129 = vmatprep.subr.bf16.mxu0 0
    %2130 = vmatpush1.bf16.msra.mxu0 0
    %2131 = vmatprep.subr.bf16.mxu0 0
    %2132 = vmatpush1.bf16.msra.mxu0 0
    %2133 = vmatprep.subr.bf16.mxu0 0
    %2134 = vmatpush1.bf16.msra.mxu0 0
    %2135 = vmatprep.subr.bf16.mxu0 0
    %2136 = vmatpush1.bf16.msra.mxu0 0
    %2137 = vmatprep.subr.bf16.mxu0 0
    %2138 = vmatpush1.bf16.msra.mxu0 %v1964
    %2139 = vmatprep.subr.bf16.mxu0 0
    %2140 = vmatpush1.bf16.msra.mxu0 %v1963
    %2141 = vmatprep.subr.bf16.mxu0 0
    %2142 = vmatpush2.bf16.msra.mxu0 0
    %2143 = vmatprep.subr.bf16.mxu0 0
    %2144 = vmatpush2.bf16.msra.mxu0 0
    %2145 = vmatprep.subr.bf16.mxu0 0
    %2146 = vmatpush2.bf16.msra.mxu0 0
    %2147 = vmatprep.subr.bf16.mxu0 0
    %2148 = vmatpush2.bf16.msra.mxu0 0
    %2149 = vmatprep.subr.bf16.mxu0 0
    %2150 = vmatpush2.bf16.msra.mxu0 0
    %2151 = vmatprep.subr.bf16.mxu0 0
    %2152 = vmatpush2.bf16.msra.mxu0 0
    %2153 = vmatprep.subr.bf16.mxu0 0
    %2154 = vmatpush2.bf16.msra.mxu0 0
    %2155 = vmatprep.subr.bf16.mxu0 0
    %2156 = vmatpush2.bf16.msra.mxu0 0
    %2157 = vmatprep.mubr.bf16.mxu0 0
    %2158 = vmatmul.mubr.bf16.gmra.mxu0 %v2123
    %v2159 = vpop.f32.mrf.mxu0
    %v2160 = vadd.f32 0.0, %v2159
    %v2161 = vpop.f32.mrf.mxu0
    %v2162 = vpop.f32.mrf.mxu0
    %v2163 = vpop.f32.mrf.mxu0
    %2164 = vdwg.mxu0
    %v2165 = vadd.f32 %v2119, %v2160
    %v2166 = vxor.u32 %v2118, 2147483648
    %v2167 = vmul.f32 %v2166, 1.442695
    %v2168 = vpow.pop %v2167
    %v2169 = vadd.f32 %v2168, 1.0
    %v2170 = vrcp.pop %v2169
    %v2171 = vmul.f32 1.0, %v2170
    %v2172 = vtanh.pop %v2118
    %v2173 = vmul.f32 %v2171, %v2025
    %2175 = vrot.lane.b32.xlu0 %v2172, 64
    %v2176 = vpop.permute.xlu0 %2175
    %v2178 = vmul.f32 %v2171, %v2176
    %2180 = vrot.lane.b32.xlu0 %v2178, 32
    %v2181 = vpop.permute.xlu0 %2180
    %v2183 = vadd.f32 %v2173, %v2181
    %v2184 = vtanh.pop %v2183
    %2186 = vrot.lane.b32.xlu0 %v2184, 64
    %v2187 = vpop.permute.xlu0 %2186
    %v2189 = vmul.f32 %v2171, %v2187
    %v2190 = vxor.u32 %v2165, 2147483648
    %v2191 = vmul.f32 %v2190, 1.442695
    %v2192 = vpow.pop %v2191
    %v2193 = vadd.f32 %v2192, 1.0
    %v2194 = vrcp.pop %v2193
    %v2195 = vmul.f32 1.0, %v2194
    %v2196 = vtanh.pop %v2165
    %v2197 = vmul.f32 %v2195, %v2049
    %2199 = vrot.lane.b32.xlu0 %v2196, 64
    %v2200 = vpop.permute.xlu0 %2199
    %v2202 = vmul.f32 %v2195, %v2200
    %2204 = vrot.lane.b32.xlu0 %v2202, 32
    %v2205 = vpop.permute.xlu0 %2204
    %v2207 = vadd.f32 %v2197, %v2205
    %v2208 = vtanh.pop %v2207
    %2210 = vrot.lane.b32.xlu0 %v2208, 64
    %v2211 = vpop.permute.xlu0 %2210
    %v2213 = vmul.f32 %v2195, %v2211
    %v2214 = vpack.c.bf16 %v2189, %v2189
    %v2215 = vpack.c.bf16 %v2213, %v2213
    %v2217 = vunpack.c.l.b16 %v2214
    %v2218 = vpack.c.b16 %v2217, %v2217
    %2219 = vrot.lane.b32.xlu0 %v2218, 32
    %v2220 = vpop.permute.xlu0 %2219
    %2222 = vst.msk [vmem:[%s593] sm:$0xf] %vm427, %v2220
    %v2224 = vunpack.c.l.b16 %v2215
    %v2225 = vpack.c.b16 %v2224, %v2224
    %2226 = vrot.lane.b32.xlu0 %v2225, 32
    %v2227 = vpop.permute.xlu0 %2226
    %2229 = vst.msk [vmem:[%s601] sm:$0xf] %vm427, %v2227
    %v2230 = vld [vmem:[%s605] sm:$0xff]
    %2231 = vrot.lane.b32.xlu0 %v2214, 32
    %v2232 = vpop.permute.xlu0 %2231
    %v2234 = vsel %vm144, %v2232, 0
    %2236 = vmatprep.subr.bf16.mxu0 0
    %2237 = vmatpush1.bf16.msra.mxu0 0
    %2238 = vmatprep.subr.bf16.mxu0 0
    %2239 = vmatpush1.bf16.msra.mxu0 0
    %2240 = vmatprep.subr.bf16.mxu0 0
    %2241 = vmatpush1.bf16.msra.mxu0 0
    %2242 = vmatprep.subr.bf16.mxu0 0
    %2243 = vmatpush1.bf16.msra.mxu0 0
    %2244 = vmatprep.subr.bf16.mxu0 0
    %2245 = vmatpush1.bf16.msra.mxu0 0
    %2246 = vmatprep.subr.bf16.mxu0 0
    %2247 = vmatpush1.bf16.msra.mxu0 0
    %2248 = vmatprep.subr.bf16.mxu0 0
    %2249 = vmatpush1.bf16.msra.mxu0 %v1910
    %2250 = vmatprep.subr.bf16.mxu0 0
    %2251 = vmatpush1.bf16.msra.mxu0 %v1909
    %2252 = vmatprep.subr.bf16.mxu0 0
    %2253 = vmatpush2.bf16.msra.mxu0 0
    %2254 = vmatprep.subr.bf16.mxu0 0
    %2255 = vmatpush2.bf16.msra.mxu0 0
    %2256 = vmatprep.subr.bf16.mxu0 0
    %2257 = vmatpush2.bf16.msra.mxu0 0
    %2258 = vmatprep.subr.bf16.mxu0 0
    %2259 = vmatpush2.bf16.msra.mxu0 0
    %2260 = vmatprep.subr.bf16.mxu0 0
    %2261 = vmatpush2.bf16.msra.mxu0 0
    %2262 = vmatprep.subr.bf16.mxu0 0
    %2263 = vmatpush2.bf16.msra.mxu0 0
    %2264 = vmatprep.subr.bf16.mxu0 0
    %2265 = vmatpush2.bf16.msra.mxu0 0
    %2266 = vmatprep.subr.bf16.mxu0 0
    %2267 = vmatpush2.bf16.msra.mxu0 0
    %2268 = vmatprep.mubr.bf16.mxu0 0
    %2269 = vmatmul.mubr.bf16.gmra.mxu0 %v2234
    %v2270 = vpop.f32.mrf.mxu0
    %v2271 = vadd.f32 0.0, %v2270
    %v2272 = vpop.f32.mrf.mxu0
    %v2273 = vpop.f32.mrf.mxu0
    %v2274 = vpop.f32.mrf.mxu0
    %2275 = vdwg.mxu0
    %v2276 = vadd.f32 %v2230, %v2271
    %v2277 = vld [vmem:[%s655 + $0x8] sm:$0xff]
    %2278 = vrot.lane.b32.xlu0 %v2215, 32
    %v2279 = vpop.permute.xlu0 %2278
    %v2281 = vsel %vm144, %v2279, 0
    %2283 = vmatprep.subr.bf16.mxu0 0
    %2284 = vmatpush1.bf16.msra.mxu0 0
    %2285 = vmatprep.subr.bf16.mxu0 0
    %2286 = vmatpush1.bf16.msra.mxu0 0
    %2287 = vmatprep.subr.bf16.mxu0 0
    %2288 = vmatpush1.bf16.msra.mxu0 0
    %2289 = vmatprep.subr.bf16.mxu0 0
    %2290 = vmatpush1.bf16.msra.mxu0 0
    %2291 = vmatprep.subr.bf16.mxu0 0
    %2292 = vmatpush1.bf16.msra.mxu0 0
    %2293 = vmatprep.subr.bf16.mxu0 0
    %2294 = vmatpush1.bf16.msra.mxu0 0
    %2295 = vmatprep.subr.bf16.mxu0 0
    %2296 = vmatpush1.bf16.msra.mxu0 %v1964
    %2297 = vmatprep.subr.bf16.mxu0 0
    %2298 = vmatpush1.bf16.msra.mxu0 %v1963
    %2299 = vmatprep.subr.bf16.mxu0 0
    %2300 = vmatpush2.bf16.msra.mxu0 0
    %2301 = vmatprep.subr.bf16.mxu0 0
    %2302 = vmatpush2.bf16.msra.mxu0 0
    %2303 = vmatprep.subr.bf16.mxu0 0
    %2304 = vmatpush2.bf16.msra.mxu0 0
    %2305 = vmatprep.subr.bf16.mxu0 0
    %2306 = vmatpush2.bf16.msra.mxu0 0
    %2307 = vmatprep.subr.bf16.mxu0 0
    %2308 = vmatpush2.bf16.msra.mxu0 0
    %2309 = vmatprep.subr.bf16.mxu0 0
    %2310 = vmatpush2.bf16.msra.mxu0 0
    %2311 = vmatprep.subr.bf16.mxu0 0
    %2312 = vmatpush2.bf16.msra.mxu0 0
    %2313 = vmatprep.subr.bf16.mxu0 0
    %2314 = vmatpush2.bf16.msra.mxu0 0
    %2315 = vmatprep.mubr.bf16.mxu0 0
    %2316 = vmatmul.mubr.bf16.gmra.mxu0 %v2281
    %v2317 = vpop.f32.mrf.mxu0
    %v2318 = vadd.f32 0.0, %v2317
    %v2319 = vpop.f32.mrf.mxu0
    %v2320 = vpop.f32.mrf.mxu0
    %v2321 = vpop.f32.mrf.mxu0
    %2322 = vdwg.mxu0
    %v2323 = vadd.f32 %v2277, %v2318
    %v2324 = vxor.u32 %v2276, 2147483648
    %v2325 = vmul.f32 %v2324, 1.442695
    %v2326 = vpow.pop %v2325
    %v2327 = vadd.f32 %v2326, 1.0
    %v2328 = vrcp.pop %v2327
    %v2329 = vmul.f32 1.0, %v2328
    %v2330 = vtanh.pop %v2276
    %v2331 = vmul.f32 %v2329, %v2183
    %2333 = vrot.lane.b32.xlu0 %v2330, 64
    %v2334 = vpop.permute.xlu0 %2333
    %v2336 = vmul.f32 %v2329, %v2334
    %2338 = vrot.lane.b32.xlu0 %v2336, 32
    %v2339 = vpop.permute.xlu0 %2338
    %v2341 = vadd.f32 %v2331, %v2339
    %v2342 = vtanh.pop %v2341
    %2344 = vrot.lane.b32.xlu0 %v2342, 64
    %v2345 = vpop.permute.xlu0 %2344
    %v2347 = vmul.f32 %v2329, %v2345
    %v2348 = vxor.u32 %v2323, 2147483648
    %v2349 = vmul.f32 %v2348, 1.442695
    %v2350 = vpow.pop %v2349
    %v2351 = vadd.f32 %v2350, 1.0
    %v2352 = vrcp.pop %v2351
    %v2353 = vmul.f32 1.0, %v2352
    %v2354 = vtanh.pop %v2323
    %v2355 = vmul.f32 %v2353, %v2207
    %2357 = vrot.lane.b32.xlu0 %v2354, 64
    %v2358 = vpop.permute.xlu0 %2357
    %v2360 = vmul.f32 %v2353, %v2358
    %2362 = vrot.lane.b32.xlu0 %v2360, 32
    %v2363 = vpop.permute.xlu0 %2362
    %v2365 = vadd.f32 %v2355, %v2363
    %v2366 = vtanh.pop %v2365
    %2368 = vrot.lane.b32.xlu0 %v2366, 64
    %v2369 = vpop.permute.xlu0 %2368
    %v2371 = vmul.f32 %v2353, %v2369
    %v2372 = vpack.c.bf16 %v2347, %v2347
    %v2373 = vpack.c.bf16 %v2371, %v2371
    %v2375 = vunpack.c.l.b16 %v2372
    %v2376 = vpack.c.b16 %v2375, %v2375
    %2377 = vrot.lane.b32.xlu0 %v2376, 32
    %v2378 = vpop.permute.xlu0 %2377
    %2380 = vst.msk [vmem:[%s759] sm:$0xf] %vm427, %v2378
    %v2382 = vunpack.c.l.b16 %v2373
    %v2383 = vpack.c.b16 %v2382, %v2382
    %2384 = vrot.lane.b32.xlu0 %v2383, 32
    %v2385 = vpop.permute.xlu0 %2384
    %2387 = vst.msk [vmem:[%s767] sm:$0xf] %vm427, %v2385
    %v2388 = vld [vmem:[%s771] sm:$0xff]
    %2389 = vrot.lane.b32.xlu0 %v2372, 32
    %v2390 = vpop.permute.xlu0 %2389
    %v2392 = vsel %vm144, %v2390, 0
    %2394 = vmatprep.subr.bf16.mxu0 0
    %2395 = vmatpush1.bf16.msra.mxu0 0
    %2396 = vmatprep.subr.bf16.mxu0 0
    %2397 = vmatpush1.bf16.msra.mxu0 0
    %2398 = vmatprep.subr.bf16.mxu0 0
    %2399 = vmatpush1.bf16.msra.mxu0 0
    %2400 = vmatprep.subr.bf16.mxu0 0
    %2401 = vmatpush1.bf16.msra.mxu0 0
    %2402 = vmatprep.subr.bf16.mxu0 0
    %2403 = vmatpush1.bf16.msra.mxu0 0
    %2404 = vmatprep.subr.bf16.mxu0 0
    %2405 = vmatpush1.bf16.msra.mxu0 0
    %2406 = vmatprep.subr.bf16.mxu0 0
    %2407 = vmatpush1.bf16.msra.mxu0 %v1910
    %2408 = vmatprep.subr.bf16.mxu0 0
    %2409 = vmatpush1.bf16.msra.mxu0 %v1909
    %2410 = vmatprep.subr.bf16.mxu0 0
    %2411 = vmatpush2.bf16.msra.mxu0 0
    %2412 = vmatprep.subr.bf16.mxu0 0
    %2413 = vmatpush2.bf16.msra.mxu0 0
    %2414 = vmatprep.subr.bf16.mxu0 0
    %2415 = vmatpush2.bf16.msra.mxu0 0
    %2416 = vmatprep.subr.bf16.mxu0 0
    %2417 = vmatpush2.bf16.msra.mxu0 0
    %2418 = vmatprep.subr.bf16.mxu0 0
    %2419 = vmatpush2.bf16.msra.mxu0 0
    %2420 = vmatprep.subr.bf16.mxu0 0
    %2421 = vmatpush2.bf16.msra.mxu0 0
    %2422 = vmatprep.subr.bf16.mxu0 0
    %2423 = vmatpush2.bf16.msra.mxu0 0
    %2424 = vmatprep.subr.bf16.mxu0 0
    %2425 = vmatpush2.bf16.msra.mxu0 0
    %2426 = vmatprep.mubr.bf16.mxu0 0
    %2427 = vmatmul.mubr.bf16.gmra.mxu0 %v2392
    %v2428 = vpop.f32.mrf.mxu0
    %v2429 = vadd.f32 0.0, %v2428
    %v2430 = vpop.f32.mrf.mxu0
    %v2431 = vpop.f32.mrf.mxu0
    %v2432 = vpop.f32.mrf.mxu0
    %2433 = vdwg.mxu0
    %v2434 = vadd.f32 %v2388, %v2429
    %v2435 = vld [vmem:[%s821 + $0x8] sm:$0xff]
    %2436 = vrot.lane.b32.xlu0 %v2373, 32
    %v2437 = vpop.permute.xlu0 %2436
    %v2439 = vsel %vm144, %v2437, 0
    %2441 = vmatprep.subr.bf16.mxu0 0
    %2442 = vmatpush1.bf16.msra.mxu0 0
    %2443 = vmatprep.subr.bf16.mxu0 0
    %2444 = vmatpush1.bf16.msra.mxu0 0
    %2445 = vmatprep.subr.bf16.mxu0 0
    %2446 = vmatpush1.bf16.msra.mxu0 0
    %2447 = vmatprep.subr.bf16.mxu0 0
    %2448 = vmatpush1.bf16.msra.mxu0 0
    %2449 = vmatprep.subr.bf16.mxu0 0
    %2450 = vmatpush1.bf16.msra.mxu0 0
    %2451 = vmatprep.subr.bf16.mxu0 0
    %2452 = vmatpush1.bf16.msra.mxu0 0
    %2453 = vmatprep.subr.bf16.mxu0 0
    %2454 = vmatpush1.bf16.msra.mxu0 %v1964
    %2455 = vmatprep.subr.bf16.mxu0 0
    %2456 = vmatpush1.bf16.msra.mxu0 %v1963
    %2457 = vmatprep.subr.bf16.mxu0 0
    %2458 = vmatpush2.bf16.msra.mxu0 0
    %2459 = vmatprep.subr.bf16.mxu0 0
    %2460 = vmatpush2.bf16.msra.mxu0 0
    %2461 = vmatprep.subr.bf16.mxu0 0
    %2462 = vmatpush2.bf16.msra.mxu0 0
    %2463 = vmatprep.subr.bf16.mxu0 0
    %2464 = vmatpush2.bf16.msra.mxu0 0
    %2465 = vmatprep.subr.bf16.mxu0 0
    %2466 = vmatpush2.bf16.msra.mxu0 0
    %2467 = vmatprep.subr.bf16.mxu0 0
    %2468 = vmatpush2.bf16.msra.mxu0 0
    %2469 = vmatprep.subr.bf16.mxu0 0
    %2470 = vmatpush2.bf16.msra.mxu0 0
    %2471 = vmatprep.subr.bf16.mxu0 0
    %2472 = vmatpush2.bf16.msra.mxu0 0
    %2473 = vmatprep.mubr.bf16.mxu0 0
    %2474 = vmatmul.mubr.bf16.gmra.mxu0 %v2439
    %v2475 = vpop.f32.mrf.mxu0
    %v2476 = vadd.f32 0.0, %v2475
    %v2477 = vpop.f32.mrf.mxu0
    %v2478 = vpop.f32.mrf.mxu0
    %v2479 = vpop.f32.mrf.mxu0
    %2480 = vdwg.mxu0
    %v2481 = vadd.f32 %v2435, %v2476
    %v2482 = vxor.u32 %v2434, 2147483648
    %v2483 = vmul.f32 %v2482, 1.442695
    %v2484 = vpow.pop %v2483
    %v2485 = vadd.f32 %v2484, 1.0
    %v2486 = vrcp.pop %v2485
    %v2487 = vmul.f32 1.0, %v2486
    %v2488 = vtanh.pop %v2434
    %v2489 = vmul.f32 %v2487, %v2341
    %2491 = vrot.lane.b32.xlu0 %v2488, 64
    %v2492 = vpop.permute.xlu0 %2491
    %v2494 = vmul.f32 %v2487, %v2492
    %2496 = vrot.lane.b32.xlu0 %v2494, 32
    %v2497 = vpop.permute.xlu0 %2496
    %v2499 = vadd.f32 %v2489, %v2497
    %v2500 = vtanh.pop %v2499
    %2502 = vrot.lane.b32.xlu0 %v2500, 64
    %v2503 = vpop.permute.xlu0 %2502
    %v2505 = vmul.f32 %v2487, %v2503
    %v2506 = vxor.u32 %v2481, 2147483648
    %v2507 = vmul.f32 %v2506, 1.442695
    %v2508 = vpow.pop %v2507
    %v2509 = vadd.f32 %v2508, 1.0
    %v2510 = vrcp.pop %v2509
    %v2511 = vmul.f32 1.0, %v2510
    %v2512 = vtanh.pop %v2481
    %v2513 = vmul.f32 %v2511, %v2365
    %2515 = vrot.lane.b32.xlu0 %v2512, 64
    %v2516 = vpop.permute.xlu0 %2515
    %v2518 = vmul.f32 %v2511, %v2516
    %2520 = vrot.lane.b32.xlu0 %v2518, 32
    %v2521 = vpop.permute.xlu0 %2520
    %v2523 = vadd.f32 %v2513, %v2521
    %v2524 = vtanh.pop %v2523
    %2526 = vrot.lane.b32.xlu0 %v2524, 64
    %v2527 = vpop.permute.xlu0 %2526
    %v2529 = vmul.f32 %v2511, %v2527
    %v2530 = vpack.c.bf16 %v2505, %v2505
    %v2531 = vpack.c.bf16 %v2529, %v2529
    %v2533 = vunpack.c.l.b16 %v2530
    %v2534 = vpack.c.b16 %v2533, %v2533
    %2535 = vrot.lane.b32.xlu0 %v2534, 32
    %v2536 = vpop.permute.xlu0 %2535
    %2538 = vst.msk [vmem:[%s925] sm:$0xf] %vm427, %v2536
    %v2540 = vunpack.c.l.b16 %v2531
    %v2541 = vpack.c.b16 %v2540, %v2540
    %2542 = vrot.lane.b32.xlu0 %v2541, 32
    %v2543 = vpop.permute.xlu0 %2542
    %2545 = vst.msk [vmem:[%s933] sm:$0xf] %vm427, %v2543
    %v2546 = vld [vmem:[%s821] sm:$0xff]
    %2547 = vrot.lane.b32.xlu0 %v2530, 32
    %v2548 = vpop.permute.xlu0 %2547
    %v2550 = vsel %vm144, %v2548, 0
    %2552 = vmatprep.subr.bf16.mxu0 0
    %2553 = vmatpush1.bf16.msra.mxu0 0
    %2554 = vmatprep.subr.bf16.mxu0 0
    %2555 = vmatpush1.bf16.msra.mxu0 0
    %2556 = vmatprep.subr.bf16.mxu0 0
    %2557 = vmatpush1.bf16.msra.mxu0 0
    %2558 = vmatprep.subr.bf16.mxu0 0
    %2559 = vmatpush1.bf16.msra.mxu0 0
    %2560 = vmatprep.subr.bf16.mxu0 0
    %2561 = vmatpush1.bf16.msra.mxu0 0
    %2562 = vmatprep.subr.bf16.mxu0 0
    %2563 = vmatpush1.bf16.msra.mxu0 0
    %2564 = vmatprep.subr.bf16.mxu0 0
    %2565 = vmatpush1.bf16.msra.mxu0 %v1910
    %2566 = vmatprep.subr.bf16.mxu0 0
    %2567 = vmatpush1.bf16.msra.mxu0 %v1909
    %2568 = vmatprep.subr.bf16.mxu0 0
    %2569 = vmatpush2.bf16.msra.mxu0 0
    %2570 = vmatprep.subr.bf16.mxu0 0
    %2571 = vmatpush2.bf16.msra.mxu0 0
    %2572 = vmatprep.subr.bf16.mxu0 0
    %2573 = vmatpush2.bf16.msra.mxu0 0
    %2574 = vmatprep.subr.bf16.mxu0 0
    %2575 = vmatpush2.bf16.msra.mxu0 0
    %2576 = vmatprep.subr.bf16.mxu0 0
    %2577 = vmatpush2.bf16.msra.mxu0 0
    %2578 = vmatprep.subr.bf16.mxu0 0
    %2579 = vmatpush2.bf16.msra.mxu0 0
    %2580 = vmatprep.subr.bf16.mxu0 0
    %2581 = vmatpush2.bf16.msra.mxu0 0
    %2582 = vmatprep.subr.bf16.mxu0 0
    %2583 = vmatpush2.bf16.msra.mxu0 0
    %2584 = vmatprep.mubr.bf16.mxu0 0
    %2585 = vmatmul.mubr.bf16.gmra.mxu0 %v2550
    %v2586 = vpop.f32.mrf.mxu0
    %v2587 = vadd.f32 0.0, %v2586
    %v2588 = vpop.f32.mrf.mxu0
    %v2589 = vpop.f32.mrf.mxu0
    %v2590 = vpop.f32.mrf.mxu0
    %2591 = vdwg.mxu0
    %v2592 = vadd.f32 %v2546, %v2587
    %v2593 = vld [vmem:[%s771 + $0x8] sm:$0xff]
    %2594 = vrot.lane.b32.xlu0 %v2531, 32
    %v2595 = vpop.permute.xlu0 %2594
    %v2597 = vsel %vm144, %v2595, 0
    %2599 = vmatprep.subr.bf16.mxu0 0
    %2600 = vmatpush1.bf16.msra.mxu0 0
    %2601 = vmatprep.subr.bf16.mxu0 0
    %2602 = vmatpush1.bf16.msra.mxu0 0
    %2603 = vmatprep.subr.bf16.mxu0 0
    %2604 = vmatpush1.bf16.msra.mxu0 0
    %2605 = vmatprep.subr.bf16.mxu0 0
    %2606 = vmatpush1.bf16.msra.mxu0 0
    %2607 = vmatprep.subr.bf16.mxu0 0
    %2608 = vmatpush1.bf16.msra.mxu0 0
    %2609 = vmatprep.subr.bf16.mxu0 0
    %2610 = vmatpush1.bf16.msra.mxu0 0
    %2611 = vmatprep.subr.bf16.mxu0 0
    %2612 = vmatpush1.bf16.msra.mxu0 %v1964
    %2613 = vmatprep.subr.bf16.mxu0 0
    %2614 = vmatpush1.bf16.msra.mxu0 %v1963
    %2615 = vmatprep.subr.bf16.mxu0 0
    %2616 = vmatpush2.bf16.msra.mxu0 0
    %2617 = vmatprep.subr.bf16.mxu0 0
    %2618 = vmatpush2.bf16.msra.mxu0 0
    %2619 = vmatprep.subr.bf16.mxu0 0
    %2620 = vmatpush2.bf16.msra.mxu0 0
    %2621 = vmatprep.subr.bf16.mxu0 0
    %2622 = vmatpush2.bf16.msra.mxu0 0
    %2623 = vmatprep.subr.bf16.mxu0 0
    %2624 = vmatpush2.bf16.msra.mxu0 0
    %2625 = vmatprep.subr.bf16.mxu0 0
    %2626 = vmatpush2.bf16.msra.mxu0 0
    %2627 = vmatprep.subr.bf16.mxu0 0
    %2628 = vmatpush2.bf16.msra.mxu0 0
    %2629 = vmatprep.subr.bf16.mxu0 0
    %2630 = vmatpush2.bf16.msra.mxu0 0
    %2631 = vmatprep.mubr.bf16.mxu0 0
    %2632 = vmatmul.mubr.bf16.gmra.mxu0 %v2597
    %v2633 = vpop.f32.mrf.mxu0
    %v2634 = vadd.f32 0.0, %v2633
    %v2635 = vpop.f32.mrf.mxu0
    %v2636 = vpop.f32.mrf.mxu0
    %v2637 = vpop.f32.mrf.mxu0
    %2638 = vdwg.mxu0
    %v2639 = vadd.f32 %v2593, %v2634
    %v2640 = vxor.u32 %v2592, 2147483648
    %v2641 = vmul.f32 %v2640, 1.442695
    %v2642 = vpow.pop %v2641
    %v2643 = vadd.f32 %v2642, 1.0
    %v2644 = vrcp.pop %v2643
    %v2645 = vmul.f32 1.0, %v2644
    %v2646 = vtanh.pop %v2592
    %v2647 = vmul.f32 %v2645, %v2499
    %2649 = vrot.lane.b32.xlu0 %v2646, 64
    %v2650 = vpop.permute.xlu0 %2649
    %v2652 = vmul.f32 %v2645, %v2650
    %2654 = vrot.lane.b32.xlu0 %v2652, 32
    %v2655 = vpop.permute.xlu0 %2654
    %v2657 = vadd.f32 %v2647, %v2655
    %v2658 = vtanh.pop %v2657
    %2660 = vrot.lane.b32.xlu0 %v2658, 64
    %v2661 = vpop.permute.xlu0 %2660
    %v2663 = vmul.f32 %v2645, %v2661
    %v2664 = vxor.u32 %v2639, 2147483648
    %v2665 = vmul.f32 %v2664, 1.442695
    %v2666 = vpow.pop %v2665
    %v2667 = vadd.f32 %v2666, 1.0
    %v2668 = vrcp.pop %v2667
    %v2669 = vmul.f32 1.0, %v2668
    %v2670 = vtanh.pop %v2639
    %v2671 = vmul.f32 %v2669, %v2523
    %2673 = vrot.lane.b32.xlu0 %v2670, 64
    %v2674 = vpop.permute.xlu0 %2673
    %v2676 = vmul.f32 %v2669, %v2674
    %2678 = vrot.lane.b32.xlu0 %v2676, 32
    %v2679 = vpop.permute.xlu0 %2678
    %v2681 = vadd.f32 %v2671, %v2679
    %v2682 = vtanh.pop %v2681
    %2684 = vrot.lane.b32.xlu0 %v2682, 64
    %v2685 = vpop.permute.xlu0 %2684
    %v2687 = vmul.f32 %v2669, %v2685
    %v2688 = vpack.c.bf16 %v2663, %v2663
    %v2689 = vpack.c.bf16 %v2687, %v2687
    %v2691 = vunpack.c.l.b16 %v2688
    %v2692 = vpack.c.b16 %v2691, %v2691
    %2693 = vrot.lane.b32.xlu0 %v2692, 32
    %v2694 = vpop.permute.xlu0 %2693
    %2696 = vst.msk [vmem:[%s1085] sm:$0xf] %vm427, %v2694
    %v2698 = vunpack.c.l.b16 %v2689
    %v2699 = vpack.c.b16 %v2698, %v2698
    %2700 = vrot.lane.b32.xlu0 %v2699, 32
    %v2701 = vpop.permute.xlu0 %2700
    %2703 = vst.msk [vmem:[%s1093] sm:$0xf] %vm427, %v2701
    %v2704 = vld [vmem:[%s655] sm:$0xff]
    %2705 = vrot.lane.b32.xlu0 %v2688, 32
    %v2706 = vpop.permute.xlu0 %2705
    %v2708 = vsel %vm144, %v2706, 0
    %2710 = vmatprep.subr.bf16.mxu0 0
    %2711 = vmatpush1.bf16.msra.mxu0 0
    %2712 = vmatprep.subr.bf16.mxu0 0
    %2713 = vmatpush1.bf16.msra.mxu0 0
    %2714 = vmatprep.subr.bf16.mxu0 0
    %2715 = vmatpush1.bf16.msra.mxu0 0
    %2716 = vmatprep.subr.bf16.mxu0 0
    %2717 = vmatpush1.bf16.msra.mxu0 0
    %2718 = vmatprep.subr.bf16.mxu0 0
    %2719 = vmatpush1.bf16.msra.mxu0 0
    %2720 = vmatprep.subr.bf16.mxu0 0
    %2721 = vmatpush1.bf16.msra.mxu0 0
    %2722 = vmatprep.subr.bf16.mxu0 0
    %2723 = vmatpush1.bf16.msra.mxu0 %v1910
    %2724 = vmatprep.subr.bf16.mxu0 0
    %2725 = vmatpush1.bf16.msra.mxu0 %v1909
    %2726 = vmatprep.subr.bf16.mxu0 0
    %2727 = vmatpush2.bf16.msra.mxu0 0
    %2728 = vmatprep.subr.bf16.mxu0 0
    %2729 = vmatpush2.bf16.msra.mxu0 0
    %2730 = vmatprep.subr.bf16.mxu0 0
    %2731 = vmatpush2.bf16.msra.mxu0 0
    %2732 = vmatprep.subr.bf16.mxu0 0
    %2733 = vmatpush2.bf16.msra.mxu0 0
    %2734 = vmatprep.subr.bf16.mxu0 0
    %2735 = vmatpush2.bf16.msra.mxu0 0
    %2736 = vmatprep.subr.bf16.mxu0 0
    %2737 = vmatpush2.bf16.msra.mxu0 0
    %2738 = vmatprep.subr.bf16.mxu0 0
    %2739 = vmatpush2.bf16.msra.mxu0 0
    %2740 = vmatprep.subr.bf16.mxu0 0
    %2741 = vmatpush2.bf16.msra.mxu0 0
    %2742 = vmatprep.mubr.bf16.mxu0 0
    %2743 = vmatmul.mubr.bf16.gmra.mxu0 %v2708
    %v2744 = vpop.f32.mrf.mxu0
    %v2745 = vadd.f32 0.0, %v2744
    %v2746 = vpop.f32.mrf.mxu0
    %v2747 = vpop.f32.mrf.mxu0
    %v2748 = vpop.f32.mrf.mxu0
    %2749 = vdwg.mxu0
    %v2750 = vadd.f32 %v2704, %v2745
    %v2751 = vld [vmem:[%s605 + $0x8] sm:$0xff]
    %2752 = vrot.lane.b32.xlu0 %v2689, 32
    %v2753 = vpop.permute.xlu0 %2752
    %v2755 = vsel %vm144, %v2753, 0
    %2757 = vmatprep.subr.bf16.mxu0 0
    %2758 = vmatpush1.bf16.msra.mxu0 0
    %2759 = vmatprep.subr.bf16.mxu0 0
    %2760 = vmatpush1.bf16.msra.mxu0 0
    %2761 = vmatprep.subr.bf16.mxu0 0
    %2762 = vmatpush1.bf16.msra.mxu0 0
    %2763 = vmatprep.subr.bf16.mxu0 0
    %2764 = vmatpush1.bf16.msra.mxu0 0
    %2765 = vmatprep.subr.bf16.mxu0 0
    %2766 = vmatpush1.bf16.msra.mxu0 0
    %2767 = vmatprep.subr.bf16.mxu0 0
    %2768 = vmatpush1.bf16.msra.mxu0 0
    %2769 = vmatprep.subr.bf16.mxu0 0
    %2770 = vmatpush1.bf16.msra.mxu0 %v1964
    %2771 = vmatprep.subr.bf16.mxu0 0
    %2772 = vmatpush1.bf16.msra.mxu0 %v1963
    %2773 = vmatprep.subr.bf16.mxu0 0
    %2774 = vmatpush2.bf16.msra.mxu0 0
    %2775 = vmatprep.subr.bf16.mxu0 0
    %2776 = vmatpush2.bf16.msra.mxu0 0
    %2777 = vmatprep.subr.bf16.mxu0 0
    %2778 = vmatpush2.bf16.msra.mxu0 0
    %2779 = vmatprep.subr.bf16.mxu0 0
    %2780 = vmatpush2.bf16.msra.mxu0 0
    %2781 = vmatprep.subr.bf16.mxu0 0
    %2782 = vmatpush2.bf16.msra.mxu0 0
    %2783 = vmatprep.subr.bf16.mxu0 0
    %2784 = vmatpush2.bf16.msra.mxu0 0
    %2785 = vmatprep.subr.bf16.mxu0 0
    %2786 = vmatpush2.bf16.msra.mxu0 0
    %2787 = vmatprep.subr.bf16.mxu0 0
    %2788 = vmatpush2.bf16.msra.mxu0 0
    %2789 = vmatprep.mubr.bf16.mxu0 0
    %2790 = vmatmul.mubr.bf16.gmra.mxu0 %v2755
    %v2791 = vpop.f32.mrf.mxu0
    %v2792 = vadd.f32 0.0, %v2791
    %v2793 = vpop.f32.mrf.mxu0
    %v2794 = vpop.f32.mrf.mxu0
    %v2795 = vpop.f32.mrf.mxu0
    %2796 = vdwg.mxu0
    %v2797 = vadd.f32 %v2751, %v2792
    %v2798 = vxor.u32 %v2750, 2147483648
    %v2799 = vmul.f32 %v2798, 1.442695
    %v2800 = vpow.pop %v2799
    %v2801 = vadd.f32 %v2800, 1.0
    %v2802 = vrcp.pop %v2801
    %v2803 = vmul.f32 1.0, %v2802
    %v2804 = vtanh.pop %v2750
    %v2805 = vmul.f32 %v2803, %v2657
    %2807 = vrot.lane.b32.xlu0 %v2804, 64
    %v2808 = vpop.permute.xlu0 %2807
    %v2810 = vmul.f32 %v2803, %v2808
    %2812 = vrot.lane.b32.xlu0 %v2810, 32
    %v2813 = vpop.permute.xlu0 %2812
    %v2815 = vadd.f32 %v2805, %v2813
    %v2816 = vtanh.pop %v2815
    %2818 = vrot.lane.b32.xlu0 %v2816, 64
    %v2819 = vpop.permute.xlu0 %2818
    %v2821 = vmul.f32 %v2803, %v2819
    %v2822 = vxor.u32 %v2797, 2147483648
    %v2823 = vmul.f32 %v2822, 1.442695
    %v2824 = vpow.pop %v2823
    %v2825 = vadd.f32 %v2824, 1.0
    %v2826 = vrcp.pop %v2825
    %v2827 = vmul.f32 1.0, %v2826
    %v2828 = vtanh.pop %v2797
    %v2829 = vmul.f32 %v2827, %v2681
    %2831 = vrot.lane.b32.xlu0 %v2828, 64
    %v2832 = vpop.permute.xlu0 %2831
    %v2834 = vmul.f32 %v2827, %v2832
    %2836 = vrot.lane.b32.xlu0 %v2834, 32
    %v2837 = vpop.permute.xlu0 %2836
    %v2839 = vadd.f32 %v2829, %v2837
    %v2840 = vtanh.pop %v2839
    %2842 = vrot.lane.b32.xlu0 %v2840, 64
    %v2843 = vpop.permute.xlu0 %2842
    %v2845 = vmul.f32 %v2827, %v2843
    %v2846 = vpack.c.bf16 %v2821, %v2821
    %v2847 = vpack.c.bf16 %v2845, %v2845
    %v2849 = vunpack.c.l.b16 %v2846
    %v2850 = vpack.c.b16 %v2849, %v2849
    %2851 = vrot.lane.b32.xlu0 %v2850, 32
    %v2852 = vpop.permute.xlu0 %2851
    %2854 = vst.msk [vmem:[%s1245] sm:$0xf] %vm427, %v2852
    %v2856 = vunpack.c.l.b16 %v2847
    %v2857 = vpack.c.b16 %v2856, %v2856
    %2858 = vrot.lane.b32.xlu0 %v2857, 32
    %v2859 = vpop.permute.xlu0 %2858
    %2861 = vst.msk [vmem:[%s1253] sm:$0xf] %vm427, %v2859
    %v2862 = vld [vmem:[%s489] sm:$0xff]
    %2863 = vrot.lane.b32.xlu0 %v2846, 32
    %v2864 = vpop.permute.xlu0 %2863
    %v2866 = vsel %vm144, %v2864, 0
    %2868 = vmatprep.subr.bf16.mxu0 0
    %2869 = vmatpush1.bf16.msra.mxu0 0
    %2870 = vmatprep.subr.bf16.mxu0 0
    %2871 = vmatpush1.bf16.msra.mxu0 0
    %2872 = vmatprep.subr.bf16.mxu0 0
    %2873 = vmatpush1.bf16.msra.mxu0 0
    %2874 = vmatprep.subr.bf16.mxu0 0
    %2875 = vmatpush1.bf16.msra.mxu0 0
    %2876 = vmatprep.subr.bf16.mxu0 0
    %2877 = vmatpush1.bf16.msra.mxu0 0
    %2878 = vmatprep.subr.bf16.mxu0 0
    %2879 = vmatpush1.bf16.msra.mxu0 0
    %2880 = vmatprep.subr.bf16.mxu0 0
    %2881 = vmatpush1.bf16.msra.mxu0 %v1910
    %2882 = vmatprep.subr.bf16.mxu0 0
    %2883 = vmatpush1.bf16.msra.mxu0 %v1909
    %2884 = vmatprep.subr.bf16.mxu0 0
    %2885 = vmatpush2.bf16.msra.mxu0 0
    %2886 = vmatprep.subr.bf16.mxu0 0
    %2887 = vmatpush2.bf16.msra.mxu0 0
    %2888 = vmatprep.subr.bf16.mxu0 0
    %2889 = vmatpush2.bf16.msra.mxu0 0
    %2890 = vmatprep.subr.bf16.mxu0 0
    %2891 = vmatpush2.bf16.msra.mxu0 0
    %2892 = vmatprep.subr.bf16.mxu0 0
    %2893 = vmatpush2.bf16.msra.mxu0 0
    %2894 = vmatprep.subr.bf16.mxu0 0
    %2895 = vmatpush2.bf16.msra.mxu0 0
    %2896 = vmatprep.subr.bf16.mxu0 0
    %2897 = vmatpush2.bf16.msra.mxu0 0
    %2898 = vmatprep.subr.bf16.mxu0 0
    %2899 = vmatpush2.bf16.msra.mxu0 0
    %2900 = vmatprep.mubr.bf16.mxu0 0
    %2901 = vmatmul.mubr.bf16.gmra.mxu0 %v2866
    %v2902 = vpop.f32.mrf.mxu0
    %v2903 = vadd.f32 0.0, %v2902
    %v2904 = vpop.f32.mrf.mxu0
    %v2905 = vpop.f32.mrf.mxu0
    %v2906 = vpop.f32.mrf.mxu0
    %2907 = vdwg.mxu0
    %v2908 = vadd.f32 %v2862, %v2903
    %v2909 = vld [vmem:[%s439 + $0x8] sm:$0xff]
    %2910 = vrot.lane.b32.xlu0 %v2847, 32
    %v2911 = vpop.permute.xlu0 %2910
    %v2913 = vsel %vm144, %v2911, 0
    %2915 = vmatprep.subr.bf16.mxu0 0
    %2916 = vmatpush1.bf16.msra.mxu0 0
    %2917 = vmatprep.subr.bf16.mxu0 0
    %2918 = vmatpush1.bf16.msra.mxu0 0
    %2919 = vmatprep.subr.bf16.mxu0 0
    %2920 = vmatpush1.bf16.msra.mxu0 0
    %2921 = vmatprep.subr.bf16.mxu0 0
    %2922 = vmatpush1.bf16.msra.mxu0 0
    %2923 = vmatprep.subr.bf16.mxu0 0
    %2924 = vmatpush1.bf16.msra.mxu0 0
    %2925 = vmatprep.subr.bf16.mxu0 0
    %2926 = vmatpush1.bf16.msra.mxu0 0
    %2927 = vmatprep.subr.bf16.mxu0 0
    %2928 = vmatpush1.bf16.msra.mxu0 %v1964
    %2929 = vmatprep.subr.bf16.mxu0 0
    %2930 = vmatpush1.bf16.msra.mxu0 %v1963
    %2931 = vmatprep.subr.bf16.mxu0 0
    %2932 = vmatpush2.bf16.msra.mxu0 0
    %2933 = vmatprep.subr.bf16.mxu0 0
    %2934 = vmatpush2.bf16.msra.mxu0 0
    %2935 = vmatprep.subr.bf16.mxu0 0
    %2936 = vmatpush2.bf16.msra.mxu0 0
    %2937 = vmatprep.subr.bf16.mxu0 0
    %2938 = vmatpush2.bf16.msra.mxu0 0
    %2939 = vmatprep.subr.bf16.mxu0 0
    %2940 = vmatpush2.bf16.msra.mxu0 0
    %2941 = vmatprep.subr.bf16.mxu0 0
    %2942 = vmatpush2.bf16.msra.mxu0 0
    %2943 = vmatprep.subr.bf16.mxu0 0
    %2944 = vmatpush2.bf16.msra.mxu0 0
    %2945 = vmatprep.subr.bf16.mxu0 0
    %2946 = vmatpush2.bf16.msra.mxu0 0
    %2947 = vmatprep.mubr.bf16.mxu0 0
    %2948 = vmatmul.mubr.bf16.gmra.mxu0 %v2913
    %v2949 = vpop.f32.mrf.mxu0
    %v2950 = vadd.f32 0.0, %v2949
    %v2951 = vpop.f32.mrf.mxu0
    %v2952 = vpop.f32.mrf.mxu0
    %v2953 = vpop.f32.mrf.mxu0
    %2954 = vdwg.mxu0
    %v2955 = vadd.f32 %v2909, %v2950
    %v2956 = vxor.u32 %v2908, 2147483648
    %v2957 = vmul.f32 %v2956, 1.442695
    %v2958 = vpow.pop %v2957
    %v2959 = vadd.f32 %v2958, 1.0
    %v2960 = vrcp.pop %v2959
    %v2961 = vmul.f32 1.0, %v2960
    %v2962 = vtanh.pop %v2908
    %v2963 = vmul.f32 %v2961, %v2815
    %2965 = vrot.lane.b32.xlu0 %v2962, 64
    %v2966 = vpop.permute.xlu0 %2965
    %v2968 = vmul.f32 %v2961, %v2966
    %2970 = vrot.lane.b32.xlu0 %v2968, 32
    %v2971 = vpop.permute.xlu0 %2970
    %v2973 = vadd.f32 %v2963, %v2971
    %v2974 = vtanh.pop %v2973
    %2976 = vrot.lane.b32.xlu0 %v2974, 64
    %v2977 = vpop.permute.xlu0 %2976
    %v2979 = vmul.f32 %v2961, %v2977
    %v2980 = vxor.u32 %v2955, 2147483648
    %v2981 = vmul.f32 %v2980, 1.442695
    %v2982 = vpow.pop %v2981
    %v2983 = vadd.f32 %v2982, 1.0
    %v2984 = vrcp.pop %v2983
    %v2985 = vmul.f32 1.0, %v2984
    %v2986 = vtanh.pop %v2955
    %v2987 = vmul.f32 %v2985, %v2839
    %2989 = vrot.lane.b32.xlu0 %v2986, 64
    %v2990 = vpop.permute.xlu0 %2989
    %v2992 = vmul.f32 %v2985, %v2990
    %2994 = vrot.lane.b32.xlu0 %v2992, 32
    %v2995 = vpop.permute.xlu0 %2994
    %v2997 = vadd.f32 %v2987, %v2995
    %v2998 = vtanh.pop %v2997
    %3000 = vrot.lane.b32.xlu0 %v2998, 64
    %v3001 = vpop.permute.xlu0 %3000
    %v3003 = vmul.f32 %v2985, %v3001
    %v3004 = vpack.c.bf16 %v2979, %v2979
    %v3005 = vpack.c.bf16 %v3003, %v3003
    %v3007 = vunpack.c.l.b16 %v3004
    %v3008 = vpack.c.b16 %v3007, %v3007
    %3009 = vrot.lane.b32.xlu0 %v3008, 32
    %v3010 = vpop.permute.xlu0 %3009
    %3012 = vst.msk [vmem:[%s1405] sm:$0xf] %vm427, %v3010
    %v3014 = vunpack.c.l.b16 %v3005
    %v3015 = vpack.c.b16 %v3014, %v3014
    %3016 = vrot.lane.b32.xlu0 %v3015, 32
    %v3017 = vpop.permute.xlu0 %3016
    %3019 = vst.msk [vmem:[%s1413] sm:$0xf] %vm427, %v3017
    %v3020 = vld [vmem:[%s316] sm:$0xff]
    %3021 = vrot.lane.b32.xlu0 %v3004, 32
    %v3022 = vpop.permute.xlu0 %3021
    %v3024 = vsel %vm144, %v3022, 0
    %3026 = vmatprep.subr.bf16.mxu0 0
    %3027 = vmatpush1.bf16.msra.mxu0 0
    %3028 = vmatprep.subr.bf16.mxu0 0
    %3029 = vmatpush1.bf16.msra.mxu0 0
    %3030 = vmatprep.subr.bf16.mxu0 0
    %3031 = vmatpush1.bf16.msra.mxu0 0
    %3032 = vmatprep.subr.bf16.mxu0 0
    %3033 = vmatpush1.bf16.msra.mxu0 0
    %3034 = vmatprep.subr.bf16.mxu0 0
    %3035 = vmatpush1.bf16.msra.mxu0 0
    %3036 = vmatprep.subr.bf16.mxu0 0
    %3037 = vmatpush1.bf16.msra.mxu0 0
    %3038 = vmatprep.subr.bf16.mxu0 0
    %3039 = vmatpush1.bf16.msra.mxu0 %v1910
    %3040 = vmatprep.subr.bf16.mxu0 0
    %3041 = vmatpush1.bf16.msra.mxu0 %v1909
    %3042 = vmatprep.subr.bf16.mxu0 0
    %3043 = vmatpush2.bf16.msra.mxu0 0
    %3044 = vmatprep.subr.bf16.mxu0 0
    %3045 = vmatpush2.bf16.msra.mxu0 0
    %3046 = vmatprep.subr.bf16.mxu0 0
    %3047 = vmatpush2.bf16.msra.mxu0 0
    %3048 = vmatprep.subr.bf16.mxu0 0
    %3049 = vmatpush2.bf16.msra.mxu0 0
    %3050 = vmatprep.subr.bf16.mxu0 0
    %3051 = vmatpush2.bf16.msra.mxu0 0
    %3052 = vmatprep.subr.bf16.mxu0 0
    %3053 = vmatpush2.bf16.msra.mxu0 0
    %3054 = vmatprep.subr.bf16.mxu0 0
    %3055 = vmatpush2.bf16.msra.mxu0 0
    %3056 = vmatprep.subr.bf16.mxu0 0
    %3057 = vmatpush2.bf16.msra.mxu0 0
    %3058 = vmatprep.mubr.bf16.mxu0 0
    %3059 = vmatmul.mubr.bf16.gmra.mxu0 %v3024
    %v3060 = vpop.f32.mrf.mxu0
    %v3061 = vadd.f32 0.0, %v3060
    %v3062 = vpop.f32.mrf.mxu0
    %v3063 = vpop.f32.mrf.mxu0
    %v3064 = vpop.f32.mrf.mxu0
    %3065 = vdwg.mxu0
    %v3066 = vadd.f32 %v3020, %v3061
    %v3067 = vld [vmem:[%s256 + $0x8] sm:$0xff]
    %3068 = vrot.lane.b32.xlu0 %v3005, 32
    %v3069 = vpop.permute.xlu0 %3068
    %v3071 = vsel %vm144, %v3069, 0
    %3073 = vmatprep.subr.bf16.mxu0 0
    %3074 = vmatpush1.bf16.msra.mxu0 0
    %3075 = vmatprep.subr.bf16.mxu0 0
    %3076 = vmatpush1.bf16.msra.mxu0 0
    %3077 = vmatprep.subr.bf16.mxu0 0
    %3078 = vmatpush1.bf16.msra.mxu0 0
    %3079 = vmatprep.subr.bf16.mxu0 0
    %3080 = vmatpush1.bf16.msra.mxu0 0
    %3081 = vmatprep.subr.bf16.mxu0 0
    %3082 = vmatpush1.bf16.msra.mxu0 0
    %3083 = vmatprep.subr.bf16.mxu0 0
    %3084 = vmatpush1.bf16.msra.mxu0 0
    %3085 = vmatprep.subr.bf16.mxu0 0
    %3086 = vmatpush1.bf16.msra.mxu0 %v1964
    %3087 = vmatprep.subr.bf16.mxu0 0
    %3088 = vmatpush1.bf16.msra.mxu0 %v1963
    %3089 = vmatprep.subr.bf16.mxu0 0
    %3090 = vmatpush2.bf16.msra.mxu0 0
    %3091 = vmatprep.subr.bf16.mxu0 0
    %3092 = vmatpush2.bf16.msra.mxu0 0
    %3093 = vmatprep.subr.bf16.mxu0 0
    %3094 = vmatpush2.bf16.msra.mxu0 0
    %3095 = vmatprep.subr.bf16.mxu0 0
    %3096 = vmatpush2.bf16.msra.mxu0 0
    %3097 = vmatprep.subr.bf16.mxu0 0
    %3098 = vmatpush2.bf16.msra.mxu0 0
    %3099 = vmatprep.subr.bf16.mxu0 0
    %3100 = vmatpush2.bf16.msra.mxu0 0
    %3101 = vmatprep.subr.bf16.mxu0 0
    %3102 = vmatpush2.bf16.msra.mxu0 0
    %3103 = vmatprep.subr.bf16.mxu0 0
    %3104 = vmatpush2.bf16.msra.mxu0 0
    %3105 = vmatprep.mubr.bf16.mxu0 0
    %3106 = vmatmul.mubr.bf16.gmra.mxu0 %v3071
    %v3107 = vpop.f32.mrf.mxu0
    %v3108 = vadd.f32 0.0, %v3107
    %v3109 = vpop.f32.mrf.mxu0
    %v3110 = vpop.f32.mrf.mxu0
    %v3111 = vpop.f32.mrf.mxu0
    %3112 = vdwg.mxu0
    %v3113 = vadd.f32 %v3067, %v3108
    %v3114 = vxor.u32 %v3066, 2147483648
    %v3115 = vmul.f32 %v3114, 1.442695
    %v3116 = vpow.pop %v3115
    %v3117 = vadd.f32 %v3116, 1.0
    %v3118 = vrcp.pop %v3117
    %v3119 = vmul.f32 1.0, %v3118
    %v3120 = vtanh.pop %v3066
    %v3121 = vmul.f32 %v3119, %v2973
    %3123 = vrot.lane.b32.xlu0 %v3120, 64
    %v3124 = vpop.permute.xlu0 %3123
    %v3126 = vmul.f32 %v3119, %v3124
    %3128 = vrot.lane.b32.xlu0 %v3126, 32
    %v3129 = vpop.permute.xlu0 %3128
    %v3131 = vadd.f32 %v3121, %v3129
    %v3132 = vtanh.pop %v3131
    %3134 = vrot.lane.b32.xlu0 %v3132, 64
    %v3135 = vpop.permute.xlu0 %3134
    %v3137 = vmul.f32 %v3119, %v3135
    %v3138 = vxor.u32 %v3113, 2147483648
    %v3139 = vmul.f32 %v3138, 1.442695
    %v3140 = vpow.pop %v3139
    %v3141 = vadd.f32 %v3140, 1.0
    %v3142 = vrcp.pop %v3141
    %v3143 = vmul.f32 1.0, %v3142
    %v3144 = vtanh.pop %v3113
    %v3145 = vmul.f32 %v3143, %v2997
    %3147 = vrot.lane.b32.xlu0 %v3144, 64
    %v3148 = vpop.permute.xlu0 %3147
    %v3150 = vmul.f32 %v3143, %v3148
    %3152 = vrot.lane.b32.xlu0 %v3150, 32
    %v3153 = vpop.permute.xlu0 %3152
    %v3155 = vadd.f32 %v3145, %v3153
    %v3156 = vtanh.pop %v3155
    %3158 = vrot.lane.b32.xlu0 %v3156, 64
    %v3159 = vpop.permute.xlu0 %3158
    %v3161 = vmul.f32 %v3143, %v3159
    %v3162 = vpack.c.bf16 %v3137, %v3137
    %v3163 = vpack.c.bf16 %v3161, %v3161
    %v3165 = vunpack.c.l.b16 %v3162
    %v3166 = vpack.c.b16 %v3165, %v3165
    %3167 = vrot.lane.b32.xlu0 %v3166, 32
    %v3168 = vpop.permute.xlu0 %3167
    %3170 = vst.msk [vmem:[%s1565] sm:$0xf] %vm427, %v3168
    %v3172 = vunpack.c.l.b16 %v3163
    %v3173 = vpack.c.b16 %v3172, %v3172
    %3174 = vrot.lane.b32.xlu0 %v3173, 32
    %v3175 = vpop.permute.xlu0 %3174
    %3177 = vst.msk [vmem:[#allocation4] sm:$0xf] %vm427, %v3175
    %v3178 = vld [vmem:[#allocation3] sm:$0xf]
    %v3179 = vld [vmem:[#allocation4] sm:$0xf]
    %v3180 = vld [vmem:[%s1565] sm:$0xf]
    %v3181 = vld [vmem:[%s435] sm:$0xf]
    %v3183 = vunpack.c.l.b16 %v3179
    %v3184 = vpack.c.b16 %v3183, %v3183
    %3185 = vrot.lane.b32.xlu0 %v3184, 32
    %v3186 = vpop.permute.xlu0 %3185
    %v3188 = vunpack.c.l.b16 %v3180
    %v3189 = vpack.c.b16 %v3188, %v3188
    %3190 = vrot.lane.b32.xlu0 %v3189, 64
    %v3191 = vpop.permute.xlu0 %3190
    %v3193 = vunpack.c.l.b16 %v3181
    %v3194 = vpack.c.b16 %v3193, %v3193
    %3195 = vrot.lane.b32.xlu0 %v3194, 96
    %v3196 = vpop.permute.xlu0 %3195
    %v3199 = vsel %vm144, %v3178, %v3186
    %vm3200 = vcmask 523264
    %v3202 = vsel %vm3200, %v3199, %v3191
    %vm3203 = vcmask 785408
    %v3205 = vsel %vm3203, %v3202, %v3196
    %v3207 = vld [vmem:[%s9] sm:$0xf]
    %v3208 = vld [vmem:[%s9 + $0x4] sm:$0xf]
    %v3209 = vld [vmem:[%s9 + $0x8] sm:$0xf]
    %v3210 = vld [vmem:[%s9 + $0xc] sm:$0xf]
    %v3211 = vld [vmem:[%s9 + $0x10] sm:$0xf]
    %v3212 = vld [vmem:[%s9 + $0x14] sm:$0xf]
    %v3213 = vld [vmem:[%s9 + $0x18] sm:$0xf]
    %v3214 = vld [vmem:[%s9 + $0x1c] sm:$0xf]
    %v3215 = vld [vmem:[%s9 + $0x20] sm:$0xf]
    %v3216 = vld [vmem:[%s9 + $0x24] sm:$0xf]
    %v3217 = vld [vmem:[%s9 + $0x28] sm:$0xf]
    %v3218 = vld [vmem:[%s9 + $0x2c] sm:$0xf]
    %v3219 = vld [vmem:[%s9 + $0x30] sm:$0xf]
    %v3220 = vld [vmem:[%s9 + $0x34] sm:$0xf]
    %v3221 = vld [vmem:[%s9 + $0x38] sm:$0xf]
    %v3222 = vld [vmem:[%s9 + $0x3c] sm:$0xf]
    %v3223 = vld [vmem:[%s10] sm:$0x1]
    %v3225 = vlaneseq
    %v3226 = vshrl.u32 %v3225, 7
    %v3227 = vsub.s32 0, %v3226
    %v3228 = vrot.slane %v3223, %v3227
    %v3246 = vunpack.c.l.b16 %v3207
    %v3247 = vunpack.c.l.b16 %v3208
    %v3248 = vunpack.c.l.b16 %v3209
    %v3249 = vunpack.c.l.b16 %v3210
    %v3250 = vunpack.c.l.b16 %v3211
    %v3251 = vunpack.c.l.b16 %v3212
    %v3252 = vunpack.c.l.b16 %v3213
    %v3253 = vunpack.c.l.b16 %v3214
    %v3254 = vunpack.c.l.b16 %v3215
    %v3255 = vunpack.c.l.b16 %v3216
    %v3256 = vunpack.c.l.b16 %v3217
    %v3257 = vunpack.c.l.b16 %v3218
    %v3258 = vunpack.c.l.b16 %v3219
    %v3259 = vunpack.c.l.b16 %v3220
    %v3260 = vunpack.c.l.b16 %v3221
    %v3261 = vunpack.c.l.b16 %v3222
    %v3262 = vpack.c.b16 %v3247, %v3246
    %v3263 = vpack.c.b16 %v3249, %v3248
    %v3264 = vpack.c.b16 %v3251, %v3250
    %v3265 = vpack.c.b16 %v3253, %v3252
    %v3266 = vpack.c.b16 %v3255, %v3254
    %v3267 = vpack.c.b16 %v3257, %v3256
    %v3268 = vpack.c.b16 %v3259, %v3258
    %v3269 = vpack.c.b16 %v3261, %v3260
    %3278 = vmatprep.subr.bf16.mxu0 0
    %3279 = vmatpush1.bf16.msra.mxu0 %v3269
    %3280 = vmatprep.subr.bf16.mxu0 0
    %3281 = vmatpush1.bf16.msra.mxu0 %v3268
    %3282 = vmatprep.subr.bf16.mxu0 0
    %3283 = vmatpush1.bf16.msra.mxu0 %v3267
    %3284 = vmatprep.subr.bf16.mxu0 0
    %3285 = vmatpush1.bf16.msra.mxu0 %v3266
    %3286 = vmatprep.subr.bf16.mxu0 0
    %3287 = vmatpush1.bf16.msra.mxu0 %v3265
    %3288 = vmatprep.subr.bf16.mxu0 0
    %3289 = vmatpush1.bf16.msra.mxu0 %v3264
    %3290 = vmatprep.subr.bf16.mxu0 0
    %3291 = vmatpush1.bf16.msra.mxu0 %v3263
    %3292 = vmatprep.subr.bf16.mxu0 0
    %3293 = vmatpush1.bf16.msra.mxu0 %v3262
    %3294 = vmatprep.subr.bf16.mxu0 0
    %3295 = vmatpush2.bf16.msra.mxu0 0
    %3296 = vmatprep.subr.bf16.mxu0 0
    %3297 = vmatpush2.bf16.msra.mxu0 0
    %3298 = vmatprep.subr.bf16.mxu0 0
    %3299 = vmatpush2.bf16.msra.mxu0 0
    %3300 = vmatprep.subr.bf16.mxu0 0
    %3301 = vmatpush2.bf16.msra.mxu0 0
    %3302 = vmatprep.subr.bf16.mxu0 0
    %3303 = vmatpush2.bf16.msra.mxu0 0
    %3304 = vmatprep.subr.bf16.mxu0 0
    %3305 = vmatpush2.bf16.msra.mxu0 0
    %3306 = vmatprep.subr.bf16.mxu0 0
    %3307 = vmatpush2.bf16.msra.mxu0 0
    %3308 = vmatprep.subr.bf16.mxu0 0
    %3309 = vmatpush2.bf16.msra.mxu0 0
    %3310 = vmatprep.mubr.bf16.mxu0 0
    %3311 = vmatmul.mubr.bf16.gmra.mxu0 %v3205
    %v3312 = vpop.f32.mrf.mxu0
    %v3313 = vadd.f32 %v3228, %v3312
    %v3314 = vpop.f32.mrf.mxu0
    %v3315 = vpop.f32.mrf.mxu0
    %v3316 = vpop.f32.mrf.mxu0
    %3317 = vdwg.mxu0
    %vm3318 = vcmask 15360
    %3319 = vst.msk [vmem:[%s11] sm:$0xff] %vm3318, %v3313
    // Predicated region
    $region58: #{tpu_custom_call.1} parent=1 // pred_check
      _
    $region59: #{tpu_custom_call.1} parent=1 // pred_check_branch
      %3321 = sbr.rel (0) target = $region61
    $region60: #{tpu_custom_call.1} parent=1 // pred_region
      _
    $region61: #{tpu_custom_call.1} parent=1 // pred_fallthru
      _
    // Predicated region
    $region62: #{tpu_custom_call.1} parent=1 // pred_check
      _
    $region63: #{tpu_custom_call.1} parent=1 // pred_check_branch
      %3323 = sbr.rel (0) target = $region65
    $region64: #{tpu_custom_call.1} parent=1 // pred_region
      _
    $region65: #{tpu_custom_call.1} parent=1 // pred_fallthru
      _
    %3324 = vsyncpa [#allocation6], 1
    %3325 = vsyncpa [#allocation8], 1

</llo_original>
